<compile_context>
chip_gen: v7x
topology: tpu7x:2x2x1
jax: 0.10.0
libtpu: 0.0.40
codegen_flags: <defaults>
</compile_context>

<pallas_src>
import functools

import jax
import jax.numpy as jnp
from jax.experimental import pallas as pl
from jax.experimental.pallas import tpu as pltpu


# ---------------------------------------------------------------------------
# Kernel: the full decoder stack (all DecoderBlocks) in one pallas_call.
# ---------------------------------------------------------------------------
def _decoder_stack_kernel(x_ref, enc_ref, wqkv_ref, bqkv_ref, wsq_ref, vec_ref,
                          o_ref, *, seq_len, num_heads, compute_dtype, approx_recip):
    blk = pl.program_id(1)                      # decoder-block index ("arbitrary" axis)

    Mt, E = o_ref.shape                         # Mt = Bt * L folded rows
    L = seq_len
    Bt = Mt // L
    H = num_heads
    Dh = E // H

    # Initialize the VMEM-resident carry with the decoder input at the first block.
    @pl.when(blk == 0)
    def _():
        o_ref[...] = x_ref[...].astype(o_ref.dtype)

    x2d = o_ref[...].astype(jnp.float32)        # (Mt, E) current block input (carry)
    enc2d = enc_ref[...].astype(jnp.float32)    # (Mt, E) encoder output (constant)

    # Per-block packed parameters (weights pre-transposed on host: y = x @ W).
    wqkv = wqkv_ref[0]                          # (2, E, 3E)  [self, cross] QKV in-proj
    bqkv = bqkv_ref[0].astype(jnp.float32)      # (2, 3E)
    wsq = wsq_ref[0]                            # (4, E, E)   out1, out2, ffn1, ffn2
    vec = vec_ref[0].astype(jnp.float32)        # (10, E)     biases + LayerNorm params

    def mm(a, b):
        # bf16 operands are the MXU fast path on v6e/v7x; always accumulate in f32.
        return jnp.dot(a.astype(compute_dtype), b.astype(compute_dtype),
                       preferred_element_type=jnp.float32)

    def layernorm(v, gamma, beta, eps=1e-6):
        mu = jnp.mean(v, axis=-1, keepdims=True)
        var = jnp.mean((v - mu) ** 2, axis=-1, keepdims=True)
        return (v - mu) * jax.lax.rsqrt(var + eps) * gamma + beta

    def split_heads(t2d):
        # (Mt, E) -> (H*Bt, L, Dh): per-head lane slice + leading-dim reshape + stack.
        # The head->batch relayout happens ONCE per attention (not per head-matmul).
        parts = [t2d[:, h * Dh:(h + 1) * Dh].reshape(Bt, L, Dh) for h in range(H)]
        return jnp.stack(parts, axis=0).reshape(H * Bt, L, Dh).astype(compute_dtype)

    def attention(q2d, k2d, v2d, w_out, b_out):
        """Multi-head attention over folded rows; q2d/k2d/v2d: (Mt, E)."""
        scale = 1.0 / (Dh ** 0.5)
        qh = split_heads(q2d)                              # (H*Bt, L, Dh)
        kh = split_heads(k2d)
        vh = split_heads(v2d)
        # ONE batched score matmul and ONE batched PV matmul for all heads.
        s = jnp.einsum("bqd,bkd->bqk", qh, kh,
                       preferred_element_type=jnp.float32) * scale
        s = s - jnp.max(s, axis=-1, keepdims=True)
        p = jnp.exp(s)
        p = p * pl.reciprocal(jnp.sum(p, axis=-1, keepdims=True), approx=approx_recip)
        oh = jnp.einsum("bqk,bkd->bqd", p.astype(compute_dtype), vh,
                        preferred_element_type=jnp.float32)          # (H*Bt, L, Dh)
        # Head "concat" = stores into adjacent lane columns; then a single full-K
        # (Mt,E)x(E,E) output projection (instead of H partial-depth K=Dh matmuls).
        oh = oh.reshape(H, Bt, L, Dh)
        attn = jnp.concatenate([oh[h].reshape(Mt, Dh) for h in range(H)], axis=-1)
        return mm(attn, w_out) + b_out

    # ---- self-attention: query = key = value = x -----------------------------------
    qkv1 = mm(x2d, wqkv[0]) + bqkv[0:1, :]                     # fused QKV: (Mt, 3E)
    a1 = attention(qkv1[:, 0:E], qkv1[:, E:2 * E], qkv1[:, 2 * E:3 * E],
                   wsq[0], vec[0:1])
    out = layernorm(a1 + x2d, vec[2:3], vec[3:4])

    # ---- cross-attention: query = key = encoded_x, value = x (as in the PyTorch code)
    qk2 = mm(enc2d, wqkv[1][:, 0:2 * E]) + bqkv[1:2, 0:2 * E]  # fused Q,K: (Mt, 2E)
    v2 = mm(x2d, wqkv[1][:, 2 * E:3 * E]) + bqkv[1:2, 2 * E:3 * E]
    a2 = attention(qk2[:, 0:E], qk2[:, E:2 * E], v2, wsq[1], vec[1:2])
    out = layernorm(a2 + out, vec[4:5], vec[5:6])

    # ---- feed-forward net: Linear -> ReLU -> Linear ---------------------------------
    hid = jnp.maximum(mm(out, wsq[2]) + vec[8:9], 0.0)
    ffn = mm(hid, wsq[3]) + vec[9:10]
    out = layernorm(ffn + out, vec[6:7], vec[7:8])

    o_ref[...] = out.astype(o_ref.dtype)


# ---------------------------------------------------------------------------
# Host-side parameter packing (pre-transpose + fuse + stack across blocks).
# ---------------------------------------------------------------------------
def pack_decoder_params(all_block_params, param_dtype=jnp.bfloat16):
    wqkv, bqkv, wsq, vec = [], [], [], []
    for p in all_block_params:
        wqkv.append(jnp.stack([p["w1_in"].T, p["w2_in"].T]).astype(param_dtype))
        bqkv.append(jnp.stack([p["b1_in"], p["b2_in"]]).astype(jnp.float32))
        wsq.append(jnp.stack([p["w1_out"].T, p["w2_out"].T,
                              p["wf1"].T, p["wf2"].T]).astype(param_dtype))
        vec.append(jnp.stack([p["b1_out"], p["b2_out"],
                              p["g1"], p["be1"], p["g2"], p["be2"],
                              p["g3"], p["be3"], p["bf1"], p["bf2"]]).astype(jnp.float32))
    return (jnp.stack(wqkv), jnp.stack(bqkv), jnp.stack(wsq), jnp.stack(vec))


# ---------------------------------------------------------------------------
# Hardware-aware tiling helpers.
# ---------------------------------------------------------------------------
def _vmem_capacity_bytes():
    try:
        info = pltpu.get_tpu_info()
        cap = getattr(info, "vmem_capacity_bytes", None)
        if cap:
            return int(cap)
    except Exception:
        pass
    return 64 * 1024 * 1024        # conservative fallback: v7x per-TensorCore VMEM


def _num_tensorcores():
    try:
        d = jax.devices()[0]
        n = getattr(d, "num_cores", None)
        if n:
            return max(1, int(n))
        kind = str(getattr(d, "device_kind", "")).lower()
        if "v4" in kind or "v5p" in kind:
            return 2
    except Exception:
        pass
    return 1


def _estimate_vmem_bytes(Bt, L, E, H, act_bytes, param_bytes):
    Mt = Bt * L
    act = 3 * 2 * Mt * E * act_bytes                 # x, enc, out blocks, double-buffered
    weights = 2 * (10 * E * E) * param_bytes         # (2,E,3E) + (4,E,E), double-buffered
    small = 2 * (2 * 3 * E + 10 * E) * 4             # bias / LN vectors (f32)
    inter = (8 * Mt * E + 2 * Bt * H * L * L) * 4    # rough f32 temporaries + scores
    return act + weights + small + inter


def _select_batch_tile(B, L, E, H, act_bytes, param_bytes, budget_bytes, want_tiles):
    # Largest batch tile (dividing B) whose estimated VMEM footprint fits the budget.
    # Because the block axis is innermost, every extra row tile re-streams all per-block
    # weights from HBM -> maximise Mt (soft cap ~2048 folded rows).
    cands = [bt for bt in range(1, B + 1)
             if B % bt == 0 and ((bt * L) % 8 == 0 or bt == B)]
    fits = [bt for bt in cands
            if _estimate_vmem_bytes(bt, L, E, H, act_bytes, param_bytes) <= budget_bytes]
    pool = fits if fits else [min(cands)]
    # v7x megacore: keep >= 2 row tiles so the "parallel" axis shards across both cores.
    multi = [bt for bt in pool if (B // bt) >= want_tiles]
    pool = multi if multi else pool
    soft = [bt for bt in pool if bt * L <= 2048]
    pool = soft if soft else [min(pool)]
    return max(pool)


# ---------------------------------------------------------------------------
# Wrapper.
# ---------------------------------------------------------------------------
def decoder_forward_pallas(x, encoded_x, all_block_params, num_heads, *,
                           compute_dtype=jnp.bfloat16,     # MXU operand dtype (f32 accum)
                           param_dtype=jnp.bfloat16,       # weight storage / DMA dtype
                           act_dtype=None,                 # activation stream/carry dtype
                           approx_recip=True,
                           vmem_budget_bytes=None):
    B, L, E = x.shape
    assert encoded_x.shape == (B, L, E)
    assert E % num_heads == 0
    n_blocks = len(all_block_params)
    assert n_blocks >= 1

    if act_dtype is None:
        act_dtype = x.dtype
    act_bytes = jnp.dtype(act_dtype).itemsize
    param_bytes = jnp.dtype(param_dtype).itemsize

    phys_vmem = _vmem_capacity_bytes()
    if vmem_budget_bytes is None:
        vmem_budget_bytes = int(0.55 * phys_vmem)
    # Raise the scoped VMEM limit well above the 16/32 MiB defaults, capped below the
    # physical capacity of the smallest-VMEM generation we might run on.
    vmem_limit = int(max(32 * 1024 * 1024, min(0.9 * phys_vmem, 96 * 1024 * 1024)))

    wqkv, bqkv, wsq, vec = pack_decoder_params(all_block_params, param_dtype)

    Bt = _select_batch_tile(B, L, E, num_heads, act_bytes, param_bytes,
                            vmem_budget_bytes, _num_tensorcores())
    Mt = Bt * L
    num_m = (B * L) // Mt

    # Fold batch into the row (M) dimension; free host-side reshape of contiguous data.
    x2 = x.reshape(B * L, E).astype(act_dtype)
    enc2 = encoded_x.reshape(B * L, E).astype(act_dtype)

    kernel = functools.partial(_decoder_stack_kernel, seq_len=L, num_heads=num_heads,
                               compute_dtype=compute_dtype, approx_recip=approx_recip)

    out2 = pl.pallas_call(
        kernel,
        out_shape=jax.ShapeDtypeStruct((B * L, E), act_dtype),
        grid_spec=pltpu.PrefetchScalarGridSpec(
            num_scalar_prefetch=0,
            grid=(num_m, n_blocks),
            in_specs=[
                pl.BlockSpec((Mt, E), lambda m, blk: (m, 0)),               # x rows
                pl.BlockSpec((Mt, E), lambda m, blk: (m, 0)),               # encoded_x
                pl.BlockSpec((1, 2, E, 3 * E), lambda m, blk: (blk, 0, 0, 0)),
                pl.BlockSpec((1, 2, 3 * E), lambda m, blk: (blk, 0, 0)),
                pl.BlockSpec((1, 4, E, E), lambda m, blk: (blk, 0, 0, 0)),
                pl.BlockSpec((1, 10, E), lambda m, blk: (blk, 0, 0)),
            ],
            # Same output block across the block axis -> VMEM-resident carry, written
            # back to HBM only once per row tile.
            out_specs=pl.BlockSpec((Mt, E), lambda m, blk: (m, 0)),
        ),
        compiler_params=pltpu.CompilerParams(
            dimension_semantics=("parallel", "arbitrary"),
            vmem_limit_bytes=vmem_limit),
    )(x2, enc2, wqkv, bqkv, wsq, vec)

    return out2.reshape(B, L, E)


# ---------------------------------------------------------------------------
# Pure-JAX reference (mirrors the PyTorch module, eval mode).
# ---------------------------------------------------------------------------
def _ref_layernorm(x, g, b, eps=1e-6):
    mu = jnp.mean(x, axis=-1, keepdims=True)
    var = jnp.mean((x - mu) ** 2, axis=-1, keepdims=True)
    return (x - mu) * jax.lax.rsqrt(var + eps) * g + b


def _ref_mha(q_in, k_in, v_in, w_in, b_in, w_out, b_out, num_heads):
    E = q_in.shape[-1]
    Dh = E // num_heads
    q = q_in @ w_in[0:E].T + b_in[0:E]
    k = k_in @ w_in[E:2 * E].T + b_in[E:2 * E]
    v = v_in @ w_in[2 * E:3 * E].T + b_in[2 * E:3 * E]
    scale = 1.0 / (Dh ** 0.5)
    outs = []
    for h in range(num_heads):
        sl = slice(h * Dh, (h + 1) * Dh)
        s = (q[:, sl] @ k[:, sl].T) * scale
        p = jax.nn.softmax(s, axis=-1)
        outs.append(p @ v[:, sl])
    attn = jnp.concatenate(outs, axis=-1)
    return attn @ w_out.T + b_out


def _ref_block(x, enc, p, num_heads):
    a1 = _ref_mha(x, x, x, p["w1_in"], p["b1_in"], p["w1_out"], p["b1_out"], num_heads)
    out = _ref_layernorm(a1 + x, p["g1"], p["be1"])
    a2 = _ref_mha(enc, enc, x, p["w2_in"], p["b2_in"], p["w2_out"], p["b2_out"], num_heads)
    out = _ref_layernorm(a2 + out, p["g2"], p["be2"])
    h = jax.nn.relu(out @ p["wf1"].T + p["bf1"])
    ffn = h @ p["wf2"].T + p["bf2"]
    return _ref_layernorm(ffn + out, p["g3"], p["be3"])


def decoder_forward_ref(x, enc, all_block_params, num_heads):
    for p in all_block_params:
        x = jax.vmap(lambda xb, eb, p=p: _ref_block(xb, eb, p, num_heads))(x, enc)
    return x


# ---------------------------------------------------------------------------
# Deterministic parameter init (PyTorch-shaped params).
# ---------------------------------------------------------------------------
def init_block_params(key, embed_dim):
    E = embed_dim
    ks = jax.random.split(key, 18)
    n = lambda k, shape, s=0.05: (s * jax.random.normal(k, shape)).astype(jnp.float32)
    return {
        "w1_in": n(ks[0], (3 * E, E)), "b1_in": n(ks[1], (3 * E,)),
        "w1_out": n(ks[2], (E, E)),    "b1_out": n(ks[3], (E,)),
        "w2_in": n(ks[4], (3 * E, E)), "b2_in": n(ks[5], (3 * E,)),
        "w2_out": n(ks[6], (E, E)),    "b2_out": n(ks[7], (E,)),
        "g1": 1.0 + n(ks[8], (E,), 0.02),  "be1": n(ks[9], (E,), 0.02),
        "g2": 1.0 + n(ks[10], (E,), 0.02), "be2": n(ks[11], (E,), 0.02),
        "g3": 1.0 + n(ks[12], (E,), 0.02), "be3": n(ks[13], (E,), 0.02),
        "wf1": n(ks[14], (E, E)), "bf1": n(ks[15], (E,)),
        "wf2": n(ks[16], (E, E)), "bf2": n(ks[17], (E,)),
    }


if __name__ == "__main__":
    B, L, E, H = 2, 8, 32, 4
    n_dec_blcks = 2  # module default is 6; kept small for the synthetic test

    key = jax.random.PRNGKey(0)
    kx, kenc, kparams = jax.random.split(key, 3)
    x = jax.random.normal(kx, (B, L, E), dtype=jnp.float32)
    encoded_x = jax.random.normal(kenc, (B, L, E), dtype=jnp.float32)

    block_keys = jax.random.split(kparams, n_dec_blcks)
    all_block_params = [init_block_params(k, E) for k in block_keys]

    ref = decoder_forward_ref(x, encoded_x, all_block_params, H)
    ref = jax.block_until_ready(ref)

    # ---- f32 parity path: tight check against the pure-JAX reference ----------------
    out_f32 = decoder_forward_pallas(
        x, encoded_x, all_block_params, num_heads=H,
        compute_dtype=jnp.float32, param_dtype=jnp.float32,
        act_dtype=jnp.float32, approx_recip=False)
    out_f32 = jax.block_until_ready(out_f32)
    assert out_f32.shape == (B, L, E)
    assert jnp.allclose(out_f32, ref, atol=1e-4, rtol=1e-4), (
        "f32 parity mismatch vs pure-JAX reference; max abs err = "
        f"{float(jnp.max(jnp.abs(out_f32 - ref)))}")

    # ---- bf16 production path (default): loose numerical sanity check ---------------
    out_bf16 = decoder_forward_pallas(
        x, encoded_x, all_block_params, num_heads=H, act_dtype=jnp.bfloat16)
    out_bf16 = jax.block_until_ready(out_bf16).astype(jnp.float32)
    assert out_bf16.shape == (B, L, E)
    assert bool(jnp.all(jnp.isfinite(out_bf16)))
    bf16_err = float(jnp.max(jnp.abs(out_bf16 - ref)))
    assert bf16_err < 0.25, f"bf16 production path diverged; max abs err = {bf16_err}"

    print("KERNEL_OK")
</pallas_src>

<mosaic_0001>
module attributes {stable_mosaic.version = 11 : i64} {
  func.func @_decoder_stack_kernel(%arg0: i32, %arg1: i32, %arg2: memref<16x32xf32, #tpu.memory_space<vmem>>, %arg3: memref<16x32xf32, #tpu.memory_space<vmem>>, %arg4: memref<1x2x32x96xf32, #tpu.memory_space<vmem>>, %arg5: memref<1x2x96xf32, #tpu.memory_space<vmem>>, %arg6: memref<1x4x32x32xf32, #tpu.memory_space<vmem>>, %arg7: memref<1x10x32xf32, #tpu.memory_space<vmem>>, %arg8: memref<16x32xf32, #tpu.memory_space<vmem>>) attributes {dimension_semantics = [#tpu.dimension_semantics<parallel>, #tpu.dimension_semantics<arbitrary>], iteration_bounds = array<i64: 1, 2>, scalar_prefetch = 0 : i64, scratch_operands = 0 : i64, tpu.core_type = #tpu.core_type<tc>, window_params = [{transform_indices = @transform_0, window_bounds = array<i64: 16, 32>}, {transform_indices = @transform_1, window_bounds = array<i64: 16, 32>}, {transform_indices = @transform_2, window_bounds = array<i64: 1, 2, 32, 96>}, {transform_indices = @transform_3, window_bounds = array<i64: 1, 2, 96>}, {transform_indices = @transform_4, window_bounds = array<i64: 1, 4, 32, 32>}, {transform_indices = @transform_5, window_bounds = array<i64: 1, 10, 32>}, {transform_indices = @transform_6, window_bounds = array<i64: 16, 32>}]} {
    %c0_i32 = arith.constant 0 : i32
    %0 = arith.cmpi eq, %arg1, %c0_i32 : i32
    %1 = arith.extui %0 : i1 to i32
    %c0_i32_0 = arith.constant 0 : i32
    %2 = arith.cmpi ne, %1, %c0_i32_0 : i32
    scf.if %2 {
      %c0_52 = arith.constant 0 : index
      %c0_53 = arith.constant 0 : index
      %280 = vector.load %arg2[%c0_52, %c0_53] : memref<16x32xf32, #tpu.memory_space<vmem>>, vector<16x32xf32>
      %c0_54 = arith.constant 0 : index
      %c0_55 = arith.constant 0 : index
      %281 = vector.load %arg8[%c0_54, %c0_55] : memref<16x32xf32, #tpu.memory_space<vmem>>, vector<16x32xf32>
      tpu.vector_store %arg8[%c0_54, %c0_55], %280 {strides = array<i32>} : memref<16x32xf32, #tpu.memory_space<vmem>>, vector<16x32xf32>,
    } else {
    }
    %c0 = arith.constant 0 : index
    %c0_1 = arith.constant 0 : index
    %3 = vector.load %arg8[%c0, %c0_1] : memref<16x32xf32, #tpu.memory_space<vmem>>, vector<16x32xf32>
    %c0_2 = arith.constant 0 : index
    %c0_3 = arith.constant 0 : index
    %4 = vector.load %arg3[%c0_2, %c0_3] : memref<16x32xf32, #tpu.memory_space<vmem>>, vector<16x32xf32>
    %c0_4 = arith.constant 0 : index
    %c0_5 = arith.constant 0 : index
    %c0_6 = arith.constant 0 : index
    %c0_7 = arith.constant 0 : index
    %5 = vector.load %arg4[%c0_4, %c0_5, %c0_6, %c0_7] : memref<1x2x32x96xf32, #tpu.memory_space<vmem>>, vector<1x2x32x96xf32>
    %6 = vector.shape_cast %5 : vector<1x2x32x96xf32> to vector<2x32x96xf32>
    %c0_8 = arith.constant 0 : index
    %c0_9 = arith.constant 0 : index
    %c0_10 = arith.constant 0 : index
    %7 = vector.load %arg5[%c0_8, %c0_9, %c0_10] : memref<1x2x96xf32, #tpu.memory_space<vmem>>, vector<1x2x96xf32>
    %8 = vector.shape_cast %7 : vector<1x2x96xf32> to vector<2x96xf32>
    %c0_11 = arith.constant 0 : index
    %c0_12 = arith.constant 0 : index
    %c0_13 = arith.constant 0 : index
    %c0_14 = arith.constant 0 : index
    %9 = vector.load %arg6[%c0_11, %c0_12, %c0_13, %c0_14] : memref<1x4x32x32xf32, #tpu.memory_space<vmem>>, vector<1x4x32x32xf32>
    %10 = vector.shape_cast %9 : vector<1x4x32x32xf32> to vector<4x32x32xf32>
    %c0_15 = arith.constant 0 : index
    %c0_16 = arith.constant 0 : index
    %c0_17 = arith.constant 0 : index
    %11 = vector.load %arg7[%c0_15, %c0_16, %c0_17] : memref<1x10x32xf32, #tpu.memory_space<vmem>>, vector<1x10x32xf32>
    %12 = vector.shape_cast %11 : vector<1x10x32xf32> to vector<10x32xf32>
    %13 = vector.extract_strided_slice %6 {offsets = [0, 0, 0], sizes = [1, 32, 96], strides = [1, 1, 1]} : vector<2x32x96xf32> to vector<1x32x96xf32>
    %14 = vector.shape_cast %13 : vector<1x32x96xf32> to vector<32x96xf32>
    %cst = arith.constant dense<0.000000e+00> : vector<16x96xf32>
    %15 = tpu.matmul %3, %14, %cst {dimension_numbers = #tpu.dot_dimension_numbers<[1], [0], [0], [1], [0, 0, 1, 1], [], []>} : vector<16x32xf32>, vector<32x96xf32>, vector<16x96xf32> -> vector<16x96xf32>
    %16 = vector.extract_strided_slice %8 {offsets = [0, 0], sizes = [1, 96], strides = [1, 1]} : vector<2x96xf32> to vector<1x96xf32>
    %17 = vector.broadcast %16 : vector<1x96xf32> to vector<16x96xf32>
    %18 = arith.addf %15, %17 : vector<16x96xf32>
    %19 = vector.extract_strided_slice %18 {offsets = [0, 0], sizes = [16, 32], strides = [1, 1]} : vector<16x96xf32> to vector<16x32xf32>
    %20 = vector.extract_strided_slice %18 {offsets = [0, 32], sizes = [16, 32], strides = [1, 1]} : vector<16x96xf32> to vector<16x32xf32>
    %21 = vector.extract_strided_slice %18 {offsets = [0, 64], sizes = [16, 32], strides = [1, 1]} : vector<16x96xf32> to vector<16x32xf32>
    %22 = vector.extract_strided_slice %10 {offsets = [0, 0, 0], sizes = [1, 32, 32], strides = [1, 1, 1]} : vector<4x32x32xf32> to vector<1x32x32xf32>
    %23 = vector.shape_cast %22 : vector<1x32x32xf32> to vector<32x32xf32>
    %24 = vector.extract_strided_slice %12 {offsets = [0, 0], sizes = [1, 32], strides = [1, 1]} : vector<10x32xf32> to vector<1x32xf32>
    %25 = vector.extract_strided_slice %19 {offsets = [0, 0], sizes = [16, 8], strides = [1, 1]} : vector<16x32xf32> to vector<16x8xf32>
    %26 = vector.shape_cast %25 : vector<16x8xf32> to vector<2x8x8xf32>
    %27 = vector.extract_strided_slice %19 {offsets = [0, 8], sizes = [16, 8], strides = [1, 1]} : vector<16x32xf32> to vector<16x8xf32>
    %28 = vector.shape_cast %27 : vector<16x8xf32> to vector<2x8x8xf32>
    %29 = vector.extract_strided_slice %19 {offsets = [0, 16], sizes = [16, 8], strides = [1, 1]} : vector<16x32xf32> to vector<16x8xf32>
    %30 = vector.shape_cast %29 : vector<16x8xf32> to vector<2x8x8xf32>
    %31 = vector.extract_strided_slice %19 {offsets = [0, 24], sizes = [16, 8], strides = [1, 1]} : vector<16x32xf32> to vector<16x8xf32>
    %32 = vector.shape_cast %31 : vector<16x8xf32> to vector<2x8x8xf32>
    %33 = vector.shape_cast %26 : vector<2x8x8xf32> to vector<1x2x8x8xf32>
    %34 = vector.shape_cast %28 : vector<2x8x8xf32> to vector<1x2x8x8xf32>
    %35 = vector.shape_cast %30 : vector<2x8x8xf32> to vector<1x2x8x8xf32>
    %36 = vector.shape_cast %32 : vector<2x8x8xf32> to vector<1x2x8x8xf32>
    %37 = tpu.concatenate %33, %34, %35, %36 in 0 : vector<1x2x8x8xf32>, vector<1x2x8x8xf32>, vector<1x2x8x8xf32>, vector<1x2x8x8xf32> -> vector<4x2x8x8xf32>
    %38 = vector.shape_cast %37 : vector<4x2x8x8xf32> to vector<8x8x8xf32>
    %39 = vector.extract_strided_slice %20 {offsets = [0, 0], sizes = [16, 8], strides = [1, 1]} : vector<16x32xf32> to vector<16x8xf32>
    %40 = vector.shape_cast %39 : vector<16x8xf32> to vector<2x8x8xf32>
    %41 = vector.extract_strided_slice %20 {offsets = [0, 8], sizes = [16, 8], strides = [1, 1]} : vector<16x32xf32> to vector<16x8xf32>
    %42 = vector.shape_cast %41 : vector<16x8xf32> to vector<2x8x8xf32>
    %43 = vector.extract_strided_slice %20 {offsets = [0, 16], sizes = [16, 8], strides = [1, 1]} : vector<16x32xf32> to vector<16x8xf32>
    %44 = vector.shape_cast %43 : vector<16x8xf32> to vector<2x8x8xf32>
    %45 = vector.extract_strided_slice %20 {offsets = [0, 24], sizes = [16, 8], strides = [1, 1]} : vector<16x32xf32> to vector<16x8xf32>
    %46 = vector.shape_cast %45 : vector<16x8xf32> to vector<2x8x8xf32>
    %47 = vector.shape_cast %40 : vector<2x8x8xf32> to vector<1x2x8x8xf32>
    %48 = vector.shape_cast %42 : vector<2x8x8xf32> to vector<1x2x8x8xf32>
    %49 = vector.shape_cast %44 : vector<2x8x8xf32> to vector<1x2x8x8xf32>
    %50 = vector.shape_cast %46 : vector<2x8x8xf32> to vector<1x2x8x8xf32>
    %51 = tpu.concatenate %47, %48, %49, %50 in 0 : vector<1x2x8x8xf32>, vector<1x2x8x8xf32>, vector<1x2x8x8xf32>, vector<1x2x8x8xf32> -> vector<4x2x8x8xf32>
    %52 = vector.shape_cast %51 : vector<4x2x8x8xf32> to vector<8x8x8xf32>
    %53 = vector.extract_strided_slice %21 {offsets = [0, 0], sizes = [16, 8], strides = [1, 1]} : vector<16x32xf32> to vector<16x8xf32>
    %54 = vector.shape_cast %53 : vector<16x8xf32> to vector<2x8x8xf32>
    %55 = vector.extract_strided_slice %21 {offsets = [0, 8], sizes = [16, 8], strides = [1, 1]} : vector<16x32xf32> to vector<16x8xf32>
    %56 = vector.shape_cast %55 : vector<16x8xf32> to vector<2x8x8xf32>
    %57 = vector.extract_strided_slice %21 {offsets = [0, 16], sizes = [16, 8], strides = [1, 1]} : vector<16x32xf32> to vector<16x8xf32>
    %58 = vector.shape_cast %57 : vector<16x8xf32> to vector<2x8x8xf32>
    %59 = vector.extract_strided_slice %21 {offsets = [0, 24], sizes = [16, 8], strides = [1, 1]} : vector<16x32xf32> to vector<16x8xf32>
    %60 = vector.shape_cast %59 : vector<16x8xf32> to vector<2x8x8xf32>
    %61 = vector.shape_cast %54 : vector<2x8x8xf32> to vector<1x2x8x8xf32>
    %62 = vector.shape_cast %56 : vector<2x8x8xf32> to vector<1x2x8x8xf32>
    %63 = vector.shape_cast %58 : vector<2x8x8xf32> to vector<1x2x8x8xf32>
    %64 = vector.shape_cast %60 : vector<2x8x8xf32> to vector<1x2x8x8xf32>
    %65 = tpu.concatenate %61, %62, %63, %64 in 0 : vector<1x2x8x8xf32>, vector<1x2x8x8xf32>, vector<1x2x8x8xf32>, vector<1x2x8x8xf32> -> vector<4x2x8x8xf32>
    %66 = vector.shape_cast %65 : vector<4x2x8x8xf32> to vector<8x8x8xf32>
    "tpu.trace_start"() <{level = 10 : i32, message = "bqd,bkd->bqk"}> : () -> ()
    %cst_18 = arith.constant dense<0.000000e+00> : vector<8x8x8xf32>
    %67 = tpu.matmul %38, %52, %cst_18 {dimension_numbers = #tpu.dot_dimension_numbers<[2], [2], [1], [1], [0, 0, 0, 1, 1, 1], [0], [0]>} : vector<8x8x8xf32>, vector<8x8x8xf32>, vector<8x8x8xf32> -> vector<8x8x8xf32>
    "tpu.trace_stop"() : () -> ()
    %cst_19 = arith.constant 0.353553385 : f32
    %68 = vector.broadcast %cst_19 : f32 to vector<8x8x8xf32>
    %69 = arith.mulf %67, %68 : vector<8x8x8xf32>
    %cst_20 = arith.constant dense<0xFF800000> : vector<8x8xf32>
    %70 = vector.multi_reduction <maximumf>, %69, %cst_20 [2] : vector<8x8x8xf32> to vector<8x8xf32>
    %71 = vector.shape_cast %70 : vector<8x8xf32> to vector<8x8x1xf32>
    %72 = vector.broadcast %71 : vector<8x8x1xf32> to vector<8x8x8xf32>
    %73 = arith.subf %69, %72 : vector<8x8x8xf32>
    %74 = math.exp %73 : vector<8x8x8xf32>
    %cst_21 = arith.constant dense<0.000000e+00> : vector<8x8xf32>
    %75 = vector.multi_reduction <add>, %74, %cst_21 [2] : vector<8x8x8xf32> to vector<8x8xf32>
    %76 = vector.shape_cast %75 : vector<8x8xf32> to vector<8x8x1xf32>
    %77 = tpu.reciprocal %76 : vector<8x8x1xf32> -> vector<8x8x1xf32>
    %78 = vector.broadcast %77 : vector<8x8x1xf32> to vector<8x8x8xf32>
    %79 = arith.mulf %74, %78 : vector<8x8x8xf32>
    "tpu.trace_start"() <{level = 10 : i32, message = "bqk,bkd->bqd"}> : () -> ()
    %cst_22 = arith.constant dense<0.000000e+00> : vector<8x8x8xf32>
    %80 = tpu.matmul %79, %66, %cst_22 {dimension_numbers = #tpu.dot_dimension_numbers<[2], [1], [1], [2], [0, 0, 0, 1, 1, 2], [0], [0]>} : vector<8x8x8xf32>, vector<8x8x8xf32>, vector<8x8x8xf32> -> vector<8x8x8xf32>
    "tpu.trace_stop"() : () -> ()
    %81 = vector.shape_cast %80 : vector<8x8x8xf32> to vector<4x2x8x8xf32>
    %82 = vector.extract_strided_slice %81 {offsets = [0, 0, 0, 0], sizes = [1, 2, 8, 8], strides = [1, 1, 1, 1]} : vector<4x2x8x8xf32> to vector<1x2x8x8xf32>
    %83 = vector.shape_cast %82 : vector<1x2x8x8xf32> to vector<2x8x8xf32>
    %84 = vector.shape_cast %83 : vector<2x8x8xf32> to vector<16x8xf32>
    %85 = vector.extract_strided_slice %81 {offsets = [1, 0, 0, 0], sizes = [1, 2, 8, 8], strides = [1, 1, 1, 1]} : vector<4x2x8x8xf32> to vector<1x2x8x8xf32>
    %86 = vector.shape_cast %85 : vector<1x2x8x8xf32> to vector<2x8x8xf32>
    %87 = vector.shape_cast %86 : vector<2x8x8xf32> to vector<16x8xf32>
    %88 = vector.extract_strided_slice %81 {offsets = [2, 0, 0, 0], sizes = [1, 2, 8, 8], strides = [1, 1, 1, 1]} : vector<4x2x8x8xf32> to vector<1x2x8x8xf32>
    %89 = vector.shape_cast %88 : vector<1x2x8x8xf32> to vector<2x8x8xf32>
    %90 = vector.shape_cast %89 : vector<2x8x8xf32> to vector<16x8xf32>
    %91 = vector.extract_strided_slice %81 {offsets = [3, 0, 0, 0], sizes = [1, 2, 8, 8], strides = [1, 1, 1, 1]} : vector<4x2x8x8xf32> to vector<1x2x8x8xf32>
    %92 = vector.shape_cast %91 : vector<1x2x8x8xf32> to vector<2x8x8xf32>
    %93 = vector.shape_cast %92 : vector<2x8x8xf32> to vector<16x8xf32>
    %94 = tpu.concatenate %84, %87, %90, %93 in 1 : vector<16x8xf32>, vector<16x8xf32>, vector<16x8xf32>, vector<16x8xf32> -> vector<16x32xf32>
    %cst_23 = arith.constant dense<0.000000e+00> : vector<16x32xf32>
    %95 = tpu.matmul %94, %23, %cst_23 {dimension_numbers = #tpu.dot_dimension_numbers<[1], [0], [0], [1], [0, 0, 1, 1], [], []>} : vector<16x32xf32>, vector<32x32xf32>, vector<16x32xf32> -> vector<16x32xf32>
    %96 = vector.broadcast %24 : vector<1x32xf32> to vector<16x32xf32>
    %97 = arith.addf %95, %96 : vector<16x32xf32>
    %98 = arith.addf %97, %3 : vector<16x32xf32>
    %99 = vector.extract_strided_slice %12 {offsets = [2, 0], sizes = [1, 32], strides = [1, 1]} : vector<10x32xf32> to vector<1x32xf32>
    %100 = vector.extract_strided_slice %12 {offsets = [3, 0], sizes = [1, 32], strides = [1, 1]} : vector<10x32xf32> to vector<1x32xf32>
    %cst_24 = arith.constant dense<0.000000e+00> : vector<16xf32>
    %101 = vector.multi_reduction <add>, %98, %cst_24 [1] : vector<16x32xf32> to vector<16xf32>
    %102 = vector.shape_cast %101 : vector<16xf32> to vector<16x1xf32>
    %cst_25 = arith.constant 3.200000e+01 : f32
    %103 = vector.broadcast %cst_25 : f32 to vector<16x1xf32>
    %104 = arith.divf %102, %103 : vector<16x1xf32>
    %105 = vector.broadcast %104 : vector<16x1xf32> to vector<16x32xf32>
    %106 = arith.subf %98, %105 : vector<16x32xf32>
    %107 = arith.mulf %106, %106 : vector<16x32xf32>
    %cst_26 = arith.constant dense<0.000000e+00> : vector<16xf32>
    %108 = vector.multi_reduction <add>, %107, %cst_26 [1] : vector<16x32xf32> to vector<16xf32>
    %109 = vector.shape_cast %108 : vector<16xf32> to vector<16x1xf32>
    %cst_27 = arith.constant 3.200000e+01 : f32
    %110 = vector.broadcast %cst_27 : f32 to vector<16x1xf32>
    %111 = arith.divf %109, %110 : vector<16x1xf32>
    %112 = vector.broadcast %104 : vector<16x1xf32> to vector<16x32xf32>
    %113 = arith.subf %98, %112 : vector<16x32xf32>
    %cst_28 = arith.constant 9.99999997E-7 : f32
    %114 = vector.broadcast %cst_28 : f32 to vector<16x1xf32>
    %115 = arith.addf %111, %114 : vector<16x1xf32>
    %116 = math.rsqrt %115 : vector<16x1xf32>
    %117 = vector.broadcast %116 : vector<16x1xf32> to vector<16x32xf32>
    %118 = arith.mulf %113, %117 : vector<16x32xf32>
    %119 = vector.broadcast %99 : vector<1x32xf32> to vector<16x32xf32>
    %120 = arith.mulf %118, %119 : vector<16x32xf32>
    %121 = vector.broadcast %100 : vector<1x32xf32> to vector<16x32xf32>
    %122 = arith.addf %120, %121 : vector<16x32xf32>
    %123 = vector.extract_strided_slice %6 {offsets = [1, 0, 0], sizes = [1, 32, 96], strides = [1, 1, 1]} : vector<2x32x96xf32> to vector<1x32x96xf32>
    %124 = vector.shape_cast %123 : vector<1x32x96xf32> to vector<32x96xf32>
    %125 = vector.extract_strided_slice %124 {offsets = [0, 0], sizes = [32, 64], strides = [1, 1]} : vector<32x96xf32> to vector<32x64xf32>
    %cst_29 = arith.constant dense<0.000000e+00> : vector<16x64xf32>
    %126 = tpu.matmul %4, %125, %cst_29 {dimension_numbers = #tpu.dot_dimension_numbers<[1], [0], [0], [1], [0, 0, 1, 1], [], []>} : vector<16x32xf32>, vector<32x64xf32>, vector<16x64xf32> -> vector<16x64xf32>
    %127 = vector.extract_strided_slice %8 {offsets = [1, 0], sizes = [1, 64], strides = [1, 1]} : vector<2x96xf32> to vector<1x64xf32>
    %128 = vector.broadcast %127 : vector<1x64xf32> to vector<16x64xf32>
    %129 = arith.addf %126, %128 : vector<16x64xf32>
    %130 = vector.extract_strided_slice %6 {offsets = [1, 0, 0], sizes = [1, 32, 96], strides = [1, 1, 1]} : vector<2x32x96xf32> to vector<1x32x96xf32>
    %131 = vector.shape_cast %130 : vector<1x32x96xf32> to vector<32x96xf32>
    %132 = vector.extract_strided_slice %131 {offsets = [0, 64], sizes = [32, 32], strides = [1, 1]} : vector<32x96xf32> to vector<32x32xf32>
    %cst_30 = arith.constant dense<0.000000e+00> : vector<16x32xf32>
    %133 = tpu.matmul %3, %132, %cst_30 {dimension_numbers = #tpu.dot_dimension_numbers<[1], [0], [0], [1], [0, 0, 1, 1], [], []>} : vector<16x32xf32>, vector<32x32xf32>, vector<16x32xf32> -> vector<16x32xf32>
    %134 = vector.extract_strided_slice %8 {offsets = [1, 64], sizes = [1, 32], strides = [1, 1]} : vector<2x96xf32> to vector<1x32xf32>
    %135 = vector.broadcast %134 : vector<1x32xf32> to vector<16x32xf32>
    %136 = arith.addf %133, %135 : vector<16x32xf32>
    %137 = vector.extract_strided_slice %129 {offsets = [0, 0], sizes = [16, 32], strides = [1, 1]} : vector<16x64xf32> to vector<16x32xf32>
    %138 = vector.extract_strided_slice %129 {offsets = [0, 32], sizes = [16, 32], strides = [1, 1]} : vector<16x64xf32> to vector<16x32xf32>
    %139 = vector.extract_strided_slice %10 {offsets = [1, 0, 0], sizes = [1, 32, 32], strides = [1, 1, 1]} : vector<4x32x32xf32> to vector<1x32x32xf32>
    %140 = vector.shape_cast %139 : vector<1x32x32xf32> to vector<32x32xf32>
    %141 = vector.extract_strided_slice %12 {offsets = [1, 0], sizes = [1, 32], strides = [1, 1]} : vector<10x32xf32> to vector<1x32xf32>
    %142 = vector.extract_strided_slice %137 {offsets = [0, 0], sizes = [16, 8], strides = [1, 1]} : vector<16x32xf32> to vector<16x8xf32>
    %143 = vector.shape_cast %142 : vector<16x8xf32> to vector<2x8x8xf32>
    %144 = vector.extract_strided_slice %137 {offsets = [0, 8], sizes = [16, 8], strides = [1, 1]} : vector<16x32xf32> to vector<16x8xf32>
    %145 = vector.shape_cast %144 : vector<16x8xf32> to vector<2x8x8xf32>
    %146 = vector.extract_strided_slice %137 {offsets = [0, 16], sizes = [16, 8], strides = [1, 1]} : vector<16x32xf32> to vector<16x8xf32>
    %147 = vector.shape_cast %146 : vector<16x8xf32> to vector<2x8x8xf32>
    %148 = vector.extract_strided_slice %137 {offsets = [0, 24], sizes = [16, 8], strides = [1, 1]} : vector<16x32xf32> to vector<16x8xf32>
    %149 = vector.shape_cast %148 : vector<16x8xf32> to vector<2x8x8xf32>
    %150 = vector.shape_cast %143 : vector<2x8x8xf32> to vector<1x2x8x8xf32>
    %151 = vector.shape_cast %145 : vector<2x8x8xf32> to vector<1x2x8x8xf32>
    %152 = vector.shape_cast %147 : vector<2x8x8xf32> to vector<1x2x8x8xf32>
    %153 = vector.shape_cast %149 : vector<2x8x8xf32> to vector<1x2x8x8xf32>
    %154 = tpu.concatenate %150, %151, %152, %153 in 0 : vector<1x2x8x8xf32>, vector<1x2x8x8xf32>, vector<1x2x8x8xf32>, vector<1x2x8x8xf32> -> vector<4x2x8x8xf32>
    %155 = vector.shape_cast %154 : vector<4x2x8x8xf32> to vector<8x8x8xf32>
    %156 = vector.extract_strided_slice %138 {offsets = [0, 0], sizes = [16, 8], strides = [1, 1]} : vector<16x32xf32> to vector<16x8xf32>
    %157 = vector.shape_cast %156 : vector<16x8xf32> to vector<2x8x8xf32>
    %158 = vector.extract_strided_slice %138 {offsets = [0, 8], sizes = [16, 8], strides = [1, 1]} : vector<16x32xf32> to vector<16x8xf32>
    %159 = vector.shape_cast %158 : vector<16x8xf32> to vector<2x8x8xf32>
    %160 = vector.extract_strided_slice %138 {offsets = [0, 16], sizes = [16, 8], strides = [1, 1]} : vector<16x32xf32> to vector<16x8xf32>
    %161 = vector.shape_cast %160 : vector<16x8xf32> to vector<2x8x8xf32>
    %162 = vector.extract_strided_slice %138 {offsets = [0, 24], sizes = [16, 8], strides = [1, 1]} : vector<16x32xf32> to vector<16x8xf32>
    %163 = vector.shape_cast %162 : vector<16x8xf32> to vector<2x8x8xf32>
    %164 = vector.shape_cast %157 : vector<2x8x8xf32> to vector<1x2x8x8xf32>
    %165 = vector.shape_cast %159 : vector<2x8x8xf32> to vector<1x2x8x8xf32>
    %166 = vector.shape_cast %161 : vector<2x8x8xf32> to vector<1x2x8x8xf32>
    %167 = vector.shape_cast %163 : vector<2x8x8xf32> to vector<1x2x8x8xf32>
    %168 = tpu.concatenate %164, %165, %166, %167 in 0 : vector<1x2x8x8xf32>, vector<1x2x8x8xf32>, vector<1x2x8x8xf32>, vector<1x2x8x8xf32> -> vector<4x2x8x8xf32>
    %169 = vector.shape_cast %168 : vector<4x2x8x8xf32> to vector<8x8x8xf32>
    %170 = vector.extract_strided_slice %136 {offsets = [0, 0], sizes = [16, 8], strides = [1, 1]} : vector<16x32xf32> to vector<16x8xf32>
    %171 = vector.shape_cast %170 : vector<16x8xf32> to vector<2x8x8xf32>
    %172 = vector.extract_strided_slice %136 {offsets = [0, 8], sizes = [16, 8], strides = [1, 1]} : vector<16x32xf32> to vector<16x8xf32>
    %173 = vector.shape_cast %172 : vector<16x8xf32> to vector<2x8x8xf32>
    %174 = vector.extract_strided_slice %136 {offsets = [0, 16], sizes = [16, 8], strides = [1, 1]} : vector<16x32xf32> to vector<16x8xf32>
    %175 = vector.shape_cast %174 : vector<16x8xf32> to vector<2x8x8xf32>
    %176 = vector.extract_strided_slice %136 {offsets = [0, 24], sizes = [16, 8], strides = [1, 1]} : vector<16x32xf32> to vector<16x8xf32>
    %177 = vector.shape_cast %176 : vector<16x8xf32> to vector<2x8x8xf32>
    %178 = vector.shape_cast %171 : vector<2x8x8xf32> to vector<1x2x8x8xf32>
    %179 = vector.shape_cast %173 : vector<2x8x8xf32> to vector<1x2x8x8xf32>
    %180 = vector.shape_cast %175 : vector<2x8x8xf32> to vector<1x2x8x8xf32>
    %181 = vector.shape_cast %177 : vector<2x8x8xf32> to vector<1x2x8x8xf32>
    %182 = tpu.concatenate %178, %179, %180, %181 in 0 : vector<1x2x8x8xf32>, vector<1x2x8x8xf32>, vector<1x2x8x8xf32>, vector<1x2x8x8xf32> -> vector<4x2x8x8xf32>
    %183 = vector.shape_cast %182 : vector<4x2x8x8xf32> to vector<8x8x8xf32>
    "tpu.trace_start"() <{level = 10 : i32, message = "bqd,bkd->bqk"}> : () -> ()
    %cst_31 = arith.constant dense<0.000000e+00> : vector<8x8x8xf32>
    %184 = tpu.matmul %155, %169, %cst_31 {dimension_numbers = #tpu.dot_dimension_numbers<[2], [2], [1], [1], [0, 0, 0, 1, 1, 1], [0], [0]>} : vector<8x8x8xf32>, vector<8x8x8xf32>, vector<8x8x8xf32> -> vector<8x8x8xf32>
    "tpu.trace_stop"() : () -> ()
    %cst_32 = arith.constant 0.353553385 : f32
    %185 = vector.broadcast %cst_32 : f32 to vector<8x8x8xf32>
    %186 = arith.mulf %184, %185 : vector<8x8x8xf32>
    %cst_33 = arith.constant dense<0xFF800000> : vector<8x8xf32>
    %187 = vector.multi_reduction <maximumf>, %186, %cst_33 [2] : vector<8x8x8xf32> to vector<8x8xf32>
    %188 = vector.shape_cast %187 : vector<8x8xf32> to vector<8x8x1xf32>
    %189 = vector.broadcast %188 : vector<8x8x1xf32> to vector<8x8x8xf32>
    %190 = arith.subf %186, %189 : vector<8x8x8xf32>
    %191 = math.exp %190 : vector<8x8x8xf32>
    %cst_34 = arith.constant dense<0.000000e+00> : vector<8x8xf32>
    %192 = vector.multi_reduction <add>, %191, %cst_34 [2] : vector<8x8x8xf32> to vector<8x8xf32>
    %193 = vector.shape_cast %192 : vector<8x8xf32> to vector<8x8x1xf32>
    %194 = tpu.reciprocal %193 : vector<8x8x1xf32> -> vector<8x8x1xf32>
    %195 = vector.broadcast %194 : vector<8x8x1xf32> to vector<8x8x8xf32>
    %196 = arith.mulf %191, %195 : vector<8x8x8xf32>
    "tpu.trace_start"() <{level = 10 : i32, message = "bqk,bkd->bqd"}> : () -> ()
    %cst_35 = arith.constant dense<0.000000e+00> : vector<8x8x8xf32>
    %197 = tpu.matmul %196, %183, %cst_35 {dimension_numbers = #tpu.dot_dimension_numbers<[2], [1], [1], [2], [0, 0, 0, 1, 1, 2], [0], [0]>} : vector<8x8x8xf32>, vector<8x8x8xf32>, vector<8x8x8xf32> -> vector<8x8x8xf32>
    "tpu.trace_stop"() : () -> ()
    %198 = vector.shape_cast %197 : vector<8x8x8xf32> to vector<4x2x8x8xf32>
    %199 = vector.extract_strided_slice %198 {offsets = [0, 0, 0, 0], sizes = [1, 2, 8, 8], strides = [1, 1, 1, 1]} : vector<4x2x8x8xf32> to vector<1x2x8x8xf32>
    %200 = vector.shape_cast %199 : vector<1x2x8x8xf32> to vector<2x8x8xf32>
    %201 = vector.shape_cast %200 : vector<2x8x8xf32> to vector<16x8xf32>
    %202 = vector.extract_strided_slice %198 {offsets = [1, 0, 0, 0], sizes = [1, 2, 8, 8], strides = [1, 1, 1, 1]} : vector<4x2x8x8xf32> to vector<1x2x8x8xf32>
    %203 = vector.shape_cast %202 : vector<1x2x8x8xf32> to vector<2x8x8xf32>
    %204 = vector.shape_cast %203 : vector<2x8x8xf32> to vector<16x8xf32>
    %205 = vector.extract_strided_slice %198 {offsets = [2, 0, 0, 0], sizes = [1, 2, 8, 8], strides = [1, 1, 1, 1]} : vector<4x2x8x8xf32> to vector<1x2x8x8xf32>
    %206 = vector.shape_cast %205 : vector<1x2x8x8xf32> to vector<2x8x8xf32>
    %207 = vector.shape_cast %206 : vector<2x8x8xf32> to vector<16x8xf32>
    %208 = vector.extract_strided_slice %198 {offsets = [3, 0, 0, 0], sizes = [1, 2, 8, 8], strides = [1, 1, 1, 1]} : vector<4x2x8x8xf32> to vector<1x2x8x8xf32>
    %209 = vector.shape_cast %208 : vector<1x2x8x8xf32> to vector<2x8x8xf32>
    %210 = vector.shape_cast %209 : vector<2x8x8xf32> to vector<16x8xf32>
    %211 = tpu.concatenate %201, %204, %207, %210 in 1 : vector<16x8xf32>, vector<16x8xf32>, vector<16x8xf32>, vector<16x8xf32> -> vector<16x32xf32>
    %cst_36 = arith.constant dense<0.000000e+00> : vector<16x32xf32>
    %212 = tpu.matmul %211, %140, %cst_36 {dimension_numbers = #tpu.dot_dimension_numbers<[1], [0], [0], [1], [0, 0, 1, 1], [], []>} : vector<16x32xf32>, vector<32x32xf32>, vector<16x32xf32> -> vector<16x32xf32>
    %213 = vector.broadcast %141 : vector<1x32xf32> to vector<16x32xf32>
    %214 = arith.addf %212, %213 : vector<16x32xf32>
    %215 = arith.addf %214, %122 : vector<16x32xf32>
    %216 = vector.extract_strided_slice %12 {offsets = [4, 0], sizes = [1, 32], strides = [1, 1]} : vector<10x32xf32> to vector<1x32xf32>
    %217 = vector.extract_strided_slice %12 {offsets = [5, 0], sizes = [1, 32], strides = [1, 1]} : vector<10x32xf32> to vector<1x32xf32>
    %cst_37 = arith.constant dense<0.000000e+00> : vector<16xf32>
    %218 = vector.multi_reduction <add>, %215, %cst_37 [1] : vector<16x32xf32> to vector<16xf32>
    %219 = vector.shape_cast %218 : vector<16xf32> to vector<16x1xf32>
    %cst_38 = arith.constant 3.200000e+01 : f32
    %220 = vector.broadcast %cst_38 : f32 to vector<16x1xf32>
    %221 = arith.divf %219, %220 : vector<16x1xf32>
    %222 = vector.broadcast %221 : vector<16x1xf32> to vector<16x32xf32>
    %223 = arith.subf %215, %222 : vector<16x32xf32>
    %224 = arith.mulf %223, %223 : vector<16x32xf32>
    %cst_39 = arith.constant dense<0.000000e+00> : vector<16xf32>
    %225 = vector.multi_reduction <add>, %224, %cst_39 [1] : vector<16x32xf32> to vector<16xf32>
    %226 = vector.shape_cast %225 : vector<16xf32> to vector<16x1xf32>
    %cst_40 = arith.constant 3.200000e+01 : f32
    %227 = vector.broadcast %cst_40 : f32 to vector<16x1xf32>
    %228 = arith.divf %226, %227 : vector<16x1xf32>
    %229 = vector.broadcast %221 : vector<16x1xf32> to vector<16x32xf32>
    %230 = arith.subf %215, %229 : vector<16x32xf32>
    %cst_41 = arith.constant 9.99999997E-7 : f32
    %231 = vector.broadcast %cst_41 : f32 to vector<16x1xf32>
    %232 = arith.addf %228, %231 : vector<16x1xf32>
    %233 = math.rsqrt %232 : vector<16x1xf32>
    %234 = vector.broadcast %233 : vector<16x1xf32> to vector<16x32xf32>
    %235 = arith.mulf %230, %234 : vector<16x32xf32>
    %236 = vector.broadcast %216 : vector<1x32xf32> to vector<16x32xf32>
    %237 = arith.mulf %235, %236 : vector<16x32xf32>
    %238 = vector.broadcast %217 : vector<1x32xf32> to vector<16x32xf32>
    %239 = arith.addf %237, %238 : vector<16x32xf32>
    %240 = vector.extract_strided_slice %10 {offsets = [2, 0, 0], sizes = [1, 32, 32], strides = [1, 1, 1]} : vector<4x32x32xf32> to vector<1x32x32xf32>
    %241 = vector.shape_cast %240 : vector<1x32x32xf32> to vector<32x32xf32>
    %cst_42 = arith.constant dense<0.000000e+00> : vector<16x32xf32>
    %242 = tpu.matmul %239, %241, %cst_42 {dimension_numbers = #tpu.dot_dimension_numbers<[1], [0], [0], [1], [0, 0, 1, 1], [], []>} : vector<16x32xf32>, vector<32x32xf32>, vector<16x32xf32> -> vector<16x32xf32>
    %243 = vector.extract_strided_slice %12 {offsets = [8, 0], sizes = [1, 32], strides = [1, 1]} : vector<10x32xf32> to vector<1x32xf32>
    %244 = vector.broadcast %243 : vector<1x32xf32> to vector<16x32xf32>
    %245 = arith.addf %242, %244 : vector<16x32xf32>
    %cst_43 = arith.constant 0.000000e+00 : f32
    %246 = vector.broadcast %cst_43 : f32 to vector<16x32xf32>
    %247 = arith.maximumf %245, %246 : vector<16x32xf32>
    %248 = vector.extract_strided_slice %10 {offsets = [3, 0, 0], sizes = [1, 32, 32], strides = [1, 1, 1]} : vector<4x32x32xf32> to vector<1x32x32xf32>
    %249 = vector.shape_cast %248 : vector<1x32x32xf32> to vector<32x32xf32>
    %cst_44 = arith.constant dense<0.000000e+00> : vector<16x32xf32>
    %250 = tpu.matmul %247, %249, %cst_44 {dimension_numbers = #tpu.dot_dimension_numbers<[1], [0], [0], [1], [0, 0, 1, 1], [], []>} : vector<16x32xf32>, vector<32x32xf32>, vector<16x32xf32> -> vector<16x32xf32>
    %251 = vector.extract_strided_slice %12 {offsets = [9, 0], sizes = [1, 32], strides = [1, 1]} : vector<10x32xf32> to vector<1x32xf32>
    %252 = vector.broadcast %251 : vector<1x32xf32> to vector<16x32xf32>
    %253 = arith.addf %250, %252 : vector<16x32xf32>
    %254 = arith.addf %253, %239 : vector<16x32xf32>
    %255 = vector.extract_strided_slice %12 {offsets = [6, 0], sizes = [1, 32], strides = [1, 1]} : vector<10x32xf32> to vector<1x32xf32>
    %256 = vector.extract_strided_slice %12 {offsets = [7, 0], sizes = [1, 32], strides = [1, 1]} : vector<10x32xf32> to vector<1x32xf32>
    %cst_45 = arith.constant dense<0.000000e+00> : vector<16xf32>
    %257 = vector.multi_reduction <add>, %254, %cst_45 [1] : vector<16x32xf32> to vector<16xf32>
    %258 = vector.shape_cast %257 : vector<16xf32> to vector<16x1xf32>
    %cst_46 = arith.constant 3.200000e+01 : f32
    %259 = vector.broadcast %cst_46 : f32 to vector<16x1xf32>
    %260 = arith.divf %258, %259 : vector<16x1xf32>
    %261 = vector.broadcast %260 : vector<16x1xf32> to vector<16x32xf32>
    %262 = arith.subf %254, %261 : vector<16x32xf32>
    %263 = arith.mulf %262, %262 : vector<16x32xf32>
    %cst_47 = arith.constant dense<0.000000e+00> : vector<16xf32>
    %264 = vector.multi_reduction <add>, %263, %cst_47 [1] : vector<16x32xf32> to vector<16xf32>
    %265 = vector.shape_cast %264 : vector<16xf32> to vector<16x1xf32>
    %cst_48 = arith.constant 3.200000e+01 : f32
    %266 = vector.broadcast %cst_48 : f32 to vector<16x1xf32>
    %267 = arith.divf %265, %266 : vector<16x1xf32>
    %268 = vector.broadcast %260 : vector<16x1xf32> to vector<16x32xf32>
    %269 = arith.subf %254, %268 : vector<16x32xf32>
    %cst_49 = arith.constant 9.99999997E-7 : f32
    %270 = vector.broadcast %cst_49 : f32 to vector<16x1xf32>
    %271 = arith.addf %267, %270 : vector<16x1xf32>
    %272 = math.rsqrt %271 : vector<16x1xf32>
    %273 = vector.broadcast %272 : vector<16x1xf32> to vector<16x32xf32>
    %274 = arith.mulf %269, %273 : vector<16x32xf32>
    %275 = vector.broadcast %255 : vector<1x32xf32> to vector<16x32xf32>
    %276 = arith.mulf %274, %275 : vector<16x32xf32>
    %277 = vector.broadcast %256 : vector<1x32xf32> to vector<16x32xf32>
    %278 = arith.addf %276, %277 : vector<16x32xf32>
    %c0_50 = arith.constant 0 : index
    %c0_51 = arith.constant 0 : index
    %279 = vector.load %arg8[%c0_50, %c0_51] : memref<16x32xf32, #tpu.memory_space<vmem>>, vector<16x32xf32>
    tpu.vector_store %arg8[%c0_50, %c0_51], %278 {strides = array<i32>} : memref<16x32xf32, #tpu.memory_space<vmem>>, vector<16x32xf32>,
    return
  }
  func.func @transform_0(%arg0: i32, %arg1: i32) -> (i32, i32) {
    %c0_i32 = arith.constant 0 : i32
    %c0_i32_0 = arith.constant 0 : i32
    return %arg0, %c0_i32 : i32, i32
  }
  func.func @transform_1(%arg0: i32, %arg1: i32) -> (i32, i32) {
    %c0_i32 = arith.constant 0 : i32
    %c0_i32_0 = arith.constant 0 : i32
    return %arg0, %c0_i32 : i32, i32
  }
  func.func @transform_2(%arg0: i32, %arg1: i32) -> (i32, i32, i32, i32) {
    %c0_i32 = arith.constant 0 : i32
    %c0_i32_0 = arith.constant 0 : i32
    %c0_i32_1 = arith.constant 0 : i32
    %c0_i32_2 = arith.constant 0 : i32
    return %arg1, %c0_i32, %c0_i32_0, %c0_i32_1 : i32, i32, i32, i32
  }
  func.func @transform_3(%arg0: i32, %arg1: i32) -> (i32, i32, i32) {
    %c0_i32 = arith.constant 0 : i32
    %c0_i32_0 = arith.constant 0 : i32
    %c0_i32_1 = arith.constant 0 : i32
    return %arg1, %c0_i32, %c0_i32_0 : i32, i32, i32
  }
  func.func @transform_4(%arg0: i32, %arg1: i32) -> (i32, i32, i32, i32) {
    %c0_i32 = arith.constant 0 : i32
    %c0_i32_0 = arith.constant 0 : i32
    %c0_i32_1 = arith.constant 0 : i32
    %c0_i32_2 = arith.constant 0 : i32
    return %arg1, %c0_i32, %c0_i32_0, %c0_i32_1 : i32, i32, i32, i32
  }
  func.func @transform_5(%arg0: i32, %arg1: i32) -> (i32, i32, i32) {
    %c0_i32 = arith.constant 0 : i32
    %c0_i32_0 = arith.constant 0 : i32
    %c0_i32_1 = arith.constant 0 : i32
    return %arg1, %c0_i32, %c0_i32_0 : i32, i32, i32
  }
  func.func @transform_6(%arg0: i32, %arg1: i32) -> (i32, i32) {
    %c0_i32 = arith.constant 0 : i32
    %c0_i32_0 = arith.constant 0 : i32
    return %arg0, %c0_i32 : i32, i32
  }
}

</mosaic_0001>

<llo_original>
// kernel: tpu_custom_call.1
$region0: #{tpu_custom_call.1}
  #allocation0 [shape = 'u32[]', space=smem, size = 0x4, offset = 0x4, fixed_abs, tag = 'smem constant byte address 0x4 - core index']
  #allocation1 [shape = 'u32[144,128]{1,0:T(1,128)}', space=vmem, size = 0x12000, scoped, tag = 'internal scratch']
  %s0 = inlined_call_operand.vmem [shape: f32[16,32], index: 0, kind: input, shape index: {}]
  %s1 = inlined_call_operand.vmem [shape: f32[16,32], index: 1, kind: input, shape index: {}]
  %s2 = inlined_call_operand.hbm [shape: f32[2,2,32,96], index: 2, kind: input, shape index: {}]
  %s3 = inlined_call_operand.vmem [shape: f32[2,2,96], index: 3, kind: input, shape index: {}]
  %s4 = inlined_call_operand.hbm [shape: f32[2,4,32,32], index: 4, kind: input, shape index: {}]
  %s5 = inlined_call_operand.vmem [shape: f32[2,10,32], index: 5, kind: input, shape index: {}]
  %s6 = inlined_call_operand.hbm [shape: f32[16,32], index: 6, kind: output, shape index: {}]
  %s7 = sld [smem:[#allocation0]]
  $region69: #{tpu_custom_call.1} parent=0
    _
  %s9 = ssub.s32 1, %s7
  %s10 = scalar_select 0, %s9, %s7
  $region1: #{tpu_custom_call.1} parent=0
    #allocation2 [shape = 'u8[65536]{0}', space=vmem, size = 0x10000, scoped, tag = 'input window, operand 2']
    #allocation3 [shape = 's32[2]{0}', space=sflag, size = 0x8, scoped, tag = 'scoped memory for tpu_custom_call.1']
    #allocation4 [shape = 's32[2]{0}', space=sflag, size = 0x8, scoped, tag = 'scoped memory for tpu_custom_call.1']
    #allocation5 [shape = 'u8[131072]{0}', space=vmem, size = 0x20000, scoped, tag = 'input window, operand 4']
    #allocation6 [shape = 's32[2]{0}', space=sflag, size = 0x8, scoped, tag = 'scoped memory for tpu_custom_call.1']
    #allocation7 [shape = 'u8[8192]{0}', space=vmem, size = 0x2000, scoped, tag = 'output window, operand 0, single buffered']
    %11 = vsyncpa [#allocation3], 0
    %s12 = scalar_lea.sflag [#allocation3], 1
    %13 = vsyncpa %s12, 0
    %14 = vsyncpa [#allocation6], 0
    %s15 = scalar_lea.sflag [#allocation6], 1
    %16 = vsyncpa %s15, 0
    %17 = vsyncpa [#allocation4], 0
    loop: start=0, step=1, limit=4
    $region2: #{tpu_custom_call.1} parent=1 // loop_pre_header
      _
    $region3: #{tpu_custom_call.1} parent=1 // loop_header
      %s19 = sphi 0, %s23
      %p20 = scmp.ge.s32.totalorder %s19, 4
      %s26 = sphi 0, %s38
      %s27 = sphi 0, %s34
      %s28 = sphi 0, %s26
      %s29 = sphi 0, %s27
      %s30 = sphi 0, %s28
      %s31 = sphi 0, %s29
      %s41 = sphi 0, %s43
      %s44 = sphi 0, %s41
      %s45 = sphi 0, %s44
      %s61 = sphi 0, %s45
      %s67 = sphi 0, %s69
      %s70 = sphi 0, %s67
      %s71 = sphi 0, %s70
      %s87 = sphi 0, %s71
      %s93 = sphi 0, %s95
      %s96 = sphi 0, %s93
      %s97 = sphi 0, %s96
      %s113 = sphi 0, %s97
      %s119 = sphi 0, %s121
      %s122 = sphi 0, %s119
      %s123 = sphi 0, %s122
      %s139 = sphi 0, %s123
      %s145 = sphi 0, %s147
      %s148 = sphi 0, %s145
      %s149 = sphi 0, %s148
      %s165 = sphi 0, %s149
      %s171 = sphi 0, %s173
      %s174 = sphi 0, %s171
      %s175 = sphi 0, %s174
      %s191 = sphi 0, %s175
      %s197 = sphi 0, %s199
      %s200 = sphi 0, %s197
      %s201 = sphi 0, %s200
      %s217 = sphi 0, %s201
    $region4: #{tpu_custom_call.1} parent=1 // loop_header_branch
      %22 = sbr.rel (%p20) target = $region8
    $region5: #{tpu_custom_call.1} parent=1 // loop_body
      %s24 = ssub.s32 %s19, 1
      %s25 = ssub.s32 %s19, 2
      %s32 = sadd.s32 1, %s27
      %p33 = scmp.ge.s32.totalorder %s32, 2
      %s34 = scalar_select %p33, 0, %s32
      %s35 = sadd.s32 1, %s26
      %s36 = scalar_select %p33, %s35, %s26
      %p37 = scmp.ge.s32.totalorder %s36, 1
      %s38 = scalar_select %p37, 0, %s36
      %s39 = ssub.s32 %s26, %s38
      %p40 = scmp.eq.s32.totalorder %s39, 0
      %s42 = sadd.s32 %s41, 1
      %s43 = scalar_select %p40, %s41, %s42
      %p46 = pneg %p40
      %p47 = scmp.eq.s32.totalorder %s19, 1
      %p48 = por %p46, %p47
      %p49 = scmp.ne.s32.totalorder %s41, %s44
      %p50 = scmp.eq.s32.totalorder %s19, 0
      %p51 = por %p49, %p50
      %p52 = scmp.ne.s32.totalorder %s41, %s44
      %p53 = scmp.eq.s32.totalorder %s24, 1
      %p54 = por %p52, %p53
      %p55 = scmp.ne.s32.totalorder %s44, %s45
      %p56 = scmp.eq.s32.totalorder %s24, 0
      %p57 = por %p55, %p56
      %p58 = scmp.ne.s32.totalorder %s44, %s45
      %p59 = scmp.eq.s32.totalorder %s25, 1
      %p60 = por %p58, %p59
      %p62 = scmp.ne.s32.totalorder %s45, %s61
      %p63 = scmp.eq.s32.totalorder %s25, 0
      %p64 = por %p62, %p63
      %s65 = ssub.s32 %s26, %s38
      %p66 = scmp.eq.s32.totalorder %s65, 0
      %s68 = sadd.s32 %s67, 1
      %s69 = scalar_select %p66, %s67, %s68
      %p72 = pneg %p66
      %p73 = scmp.eq.s32.totalorder %s19, 1
      %p74 = por %p72, %p73
      %p75 = scmp.ne.s32.totalorder %s67, %s70
      %p76 = scmp.eq.s32.totalorder %s19, 0
      %p77 = por %p75, %p76
      %p78 = scmp.ne.s32.totalorder %s67, %s70
      %p79 = scmp.eq.s32.totalorder %s24, 1
      %p80 = por %p78, %p79
      %p81 = scmp.ne.s32.totalorder %s70, %s71
      %p82 = scmp.eq.s32.totalorder %s24, 0
      %p83 = por %p81, %p82
      %p84 = scmp.ne.s32.totalorder %s70, %s71
      %p85 = scmp.eq.s32.totalorder %s25, 1
      %p86 = por %p84, %p85
      %p88 = scmp.ne.s32.totalorder %s71, %s87
      %p89 = scmp.eq.s32.totalorder %s25, 0
      %p90 = por %p88, %p89
      %s91 = ssub.s32 %s27, %s34
      %p92 = scmp.eq.s32.totalorder %s91, 0
      %s94 = sadd.s32 %s93, 1
      %s95 = scalar_select %p92, %s93, %s94
      %p98 = pneg %p92
      %p99 = scmp.eq.s32.totalorder %s19, 1
      %p100 = por %p98, %p99
      %p101 = scmp.ne.s32.totalorder %s93, %s96
      %p102 = scmp.eq.s32.totalorder %s19, 0
      %p103 = por %p101, %p102
      %p104 = scmp.ne.s32.totalorder %s93, %s96
      %p105 = scmp.eq.s32.totalorder %s24, 1
      %p106 = por %p104, %p105
      %p107 = scmp.ne.s32.totalorder %s96, %s97
      %p108 = scmp.eq.s32.totalorder %s24, 0
      %p109 = por %p107, %p108
      %p110 = scmp.ne.s32.totalorder %s96, %s97
      %p111 = scmp.eq.s32.totalorder %s25, 1
      %p112 = por %p110, %p111
      %p114 = scmp.ne.s32.totalorder %s97, %s113
      %p115 = scmp.eq.s32.totalorder %s25, 0
      %p116 = por %p114, %p115
      %s117 = ssub.s32 %s27, %s34
      %p118 = scmp.eq.s32.totalorder %s117, 0
      %s120 = sadd.s32 %s119, 1
      %s121 = scalar_select %p118, %s119, %s120
      %p124 = pneg %p118
      %p125 = scmp.eq.s32.totalorder %s19, 1
      %p126 = por %p124, %p125
      %p127 = scmp.ne.s32.totalorder %s119, %s122
      %p128 = scmp.eq.s32.totalorder %s19, 0
      %p129 = por %p127, %p128
      %p130 = scmp.ne.s32.totalorder %s119, %s122
      %p131 = scmp.eq.s32.totalorder %s24, 1
      %p132 = por %p130, %p131
      %p133 = scmp.ne.s32.totalorder %s122, %s123
      %p134 = scmp.eq.s32.totalorder %s24, 0
      %p135 = por %p133, %p134
      %p136 = scmp.ne.s32.totalorder %s122, %s123
      %p137 = scmp.eq.s32.totalorder %s25, 1
      %p138 = por %p136, %p137
      %p140 = scmp.ne.s32.totalorder %s123, %s139
      %p141 = scmp.eq.s32.totalorder %s25, 0
      %p142 = por %p140, %p141
      %s143 = ssub.s32 %s27, %s34
      %p144 = scmp.eq.s32.totalorder %s143, 0
      %s146 = sadd.s32 %s145, 1
      %s147 = scalar_select %p144, %s145, %s146
      %p150 = pneg %p144
      %p151 = scmp.eq.s32.totalorder %s19, 1
      %p152 = por %p150, %p151
      %p153 = scmp.ne.s32.totalorder %s145, %s148
      %p154 = scmp.eq.s32.totalorder %s19, 0
      %p155 = por %p153, %p154
      %p156 = scmp.ne.s32.totalorder %s145, %s148
      %p157 = scmp.eq.s32.totalorder %s24, 1
      %p158 = por %p156, %p157
      %p159 = scmp.ne.s32.totalorder %s148, %s149
      %p160 = scmp.eq.s32.totalorder %s24, 0
      %p161 = por %p159, %p160
      %p162 = scmp.ne.s32.totalorder %s148, %s149
      %p163 = scmp.eq.s32.totalorder %s25, 1
      %p164 = por %p162, %p163
      %p166 = scmp.ne.s32.totalorder %s149, %s165
      %p167 = scmp.eq.s32.totalorder %s25, 0
      %p168 = por %p166, %p167
      %s169 = ssub.s32 %s27, %s34
      %p170 = scmp.eq.s32.totalorder %s169, 0
      %s172 = sadd.s32 %s171, 1
      %s173 = scalar_select %p170, %s171, %s172
      %p176 = pneg %p170
      %p177 = scmp.eq.s32.totalorder %s19, 1
      %p178 = por %p176, %p177
      %p179 = scmp.ne.s32.totalorder %s171, %s174
      %p180 = scmp.eq.s32.totalorder %s19, 0
      %p181 = por %p179, %p180
      %p182 = scmp.ne.s32.totalorder %s171, %s174
      %p183 = scmp.eq.s32.totalorder %s24, 1
      %p184 = por %p182, %p183
      %p185 = scmp.ne.s32.totalorder %s174, %s175
      %p186 = scmp.eq.s32.totalorder %s24, 0
      %p187 = por %p185, %p186
      %p188 = scmp.ne.s32.totalorder %s174, %s175
      %p189 = scmp.eq.s32.totalorder %s25, 1
      %p190 = por %p188, %p189
      %p192 = scmp.ne.s32.totalorder %s175, %s191
      %p193 = scmp.eq.s32.totalorder %s25, 0
      %p194 = por %p192, %p193
      %s195 = ssub.s32 %s26, %s38
      %p196 = scmp.eq.s32.totalorder %s195, 0
      %s198 = sadd.s32 %s197, 1
      %s199 = scalar_select %p196, %s197, %s198
      %p202 = pneg %p196
      %p203 = scmp.eq.s32.totalorder %s19, 1
      %p204 = por %p202, %p203
      %p205 = scmp.ne.s32.totalorder %s197, %s200
      %p206 = scmp.eq.s32.totalorder %s19, 0
      %p207 = por %p205, %p206
      %p208 = scmp.ne.s32.totalorder %s197, %s200
      %p209 = scmp.eq.s32.totalorder %s24, 1
      %p210 = por %p208, %p209
      %p211 = scmp.ne.s32.totalorder %s200, %s201
      %p212 = scmp.eq.s32.totalorder %s24, 0
      %p213 = por %p211, %p212
      %p214 = scmp.ne.s32.totalorder %s200, %s201
      %p215 = scmp.eq.s32.totalorder %s25, 1
      %p216 = por %p214, %p215
      %p218 = scmp.ne.s32.totalorder %s201, %s217
      %p219 = scmp.eq.s32.totalorder %s25, 0
      %p220 = por %p218, %p219
      %p221 = scmp.le.s32.totalorder 1, %s19
      %p222 = scmp.lt.s32.totalorder %s19, 3
      %p223 = pnand %p221, %p222
      %p224 = pneg %p223
      // Predicated region
      $region9: #{tpu_custom_call.1} parent=5 // pred_check
        _
      $region10: #{tpu_custom_call.1} parent=5 // pred_check_branch
        %226 = sbr.rel (%p223) target = $region12
      $region11: #{tpu_custom_call.1} parent=5 // pred_region
        %s227 = ssub.s32 %s19, 1
        // Predicated region
        $region13: #{tpu_custom_call.1} parent=11 // pred_check
          %p228 = pneg %p57
        $region14: #{tpu_custom_call.1} parent=11 // pred_check_branch
          %230 = sbr.rel (%p228) target = $region16
        $region15: #{tpu_custom_call.1} parent=11 // pred_region
          %s231 = smul.u32 2, %s28
          %p232 = scmp.lt.s32.totalorder %s231, 1
          %s233 = scalar_select %p232, %s231, 1
          %s234 = smul.addr %s233, 8
          %s235 = scalar_lea.vmem %s0, %s234
          %s236 = smul.u32 2, %s28
        $region16: #{tpu_custom_call.1} parent=11 // pred_fallthru
          _
        // Predicated region
        $region17: #{tpu_custom_call.1} parent=11 // pred_check
          %p237 = pneg %p83
        $region18: #{tpu_custom_call.1} parent=11 // pred_check_branch
          %239 = sbr.rel (%p237) target = $region20
        $region19: #{tpu_custom_call.1} parent=11 // pred_region
          %s240 = smul.u32 2, %s28
          %p241 = scmp.lt.s32.totalorder %s240, 1
          %s242 = scalar_select %p241, %s240, 1
          %s243 = smul.addr %s242, 8
          %s244 = scalar_lea.vmem %s1, %s243
          %s245 = smul.u32 2, %s28
        $region20: #{tpu_custom_call.1} parent=11 // pred_fallthru
          _
      $region12: #{tpu_custom_call.1} parent=5 // pred_fallthru
        _
      %p246 = scmp.lt.s32.totalorder %s19, 2
      // Predicated region
      $region21: #{tpu_custom_call.1} parent=5 // pred_check
        %p247 = pneg %p246
      $region22: #{tpu_custom_call.1} parent=5 // pred_check_branch
        %249 = sbr.rel (%p247) target = $region24
      $region23: #{tpu_custom_call.1} parent=5 // pred_region
        // Predicated region
        $region25: #{tpu_custom_call.1} parent=23 // pred_check
          %p250 = pneg %p103
        $region26: #{tpu_custom_call.1} parent=23 // pred_check_branch
          %252 = sbr.rel (%p250) target = $region28
        $region27: #{tpu_custom_call.1} parent=23 // pred_region
          %s253 = sand.u32 %s93, 1
          %s254 = scalar_lea.sflag [#allocation3], %s253
          %s255 = sand.u32 %s93, 1
          %s256 = smul.addr %s255, 64
          %s257 = scalar_lea.vmem [#allocation2], %s256
          %s259 = ssub.s32 1024, 1024
          %260 = vsyncadd %s254, %s259
          %s261 = smul.addr %s27, 8
          %s262 = smul.addr %s261, 128
          %s263 = scalar_lea.hbm %s2, %s262
          %s264 = sshll.u32 %s257, 4
          %s265 = int_to_ptr.vmem [resolvable:$true] %s264
          %270 = dma.hbm_to_vmem [thread:$0]  %s263, 1024, %s265, %s254, 128, 128, 8
        $region28: #{tpu_custom_call.1} parent=23 // pred_fallthru
          _
        // Predicated region
        $region29: #{tpu_custom_call.1} parent=23 // pred_check
          %p271 = pneg %p129
        $region30: #{tpu_custom_call.1} parent=23 // pred_check_branch
          %273 = sbr.rel (%p271) target = $region32
        $region31: #{tpu_custom_call.1} parent=23 // pred_region
          %p274 = scmp.lt.s32.totalorder %s27, 1
          %s275 = scalar_select %p274, %s27, 1
          %s276 = smul.addr %s275, 2
          %s277 = scalar_lea.vmem %s3, %s276
        $region32: #{tpu_custom_call.1} parent=23 // pred_fallthru
          _
        // Predicated region
        $region33: #{tpu_custom_call.1} parent=23 // pred_check
          %p278 = pneg %p155
        $region34: #{tpu_custom_call.1} parent=23 // pred_check_branch
          %280 = sbr.rel (%p278) target = $region36
        $region35: #{tpu_custom_call.1} parent=23 // pred_region
          %s281 = sand.u32 %s145, 1
          %s282 = scalar_lea.sflag [#allocation6], %s281
          %s283 = sand.u32 %s145, 1
          %s284 = smul.addr %s283, 128
          %s285 = scalar_lea.vmem [#allocation5], %s284
          %s287 = ssub.s32 2048, 2048
          %288 = vsyncadd %s282, %s287
          %s289 = smul.addr %s27, 16
          %s290 = smul.addr %s289, 128
          %s291 = scalar_lea.hbm %s4, %s290
          %s292 = sshll.u32 %s285, 4
          %s293 = int_to_ptr.vmem [resolvable:$true] %s292
          %298 = dma.hbm_to_vmem [thread:$0]  %s291, 2048, %s293, %s282, 128, 128, 8
        $region36: #{tpu_custom_call.1} parent=23 // pred_fallthru
          _
        // Predicated region
        $region37: #{tpu_custom_call.1} parent=23 // pred_check
          %p299 = pneg %p181
        $region38: #{tpu_custom_call.1} parent=23 // pred_check_branch
          %301 = sbr.rel (%p299) target = $region40
        $region39: #{tpu_custom_call.1} parent=23 // pred_region
          %p302 = scmp.lt.s32.totalorder %s27, 1
          %s303 = scalar_select %p302, %s27, 1
          %s304 = smul.addr %s303, 2
          %s305 = smul.addr %s304, 8
          %s306 = scalar_lea.vmem %s5, %s305
        $region40: #{tpu_custom_call.1} parent=23 // pred_fallthru
          _
      $region24: #{tpu_custom_call.1} parent=5 // pred_fallthru
        _
      %p307 = scmp.le.s32.totalorder 1, %s19
      %p308 = scmp.lt.s32.totalorder %s19, 3
      %p309 = pnand %p307, %p308
      %p310 = pneg %p309
      // Predicated region
      $region41: #{tpu_custom_call.1} parent=5 // pred_check
        _
      $region42: #{tpu_custom_call.1} parent=5 // pred_check_branch
        %312 = sbr.rel (%p309) target = $region44
      $region43: #{tpu_custom_call.1} parent=5 // pred_region
        %s313 = ssub.s32 %s19, 1
        %s314 = sand.u32 %s96, 1
        %s315 = scalar_lea.sflag [#allocation3], %s314
        %s316 = sand.u32 %s96, 1
        %s317 = smul.addr %s316, 64
        %s318 = scalar_lea.vmem [#allocation2], %s317
        // Predicated region
        $region45: #{tpu_custom_call.1} parent=43 // pred_check
          %p319 = pneg %p109
        $region46: #{tpu_custom_call.1} parent=43 // pred_check_branch
          %321 = sbr.rel (%p319) target = $region48
        $region47: #{tpu_custom_call.1} parent=43 // pred_region
          %322 = dma.done %s315, 1024
        $region48: #{tpu_custom_call.1} parent=43 // pred_fallthru
          _
        %s323 = sand.u32 %s148, 1
        %s324 = scalar_lea.sflag [#allocation6], %s323
        %s325 = sand.u32 %s148, 1
        %s326 = smul.addr %s325, 128
        %s327 = scalar_lea.vmem [#allocation5], %s326
        // Predicated region
        $region49: #{tpu_custom_call.1} parent=43 // pred_check
          %p328 = pneg %p161
        $region50: #{tpu_custom_call.1} parent=43 // pred_check_branch
          %330 = sbr.rel (%p328) target = $region52
        $region51: #{tpu_custom_call.1} parent=43 // pred_region
          %331 = dma.done %s324, 2048
        $region52: #{tpu_custom_call.1} parent=43 // pred_fallthru
          _
        %s332 = smul.u32 2, %s28
        %p333 = scmp.lt.s32.totalorder %s332, 1
        %s334 = scalar_select %p333, %s332, 1
        %s335 = smul.addr %s334, 8
        %s336 = scalar_lea.vmem %s0, %s335
        %p337 = pneg %p57
        %p338 = pneg %p54
        %s339 = smul.u32 2, %s28
        %p340 = scmp.lt.s32.totalorder %s339, 1
        %s341 = scalar_select %p340, %s339, 1
        %s342 = smul.addr %s341, 8
        %s343 = scalar_lea.vmem %s1, %s342
        %p344 = pneg %p83
        %p345 = pneg %p80
        %s346 = sand.u32 %s96, 1
        %s347 = scalar_lea.sflag [#allocation3], %s346
        %s348 = sand.u32 %s96, 1
        %s349 = smul.addr %s348, 64
        %s350 = scalar_lea.vmem [#allocation2], %s349
        %p351 = pneg %p109
        %p352 = pneg %p106
        %p353 = scmp.lt.s32.totalorder %s29, 1
        %s354 = scalar_select %p353, %s29, 1
        %s355 = smul.addr %s354, 2
        %s356 = scalar_lea.vmem %s3, %s355
        %p357 = pneg %p135
        %p358 = pneg %p132
        %s359 = sand.u32 %s148, 1
        %s360 = scalar_lea.sflag [#allocation6], %s359
        %s361 = sand.u32 %s148, 1
        %s362 = smul.addr %s361, 128
        %s363 = scalar_lea.vmem [#allocation5], %s362
        %p364 = pneg %p161
        %p365 = pneg %p158
        %p366 = scmp.lt.s32.totalorder %s29, 1
        %s367 = scalar_select %p366, %s29, 1
        %s368 = smul.addr %s367, 2
        %s369 = smul.addr %s368, 8
        %s370 = scalar_lea.vmem %s5, %s369
        %p371 = pneg %p187
        %p372 = pneg %p184
        %p373 = pneg %p213
        %p374 = pneg %p210
        %s375 = smul.u32 2, %s28
        %p376 = scmp.lt.s32.totalorder %s375, 1
        %s377 = scalar_select %p376, %s375, 1
        %s378 = smul.addr %s377, 8
        %s379 = scalar_lea.vmem %s0, %s378
        %s380 = smul.u32 2, %s28
        %s381 = smul.u32 2, %s28
        %p382 = scmp.lt.s32.totalorder %s381, 1
        %s383 = scalar_select %p382, %s381, 1
        %s384 = smul.addr %s383, 8
        %s385 = scalar_lea.vmem %s1, %s384
        %s386 = smul.u32 2, %s28
        %p387 = scmp.lt.s32.totalorder %s29, 1
        %s388 = scalar_select %p387, %s29, 1
        %s389 = smul.addr %s388, 2
        %s390 = scalar_lea.vmem %s3, %s389
        %p391 = scmp.lt.s32.totalorder %s29, 1
        %s392 = scalar_select %p391, %s29, 1
        %s393 = smul.addr %s392, 2
        %s394 = smul.addr %s393, 8
        %s395 = scalar_lea.vmem %s5, %s394
        %s396 = smul.u32 2, %s28
        %p397 = scmp.eq.s32.totalorder %s29, 0
        // Predicated region
        $region53: #{tpu_custom_call.1} parent=43 // pred_check
          %p398 = pneg %p397
        $region54: #{tpu_custom_call.1} parent=43 // pred_check_branch
          %400 = sbr.rel (%p398) target = $region56
        $region55: #{tpu_custom_call.1} parent=43 // pred_region
          %v401 = vld [vmem:[%s379] sm:$0xff]
          %v402 = vld [vmem:[%s379 + $0x8] sm:$0xff]
          %vm403 = vcmask 261120
          %404 = vst.msk [vmem:[#allocation7] sm:$0xff] %vm403, %v401
          %405 = vst.msk [vmem:[#allocation7 + $0x8] sm:$0xff] %vm403, %v402
        $region56: #{tpu_custom_call.1} parent=43 // pred_fallthru
          _
        %v406 = vld [vmem:[#allocation7] sm:$0xff]
        %v407 = vld [vmem:[#allocation7 + $0x8] sm:$0xff]
        %v408 = vld [vmem:[%s385] sm:$0xff]
        %v409 = vld [vmem:[%s385 + $0x8] sm:$0xff]
        %v410 = vld [vmem:[%s318] sm:$0xff]
        %v411 = vld [vmem:[%s318 + $0x8] sm:$0xff]
        %v412 = vld [vmem:[%s318 + $0x10] sm:$0xff]
        %v413 = vld [vmem:[%s318 + $0x18] sm:$0xff]
        %v414 = vld [vmem:[%s318 + $0x20] sm:$0xff]
        %v415 = vld [vmem:[%s318 + $0x28] sm:$0xff]
        %v416 = vld [vmem:[%s318 + $0x30] sm:$0xff]
        %v417 = vld [vmem:[%s318 + $0x38] sm:$0xff]
        %v418 = vld [vmem:[%s390] sm:$0x3]
        %v419 = vld [vmem:[%s327] sm:$0xff]
        %v420 = vld [vmem:[%s327 + $0x8] sm:$0xff]
        %v421 = vld [vmem:[%s327 + $0x10] sm:$0xff]
        %v422 = vld [vmem:[%s327 + $0x18] sm:$0xff]
        %v423 = vld [vmem:[%s327 + $0x20] sm:$0xff]
        %v424 = vld [vmem:[%s327 + $0x28] sm:$0xff]
        %v425 = vld [vmem:[%s327 + $0x30] sm:$0xff]
        %v426 = vld [vmem:[%s327 + $0x38] sm:$0xff]
        %v427 = vld [vmem:[%s327 + $0x40] sm:$0xff]
        %v428 = vld [vmem:[%s327 + $0x48] sm:$0xff]
        %v429 = vld [vmem:[%s327 + $0x50] sm:$0xff]
        %v430 = vld [vmem:[%s327 + $0x58] sm:$0xff]
        %v431 = vld [vmem:[%s327 + $0x60] sm:$0xff]
        %v432 = vld [vmem:[%s327 + $0x68] sm:$0xff]
        %v433 = vld [vmem:[%s327 + $0x70] sm:$0xff]
        %v434 = vld [vmem:[%s327 + $0x78] sm:$0xff]
        %v435 = vld [vmem:[%s395] sm:$0xff]
        %v436 = vld [vmem:[%s395 + $0x8] sm:$0x3]
        %v437 = vlaneseq
        %v438 = vshrl.u32 %v437, 7
        %v439 = vsub.s32 0, %v438
        %v440 = vrot.slane %v418, %v439
        %vm441 = vcmask 261120
        %v443 = vsel %vm441, %v406, 0
        %v446 = vsel %vm441, %v407, 0
        %448 = vmatprep.subr.mxu0 0.0
        %449 = vmatpush1.msra.mxu0 %v410
        %450 = vmatprep.subr.mxu0 0.0
        %451 = vmatpush1.msra.mxu0 %v411
        %452 = vmatprep.subr.mxu0 0.0
        %453 = vmatpush1.msra.mxu0 %v412
        %454 = vmatprep.subr.mxu0 0.0
        %455 = vmatpush1.msra.mxu0 %v413
        %456 = vmatprep.subr.mxu0 0.0
        %457 = vmatpush1.msra.mxu0 0.0
        %458 = vmatprep.subr.mxu0 0.0
        %459 = vmatpush1.msra.mxu0 0.0
        %460 = vmatprep.subr.mxu0 0.0
        %461 = vmatpush1.msra.mxu0 0.0
        %462 = vmatprep.subr.mxu0 0.0
        %463 = vmatpush1.msra.mxu0 0.0
        %464 = vmatprep.subr.mxu0 0.0
        %465 = vmatpush1.msra.mxu0 0.0
        %466 = vmatprep.subr.mxu0 0.0
        %467 = vmatpush1.msra.mxu0 0.0
        %468 = vmatprep.subr.mxu0 0.0
        %469 = vmatpush1.msra.mxu0 0.0
        %470 = vmatprep.subr.mxu0 0.0
        %471 = vmatpush1.msra.mxu0 0.0
        %472 = vmatprep.subr.mxu0 0.0
        %473 = vmatpush1.msra.mxu0 0.0
        %474 = vmatprep.subr.mxu0 0.0
        %475 = vmatpush1.msra.mxu0 0.0
        %476 = vmatprep.subr.mxu0 0.0
        %477 = vmatpush1.msra.mxu0 0.0
        %478 = vmatprep.subr.mxu0 0.0
        %479 = vmatpush1.msra.mxu0 0.0
        %480 = vmatprep.subr.mxu0 0.0
        %481 = vmatpush1.msra.mxu0 0.0
        %482 = vmatprep.subr.mxu0 0.0
        %483 = vmatpush1.msra.mxu0 0.0
        %484 = vmatprep.subr.mxu0 0.0
        %485 = vmatpush1.msra.mxu0 0.0
        %486 = vmatprep.subr.mxu0 0.0
        %487 = vmatpush1.msra.mxu0 0.0
        %488 = vmatprep.subr.mxu0 0.0
        %489 = vmatpush1.msra.mxu0 0.0
        %490 = vmatprep.subr.mxu0 0.0
        %491 = vmatpush1.msra.mxu0 0.0
        %492 = vmatprep.subr.mxu0 0.0
        %493 = vmatpush1.msra.mxu0 0.0
        %494 = vmatprep.subr.mxu0 0.0
        %495 = vmatpush1.msra.mxu0 0.0
        %496 = vmatprep.subr.mxu0 0.0
        %497 = vmatpush1.msra.mxu0 0.0
        %498 = vmatprep.subr.mxu0 0.0
        %499 = vmatpush1.msra.mxu0 0.0
        %500 = vmatprep.subr.mxu0 0.0
        %501 = vmatpush1.msra.mxu0 0.0
        %502 = vmatprep.subr.mxu0 0.0
        %503 = vmatpush1.msra.mxu0 0.0
        %504 = vmatprep.subr.mxu0 0.0
        %505 = vmatpush1.msra.mxu0 0.0
        %506 = vmatprep.subr.mxu0 0.0
        %507 = vmatpush1.msra.mxu0 0.0
        %508 = vmatprep.subr.mxu0 0.0
        %509 = vmatpush1.msra.mxu0 0.0
        %510 = vmatprep.subr.mxu0 0.0
        %511 = vmatpush1.msra.mxu0 0.0
        %512 = vmatprep.mubr.f32.mxu0 0.0
        %513 = vmatmul.mubr.f32.gmra.mrb[0].mxu0 %v443
        %v514 = vpop.f32.mrb[0].mxu0
        %v515 = vadd.f32 %v440, %v514
        %v516 = vpop.f32.mrb[0].mxu0
        %517 = vmatprep.mubr.f32.mxu0 0.0
        %518 = vmatmul.mubr.f32.gmra.mrb[0].mxu0 %v446
        %v519 = vpop.f32.mrb[0].mxu0
        %v520 = vadd.f32 %v440, %v519
        %v521 = vpop.f32.mrb[0].mxu0
        %522 = vdwg.mxu0
        %525 = vrot.lane.b32.xlu0 %v515, 120
        %v526 = vpop.permute.xlu0 %525
        %527 = vrot.lane.b32.xlu0 %v520, 120
        %v528 = vpop.permute.xlu0 %527
        %529 = vrot.lane.b32.xlu0 %v515, 112
        %v530 = vpop.permute.xlu0 %529
        %531 = vrot.lane.b32.xlu0 %v520, 112
        %v532 = vpop.permute.xlu0 %531
        %533 = vrot.lane.b32.xlu0 %v515, 104
        %v534 = vpop.permute.xlu0 %533
        %535 = vrot.lane.b32.xlu0 %v520, 104
        %v536 = vpop.permute.xlu0 %535
        %537 = vrot.lane.b32.xlu0 %v515, 96
        %v538 = vpop.permute.xlu0 %537
        %vm539 = vcmask 64512
        %v540 = vsel %vm539, %v515, 0
        %v542 = vsel %vm539, %v538, 0
        %544 = vmatprep.subr.mxu0 0.0
        %545 = vmatpush1.xpose.msra.mxu0 %v542
        %546 = vmatprep.subr.mxu0 0.0
        %547 = vmatpush1.xpose.msra.mxu0 0.0
        %548 = vmatprep.subr.mxu0 0.0
        %549 = vmatpush1.xpose.msra.mxu0 0.0
        %550 = vmatprep.subr.mxu0 0.0
        %551 = vmatpush1.xpose.msra.mxu0 0.0
        %552 = vmatprep.subr.mxu0 0.0
        %553 = vmatpush1.xpose.msra.mxu0 0.0
        %554 = vmatprep.subr.mxu0 0.0
        %555 = vmatpush1.xpose.msra.mxu0 0.0
        %556 = vmatprep.subr.mxu0 0.0
        %557 = vmatpush1.xpose.msra.mxu0 0.0
        %558 = vmatprep.subr.mxu0 0.0
        %559 = vmatpush1.xpose.msra.mxu0 0.0
        %560 = vmatprep.subr.mxu0 0.0
        %561 = vmatpush1.xpose.msra.mxu0 0.0
        %562 = vmatprep.subr.mxu0 0.0
        %563 = vmatpush1.xpose.msra.mxu0 0.0
        %564 = vmatprep.subr.mxu0 0.0
        %565 = vmatpush1.xpose.msra.mxu0 0.0
        %566 = vmatprep.subr.mxu0 0.0
        %567 = vmatpush1.xpose.msra.mxu0 0.0
        %568 = vmatprep.subr.mxu0 0.0
        %569 = vmatpush1.xpose.msra.mxu0 0.0
        %570 = vmatprep.subr.mxu0 0.0
        %571 = vmatpush1.xpose.msra.mxu0 0.0
        %572 = vmatprep.subr.mxu0 0.0
        %573 = vmatpush1.xpose.msra.mxu0 0.0
        %574 = vmatprep.subr.mxu0 0.0
        %575 = vmatpush1.xpose.msra.mxu0 0.0
        %576 = vmatprep.subr.mxu0 0.0
        %577 = vmatpush1.xpose.msra.mxu0 0.0
        %578 = vmatprep.subr.mxu0 0.0
        %579 = vmatpush1.xpose.msra.mxu0 0.0
        %580 = vmatprep.subr.mxu0 0.0
        %581 = vmatpush1.xpose.msra.mxu0 0.0
        %582 = vmatprep.subr.mxu0 0.0
        %583 = vmatpush1.xpose.msra.mxu0 0.0
        %584 = vmatprep.subr.mxu0 0.0
        %585 = vmatpush1.xpose.msra.mxu0 0.0
        %586 = vmatprep.subr.mxu0 0.0
        %587 = vmatpush1.xpose.msra.mxu0 0.0
        %588 = vmatprep.subr.mxu0 0.0
        %589 = vmatpush1.xpose.msra.mxu0 0.0
        %590 = vmatprep.subr.mxu0 0.0
        %591 = vmatpush1.xpose.msra.mxu0 0.0
        %592 = vmatprep.subr.mxu0 0.0
        %593 = vmatpush1.xpose.msra.mxu0 0.0
        %594 = vmatprep.subr.mxu0 0.0
        %595 = vmatpush1.xpose.msra.mxu0 0.0
        %596 = vmatprep.subr.mxu0 0.0
        %597 = vmatpush1.xpose.msra.mxu0 0.0
        %598 = vmatprep.subr.mxu0 0.0
        %599 = vmatpush1.xpose.msra.mxu0 0.0
        %600 = vmatprep.subr.mxu0 0.0
        %601 = vmatpush1.xpose.msra.mxu0 0.0
        %602 = vmatprep.subr.mxu0 0.0
        %603 = vmatpush1.xpose.msra.mxu0 0.0
        %604 = vmatprep.subr.mxu0 0.0
        %605 = vmatpush1.xpose.msra.mxu0 0.0
        %606 = vmatprep.subr.mxu0 0.0
        %607 = vmatpush1.xpose.msra.mxu0 0.0
        %608 = vmatprep.mubr.f32.mxu0 0.0
        %609 = vmatmul.mubr.f32.gmra.mrb[0].mxu0 %v540
        %v610 = vpop.f32.mrb[0].mxu0
        %v611 = vadd.f32 0.0, %v610
        %v612 = vpop.f32.mrb[0].mxu0
        %613 = vdwg.mxu0
        %614 = vrot.lane.b32.xlu0 %v520, 96
        %v615 = vpop.permute.xlu0 %614
        %v616 = vsel %vm539, %v520, 0
        %v618 = vsel %vm539, %v615, 0
        %620 = vmatprep.subr.mxu0 0.0
        %621 = vmatpush1.xpose.msra.mxu0 %v618
        %622 = vmatprep.subr.mxu0 0.0
        %623 = vmatpush1.xpose.msra.mxu0 0.0
        %624 = vmatprep.subr.mxu0 0.0
        %625 = vmatpush1.xpose.msra.mxu0 0.0
        %626 = vmatprep.subr.mxu0 0.0
        %627 = vmatpush1.xpose.msra.mxu0 0.0
        %628 = vmatprep.subr.mxu0 0.0
        %629 = vmatpush1.xpose.msra.mxu0 0.0
        %630 = vmatprep.subr.mxu0 0.0
        %631 = vmatpush1.xpose.msra.mxu0 0.0
        %632 = vmatprep.subr.mxu0 0.0
        %633 = vmatpush1.xpose.msra.mxu0 0.0
        %634 = vmatprep.subr.mxu0 0.0
        %635 = vmatpush1.xpose.msra.mxu0 0.0
        %636 = vmatprep.subr.mxu0 0.0
        %637 = vmatpush1.xpose.msra.mxu0 0.0
        %638 = vmatprep.subr.mxu0 0.0
        %639 = vmatpush1.xpose.msra.mxu0 0.0
        %640 = vmatprep.subr.mxu0 0.0
        %641 = vmatpush1.xpose.msra.mxu0 0.0
        %642 = vmatprep.subr.mxu0 0.0
        %643 = vmatpush1.xpose.msra.mxu0 0.0
        %644 = vmatprep.subr.mxu0 0.0
        %645 = vmatpush1.xpose.msra.mxu0 0.0
        %646 = vmatprep.subr.mxu0 0.0
        %647 = vmatpush1.xpose.msra.mxu0 0.0
        %648 = vmatprep.subr.mxu0 0.0
        %649 = vmatpush1.xpose.msra.mxu0 0.0
        %650 = vmatprep.subr.mxu0 0.0
        %651 = vmatpush1.xpose.msra.mxu0 0.0
        %652 = vmatprep.subr.mxu0 0.0
        %653 = vmatpush1.xpose.msra.mxu0 0.0
        %654 = vmatprep.subr.mxu0 0.0
        %655 = vmatpush1.xpose.msra.mxu0 0.0
        %656 = vmatprep.subr.mxu0 0.0
        %657 = vmatpush1.xpose.msra.mxu0 0.0
        %658 = vmatprep.subr.mxu0 0.0
        %659 = vmatpush1.xpose.msra.mxu0 0.0
        %660 = vmatprep.subr.mxu0 0.0
        %661 = vmatpush1.xpose.msra.mxu0 0.0
        %662 = vmatprep.subr.mxu0 0.0
        %663 = vmatpush1.xpose.msra.mxu0 0.0
        %664 = vmatprep.subr.mxu0 0.0
        %665 = vmatpush1.xpose.msra.mxu0 0.0
        %666 = vmatprep.subr.mxu0 0.0
        %667 = vmatpush1.xpose.msra.mxu0 0.0
        %668 = vmatprep.subr.mxu0 0.0
        %669 = vmatpush1.xpose.msra.mxu0 0.0
        %670 = vmatprep.subr.mxu0 0.0
        %671 = vmatpush1.xpose.msra.mxu0 0.0
        %672 = vmatprep.subr.mxu0 0.0
        %673 = vmatpush1.xpose.msra.mxu0 0.0
        %674 = vmatprep.subr.mxu0 0.0
        %675 = vmatpush1.xpose.msra.mxu0 0.0
        %676 = vmatprep.subr.mxu0 0.0
        %677 = vmatpush1.xpose.msra.mxu0 0.0
        %678 = vmatprep.subr.mxu0 0.0
        %679 = vmatpush1.xpose.msra.mxu0 0.0
        %680 = vmatprep.subr.mxu0 0.0
        %681 = vmatpush1.xpose.msra.mxu0 0.0
        %682 = vmatprep.subr.mxu0 0.0
        %683 = vmatpush1.xpose.msra.mxu0 0.0
        %684 = vmatprep.mubr.f32.mxu0 0.0
        %685 = vmatmul.mubr.f32.gmra.mrb[0].mxu0 %v616
        %v686 = vpop.f32.mrb[0].mxu0
        %v687 = vadd.f32 0.0, %v686
        %v688 = vpop.f32.mrb[0].mxu0
        %689 = vdwg.mxu0
        %690 = vrot.lane.b32.xlu0 %v526, 96
        %v691 = vpop.permute.xlu0 %690
        %v692 = vsel %vm539, %v526, 0
        %v694 = vsel %vm539, %v691, 0
        %696 = vmatprep.subr.mxu0 0.0
        %697 = vmatpush1.xpose.msra.mxu0 %v694
        %698 = vmatprep.subr.mxu0 0.0
        %699 = vmatpush1.xpose.msra.mxu0 0.0
        %700 = vmatprep.subr.mxu0 0.0
        %701 = vmatpush1.xpose.msra.mxu0 0.0
        %702 = vmatprep.subr.mxu0 0.0
        %703 = vmatpush1.xpose.msra.mxu0 0.0
        %704 = vmatprep.subr.mxu0 0.0
        %705 = vmatpush1.xpose.msra.mxu0 0.0
        %706 = vmatprep.subr.mxu0 0.0
        %707 = vmatpush1.xpose.msra.mxu0 0.0
        %708 = vmatprep.subr.mxu0 0.0
        %709 = vmatpush1.xpose.msra.mxu0 0.0
        %710 = vmatprep.subr.mxu0 0.0
        %711 = vmatpush1.xpose.msra.mxu0 0.0
        %712 = vmatprep.subr.mxu0 0.0
        %713 = vmatpush1.xpose.msra.mxu0 0.0
        %714 = vmatprep.subr.mxu0 0.0
        %715 = vmatpush1.xpose.msra.mxu0 0.0
        %716 = vmatprep.subr.mxu0 0.0
        %717 = vmatpush1.xpose.msra.mxu0 0.0
        %718 = vmatprep.subr.mxu0 0.0
        %719 = vmatpush1.xpose.msra.mxu0 0.0
        %720 = vmatprep.subr.mxu0 0.0
        %721 = vmatpush1.xpose.msra.mxu0 0.0
        %722 = vmatprep.subr.mxu0 0.0
        %723 = vmatpush1.xpose.msra.mxu0 0.0
        %724 = vmatprep.subr.mxu0 0.0
        %725 = vmatpush1.xpose.msra.mxu0 0.0
        %726 = vmatprep.subr.mxu0 0.0
        %727 = vmatpush1.xpose.msra.mxu0 0.0
        %728 = vmatprep.subr.mxu0 0.0
        %729 = vmatpush1.xpose.msra.mxu0 0.0
        %730 = vmatprep.subr.mxu0 0.0
        %731 = vmatpush1.xpose.msra.mxu0 0.0
        %732 = vmatprep.subr.mxu0 0.0
        %733 = vmatpush1.xpose.msra.mxu0 0.0
        %734 = vmatprep.subr.mxu0 0.0
        %735 = vmatpush1.xpose.msra.mxu0 0.0
        %736 = vmatprep.subr.mxu0 0.0
        %737 = vmatpush1.xpose.msra.mxu0 0.0
        %738 = vmatprep.subr.mxu0 0.0
        %739 = vmatpush1.xpose.msra.mxu0 0.0
        %740 = vmatprep.subr.mxu0 0.0
        %741 = vmatpush1.xpose.msra.mxu0 0.0
        %742 = vmatprep.subr.mxu0 0.0
        %743 = vmatpush1.xpose.msra.mxu0 0.0
        %744 = vmatprep.subr.mxu0 0.0
        %745 = vmatpush1.xpose.msra.mxu0 0.0
        %746 = vmatprep.subr.mxu0 0.0
        %747 = vmatpush1.xpose.msra.mxu0 0.0
        %748 = vmatprep.subr.mxu0 0.0
        %749 = vmatpush1.xpose.msra.mxu0 0.0
        %750 = vmatprep.subr.mxu0 0.0
        %751 = vmatpush1.xpose.msra.mxu0 0.0
        %752 = vmatprep.subr.mxu0 0.0
        %753 = vmatpush1.xpose.msra.mxu0 0.0
        %754 = vmatprep.subr.mxu0 0.0
        %755 = vmatpush1.xpose.msra.mxu0 0.0
        %756 = vmatprep.subr.mxu0 0.0
        %757 = vmatpush1.xpose.msra.mxu0 0.0
        %758 = vmatprep.subr.mxu0 0.0
        %759 = vmatpush1.xpose.msra.mxu0 0.0
        %760 = vmatprep.mubr.f32.mxu0 0.0
        %761 = vmatmul.mubr.f32.gmra.mrb[0].mxu0 %v692
        %v762 = vpop.f32.mrb[0].mxu0
        %v763 = vadd.f32 0.0, %v762
        %v764 = vpop.f32.mrb[0].mxu0
        %765 = vdwg.mxu0
        %766 = vrot.lane.b32.xlu0 %v528, 96
        %v767 = vpop.permute.xlu0 %766
        %v768 = vsel %vm539, %v528, 0
        %v770 = vsel %vm539, %v767, 0
        %772 = vmatprep.subr.mxu0 0.0
        %773 = vmatpush1.xpose.msra.mxu0 %v770
        %774 = vmatprep.subr.mxu0 0.0
        %775 = vmatpush1.xpose.msra.mxu0 0.0
        %776 = vmatprep.subr.mxu0 0.0
        %777 = vmatpush1.xpose.msra.mxu0 0.0
        %778 = vmatprep.subr.mxu0 0.0
        %779 = vmatpush1.xpose.msra.mxu0 0.0
        %780 = vmatprep.subr.mxu0 0.0
        %781 = vmatpush1.xpose.msra.mxu0 0.0
        %782 = vmatprep.subr.mxu0 0.0
        %783 = vmatpush1.xpose.msra.mxu0 0.0
        %784 = vmatprep.subr.mxu0 0.0
        %785 = vmatpush1.xpose.msra.mxu0 0.0
        %786 = vmatprep.subr.mxu0 0.0
        %787 = vmatpush1.xpose.msra.mxu0 0.0
        %788 = vmatprep.subr.mxu0 0.0
        %789 = vmatpush1.xpose.msra.mxu0 0.0
        %790 = vmatprep.subr.mxu0 0.0
        %791 = vmatpush1.xpose.msra.mxu0 0.0
        %792 = vmatprep.subr.mxu0 0.0
        %793 = vmatpush1.xpose.msra.mxu0 0.0
        %794 = vmatprep.subr.mxu0 0.0
        %795 = vmatpush1.xpose.msra.mxu0 0.0
        %796 = vmatprep.subr.mxu0 0.0
        %797 = vmatpush1.xpose.msra.mxu0 0.0
        %798 = vmatprep.subr.mxu0 0.0
        %799 = vmatpush1.xpose.msra.mxu0 0.0
        %800 = vmatprep.subr.mxu0 0.0
        %801 = vmatpush1.xpose.msra.mxu0 0.0
        %802 = vmatprep.subr.mxu0 0.0
        %803 = vmatpush1.xpose.msra.mxu0 0.0
        %804 = vmatprep.subr.mxu0 0.0
        %805 = vmatpush1.xpose.msra.mxu0 0.0
        %806 = vmatprep.subr.mxu0 0.0
        %807 = vmatpush1.xpose.msra.mxu0 0.0
        %808 = vmatprep.subr.mxu0 0.0
        %809 = vmatpush1.xpose.msra.mxu0 0.0
        %810 = vmatprep.subr.mxu0 0.0
        %811 = vmatpush1.xpose.msra.mxu0 0.0
        %812 = vmatprep.subr.mxu0 0.0
        %813 = vmatpush1.xpose.msra.mxu0 0.0
        %814 = vmatprep.subr.mxu0 0.0
        %815 = vmatpush1.xpose.msra.mxu0 0.0
        %816 = vmatprep.subr.mxu0 0.0
        %817 = vmatpush1.xpose.msra.mxu0 0.0
        %818 = vmatprep.subr.mxu0 0.0
        %819 = vmatpush1.xpose.msra.mxu0 0.0
        %820 = vmatprep.subr.mxu0 0.0
        %821 = vmatpush1.xpose.msra.mxu0 0.0
        %822 = vmatprep.subr.mxu0 0.0
        %823 = vmatpush1.xpose.msra.mxu0 0.0
        %824 = vmatprep.subr.mxu0 0.0
        %825 = vmatpush1.xpose.msra.mxu0 0.0
        %826 = vmatprep.subr.mxu0 0.0
        %827 = vmatpush1.xpose.msra.mxu0 0.0
        %828 = vmatprep.subr.mxu0 0.0
        %829 = vmatpush1.xpose.msra.mxu0 0.0
        %830 = vmatprep.subr.mxu0 0.0
        %831 = vmatpush1.xpose.msra.mxu0 0.0
        %832 = vmatprep.subr.mxu0 0.0
        %833 = vmatpush1.xpose.msra.mxu0 0.0
        %834 = vmatprep.subr.mxu0 0.0
        %835 = vmatpush1.xpose.msra.mxu0 0.0
        %836 = vmatprep.mubr.f32.mxu0 0.0
        %837 = vmatmul.mubr.f32.gmra.mrb[0].mxu0 %v768
        %v838 = vpop.f32.mrb[0].mxu0
        %v839 = vadd.f32 0.0, %v838
        %v840 = vpop.f32.mrb[0].mxu0
        %841 = vdwg.mxu0
        %842 = vrot.lane.b32.xlu0 %v530, 96
        %v843 = vpop.permute.xlu0 %842
        %v844 = vsel %vm539, %v530, 0
        %v846 = vsel %vm539, %v843, 0
        %848 = vmatprep.subr.mxu0 0.0
        %849 = vmatpush1.xpose.msra.mxu0 %v846
        %850 = vmatprep.subr.mxu0 0.0
        %851 = vmatpush1.xpose.msra.mxu0 0.0
        %852 = vmatprep.subr.mxu0 0.0
        %853 = vmatpush1.xpose.msra.mxu0 0.0
        %854 = vmatprep.subr.mxu0 0.0
        %855 = vmatpush1.xpose.msra.mxu0 0.0
        %856 = vmatprep.subr.mxu0 0.0
        %857 = vmatpush1.xpose.msra.mxu0 0.0
        %858 = vmatprep.subr.mxu0 0.0
        %859 = vmatpush1.xpose.msra.mxu0 0.0
        %860 = vmatprep.subr.mxu0 0.0
        %861 = vmatpush1.xpose.msra.mxu0 0.0
        %862 = vmatprep.subr.mxu0 0.0
        %863 = vmatpush1.xpose.msra.mxu0 0.0
        %864 = vmatprep.subr.mxu0 0.0
        %865 = vmatpush1.xpose.msra.mxu0 0.0
        %866 = vmatprep.subr.mxu0 0.0
        %867 = vmatpush1.xpose.msra.mxu0 0.0
        %868 = vmatprep.subr.mxu0 0.0
        %869 = vmatpush1.xpose.msra.mxu0 0.0
        %870 = vmatprep.subr.mxu0 0.0
        %871 = vmatpush1.xpose.msra.mxu0 0.0
        %872 = vmatprep.subr.mxu0 0.0
        %873 = vmatpush1.xpose.msra.mxu0 0.0
        %874 = vmatprep.subr.mxu0 0.0
        %875 = vmatpush1.xpose.msra.mxu0 0.0
        %876 = vmatprep.subr.mxu0 0.0
        %877 = vmatpush1.xpose.msra.mxu0 0.0
        %878 = vmatprep.subr.mxu0 0.0
        %879 = vmatpush1.xpose.msra.mxu0 0.0
        %880 = vmatprep.subr.mxu0 0.0
        %881 = vmatpush1.xpose.msra.mxu0 0.0
        %882 = vmatprep.subr.mxu0 0.0
        %883 = vmatpush1.xpose.msra.mxu0 0.0
        %884 = vmatprep.subr.mxu0 0.0
        %885 = vmatpush1.xpose.msra.mxu0 0.0
        %886 = vmatprep.subr.mxu0 0.0
        %887 = vmatpush1.xpose.msra.mxu0 0.0
        %888 = vmatprep.subr.mxu0 0.0
        %889 = vmatpush1.xpose.msra.mxu0 0.0
        %890 = vmatprep.subr.mxu0 0.0
        %891 = vmatpush1.xpose.msra.mxu0 0.0
        %892 = vmatprep.subr.mxu0 0.0
        %893 = vmatpush1.xpose.msra.mxu0 0.0
        %894 = vmatprep.subr.mxu0 0.0
        %895 = vmatpush1.xpose.msra.mxu0 0.0
        %896 = vmatprep.subr.mxu0 0.0
        %897 = vmatpush1.xpose.msra.mxu0 0.0
        %898 = vmatprep.subr.mxu0 0.0
        %899 = vmatpush1.xpose.msra.mxu0 0.0
        %900 = vmatprep.subr.mxu0 0.0
        %901 = vmatpush1.xpose.msra.mxu0 0.0
        %902 = vmatprep.subr.mxu0 0.0
        %903 = vmatpush1.xpose.msra.mxu0 0.0
        %904 = vmatprep.subr.mxu0 0.0
        %905 = vmatpush1.xpose.msra.mxu0 0.0
        %906 = vmatprep.subr.mxu0 0.0
        %907 = vmatpush1.xpose.msra.mxu0 0.0
        %908 = vmatprep.subr.mxu0 0.0
        %909 = vmatpush1.xpose.msra.mxu0 0.0
        %910 = vmatprep.subr.mxu0 0.0
        %911 = vmatpush1.xpose.msra.mxu0 0.0
        %912 = vmatprep.mubr.f32.mxu0 0.0
        %913 = vmatmul.mubr.f32.gmra.mrb[0].mxu0 %v844
        %v914 = vpop.f32.mrb[0].mxu0
        %v915 = vadd.f32 0.0, %v914
        %v916 = vpop.f32.mrb[0].mxu0
        %917 = vdwg.mxu0
        %918 = vrot.lane.b32.xlu0 %v532, 96
        %v919 = vpop.permute.xlu0 %918
        %v920 = vsel %vm539, %v532, 0
        %v922 = vsel %vm539, %v919, 0
        %924 = vmatprep.subr.mxu0 0.0
        %925 = vmatpush1.xpose.msra.mxu0 %v922
        %926 = vmatprep.subr.mxu0 0.0
        %927 = vmatpush1.xpose.msra.mxu0 0.0
        %928 = vmatprep.subr.mxu0 0.0
        %929 = vmatpush1.xpose.msra.mxu0 0.0
        %930 = vmatprep.subr.mxu0 0.0
        %931 = vmatpush1.xpose.msra.mxu0 0.0
        %932 = vmatprep.subr.mxu0 0.0
        %933 = vmatpush1.xpose.msra.mxu0 0.0
        %934 = vmatprep.subr.mxu0 0.0
        %935 = vmatpush1.xpose.msra.mxu0 0.0
        %936 = vmatprep.subr.mxu0 0.0
        %937 = vmatpush1.xpose.msra.mxu0 0.0
        %938 = vmatprep.subr.mxu0 0.0
        %939 = vmatpush1.xpose.msra.mxu0 0.0
        %940 = vmatprep.subr.mxu0 0.0
        %941 = vmatpush1.xpose.msra.mxu0 0.0
        %942 = vmatprep.subr.mxu0 0.0
        %943 = vmatpush1.xpose.msra.mxu0 0.0
        %944 = vmatprep.subr.mxu0 0.0
        %945 = vmatpush1.xpose.msra.mxu0 0.0
        %946 = vmatprep.subr.mxu0 0.0
        %947 = vmatpush1.xpose.msra.mxu0 0.0
        %948 = vmatprep.subr.mxu0 0.0
        %949 = vmatpush1.xpose.msra.mxu0 0.0
        %950 = vmatprep.subr.mxu0 0.0
        %951 = vmatpush1.xpose.msra.mxu0 0.0
        %952 = vmatprep.subr.mxu0 0.0
        %953 = vmatpush1.xpose.msra.mxu0 0.0
        %954 = vmatprep.subr.mxu0 0.0
        %955 = vmatpush1.xpose.msra.mxu0 0.0
        %956 = vmatprep.subr.mxu0 0.0
        %957 = vmatpush1.xpose.msra.mxu0 0.0
        %958 = vmatprep.subr.mxu0 0.0
        %959 = vmatpush1.xpose.msra.mxu0 0.0
        %960 = vmatprep.subr.mxu0 0.0
        %961 = vmatpush1.xpose.msra.mxu0 0.0
        %962 = vmatprep.subr.mxu0 0.0
        %963 = vmatpush1.xpose.msra.mxu0 0.0
        %964 = vmatprep.subr.mxu0 0.0
        %965 = vmatpush1.xpose.msra.mxu0 0.0
        %966 = vmatprep.subr.mxu0 0.0
        %967 = vmatpush1.xpose.msra.mxu0 0.0
        %968 = vmatprep.subr.mxu0 0.0
        %969 = vmatpush1.xpose.msra.mxu0 0.0
        %970 = vmatprep.subr.mxu0 0.0
        %971 = vmatpush1.xpose.msra.mxu0 0.0
        %972 = vmatprep.subr.mxu0 0.0
        %973 = vmatpush1.xpose.msra.mxu0 0.0
        %974 = vmatprep.subr.mxu0 0.0
        %975 = vmatpush1.xpose.msra.mxu0 0.0
        %976 = vmatprep.subr.mxu0 0.0
        %977 = vmatpush1.xpose.msra.mxu0 0.0
        %978 = vmatprep.subr.mxu0 0.0
        %979 = vmatpush1.xpose.msra.mxu0 0.0
        %980 = vmatprep.subr.mxu0 0.0
        %981 = vmatpush1.xpose.msra.mxu0 0.0
        %982 = vmatprep.subr.mxu0 0.0
        %983 = vmatpush1.xpose.msra.mxu0 0.0
        %984 = vmatprep.subr.mxu0 0.0
        %985 = vmatpush1.xpose.msra.mxu0 0.0
        %986 = vmatprep.subr.mxu0 0.0
        %987 = vmatpush1.xpose.msra.mxu0 0.0
        %988 = vmatprep.mubr.f32.mxu0 0.0
        %989 = vmatmul.mubr.f32.gmra.mrb[0].mxu0 %v920
        %v990 = vpop.f32.mrb[0].mxu0
        %v991 = vadd.f32 0.0, %v990
        %v992 = vpop.f32.mrb[0].mxu0
        %993 = vdwg.mxu0
        %994 = vrot.lane.b32.xlu0 %v534, 96
        %v995 = vpop.permute.xlu0 %994
        %v996 = vsel %vm539, %v534, 0
        %v998 = vsel %vm539, %v995, 0
        %1000 = vmatprep.subr.mxu0 0.0
        %1001 = vmatpush1.xpose.msra.mxu0 %v998
        %1002 = vmatprep.subr.mxu0 0.0
        %1003 = vmatpush1.xpose.msra.mxu0 0.0
        %1004 = vmatprep.subr.mxu0 0.0
        %1005 = vmatpush1.xpose.msra.mxu0 0.0
        %1006 = vmatprep.subr.mxu0 0.0
        %1007 = vmatpush1.xpose.msra.mxu0 0.0
        %1008 = vmatprep.subr.mxu0 0.0
        %1009 = vmatpush1.xpose.msra.mxu0 0.0
        %1010 = vmatprep.subr.mxu0 0.0
        %1011 = vmatpush1.xpose.msra.mxu0 0.0
        %1012 = vmatprep.subr.mxu0 0.0
        %1013 = vmatpush1.xpose.msra.mxu0 0.0
        %1014 = vmatprep.subr.mxu0 0.0
        %1015 = vmatpush1.xpose.msra.mxu0 0.0
        %1016 = vmatprep.subr.mxu0 0.0
        %1017 = vmatpush1.xpose.msra.mxu0 0.0
        %1018 = vmatprep.subr.mxu0 0.0
        %1019 = vmatpush1.xpose.msra.mxu0 0.0
        %1020 = vmatprep.subr.mxu0 0.0
        %1021 = vmatpush1.xpose.msra.mxu0 0.0
        %1022 = vmatprep.subr.mxu0 0.0
        %1023 = vmatpush1.xpose.msra.mxu0 0.0
        %1024 = vmatprep.subr.mxu0 0.0
        %1025 = vmatpush1.xpose.msra.mxu0 0.0
        %1026 = vmatprep.subr.mxu0 0.0
        %1027 = vmatpush1.xpose.msra.mxu0 0.0
        %1028 = vmatprep.subr.mxu0 0.0
        %1029 = vmatpush1.xpose.msra.mxu0 0.0
        %1030 = vmatprep.subr.mxu0 0.0
        %1031 = vmatpush1.xpose.msra.mxu0 0.0
        %1032 = vmatprep.subr.mxu0 0.0
        %1033 = vmatpush1.xpose.msra.mxu0 0.0
        %1034 = vmatprep.subr.mxu0 0.0
        %1035 = vmatpush1.xpose.msra.mxu0 0.0
        %1036 = vmatprep.subr.mxu0 0.0
        %1037 = vmatpush1.xpose.msra.mxu0 0.0
        %1038 = vmatprep.subr.mxu0 0.0
        %1039 = vmatpush1.xpose.msra.mxu0 0.0
        %1040 = vmatprep.subr.mxu0 0.0
        %1041 = vmatpush1.xpose.msra.mxu0 0.0
        %1042 = vmatprep.subr.mxu0 0.0
        %1043 = vmatpush1.xpose.msra.mxu0 0.0
        %1044 = vmatprep.subr.mxu0 0.0
        %1045 = vmatpush1.xpose.msra.mxu0 0.0
        %1046 = vmatprep.subr.mxu0 0.0
        %1047 = vmatpush1.xpose.msra.mxu0 0.0
        %1048 = vmatprep.subr.mxu0 0.0
        %1049 = vmatpush1.xpose.msra.mxu0 0.0
        %1050 = vmatprep.subr.mxu0 0.0
        %1051 = vmatpush1.xpose.msra.mxu0 0.0
        %1052 = vmatprep.subr.mxu0 0.0
        %1053 = vmatpush1.xpose.msra.mxu0 0.0
        %1054 = vmatprep.subr.mxu0 0.0
        %1055 = vmatpush1.xpose.msra.mxu0 0.0
        %1056 = vmatprep.subr.mxu0 0.0
        %1057 = vmatpush1.xpose.msra.mxu0 0.0
        %1058 = vmatprep.subr.mxu0 0.0
        %1059 = vmatpush1.xpose.msra.mxu0 0.0
        %1060 = vmatprep.subr.mxu0 0.0
        %1061 = vmatpush1.xpose.msra.mxu0 0.0
        %1062 = vmatprep.subr.mxu0 0.0
        %1063 = vmatpush1.xpose.msra.mxu0 0.0
        %1064 = vmatprep.mubr.f32.mxu0 0.0
        %1065 = vmatmul.mubr.f32.gmra.mrb[0].mxu0 %v996
        %v1066 = vpop.f32.mrb[0].mxu0
        %v1067 = vadd.f32 0.0, %v1066
        %v1068 = vpop.f32.mrb[0].mxu0
        %1069 = vdwg.mxu0
        %1070 = vrot.lane.b32.xlu0 %v536, 96
        %v1071 = vpop.permute.xlu0 %1070
        %v1072 = vsel %vm539, %v536, 0
        %v1074 = vsel %vm539, %v1071, 0
        %1076 = vmatprep.subr.mxu0 0.0
        %1077 = vmatpush1.xpose.msra.mxu0 %v1074
        %1078 = vmatprep.subr.mxu0 0.0
        %1079 = vmatpush1.xpose.msra.mxu0 0.0
        %1080 = vmatprep.subr.mxu0 0.0
        %1081 = vmatpush1.xpose.msra.mxu0 0.0
        %1082 = vmatprep.subr.mxu0 0.0
        %1083 = vmatpush1.xpose.msra.mxu0 0.0
        %1084 = vmatprep.subr.mxu0 0.0
        %1085 = vmatpush1.xpose.msra.mxu0 0.0
        %1086 = vmatprep.subr.mxu0 0.0
        %1087 = vmatpush1.xpose.msra.mxu0 0.0
        %1088 = vmatprep.subr.mxu0 0.0
        %1089 = vmatpush1.xpose.msra.mxu0 0.0
        %1090 = vmatprep.subr.mxu0 0.0
        %1091 = vmatpush1.xpose.msra.mxu0 0.0
        %1092 = vmatprep.subr.mxu0 0.0
        %1093 = vmatpush1.xpose.msra.mxu0 0.0
        %1094 = vmatprep.subr.mxu0 0.0
        %1095 = vmatpush1.xpose.msra.mxu0 0.0
        %1096 = vmatprep.subr.mxu0 0.0
        %1097 = vmatpush1.xpose.msra.mxu0 0.0
        %1098 = vmatprep.subr.mxu0 0.0
        %1099 = vmatpush1.xpose.msra.mxu0 0.0
        %1100 = vmatprep.subr.mxu0 0.0
        %1101 = vmatpush1.xpose.msra.mxu0 0.0
        %1102 = vmatprep.subr.mxu0 0.0
        %1103 = vmatpush1.xpose.msra.mxu0 0.0
        %1104 = vmatprep.subr.mxu0 0.0
        %1105 = vmatpush1.xpose.msra.mxu0 0.0
        %1106 = vmatprep.subr.mxu0 0.0
        %1107 = vmatpush1.xpose.msra.mxu0 0.0
        %1108 = vmatprep.subr.mxu0 0.0
        %1109 = vmatpush1.xpose.msra.mxu0 0.0
        %1110 = vmatprep.subr.mxu0 0.0
        %1111 = vmatpush1.xpose.msra.mxu0 0.0
        %1112 = vmatprep.subr.mxu0 0.0
        %1113 = vmatpush1.xpose.msra.mxu0 0.0
        %1114 = vmatprep.subr.mxu0 0.0
        %1115 = vmatpush1.xpose.msra.mxu0 0.0
        %1116 = vmatprep.subr.mxu0 0.0
        %1117 = vmatpush1.xpose.msra.mxu0 0.0
        %1118 = vmatprep.subr.mxu0 0.0
        %1119 = vmatpush1.xpose.msra.mxu0 0.0
        %1120 = vmatprep.subr.mxu0 0.0
        %1121 = vmatpush1.xpose.msra.mxu0 0.0
        %1122 = vmatprep.subr.mxu0 0.0
        %1123 = vmatpush1.xpose.msra.mxu0 0.0
        %1124 = vmatprep.subr.mxu0 0.0
        %1125 = vmatpush1.xpose.msra.mxu0 0.0
        %1126 = vmatprep.subr.mxu0 0.0
        %1127 = vmatpush1.xpose.msra.mxu0 0.0
        %1128 = vmatprep.subr.mxu0 0.0
        %1129 = vmatpush1.xpose.msra.mxu0 0.0
        %1130 = vmatprep.subr.mxu0 0.0
        %1131 = vmatpush1.xpose.msra.mxu0 0.0
        %1132 = vmatprep.subr.mxu0 0.0
        %1133 = vmatpush1.xpose.msra.mxu0 0.0
        %1134 = vmatprep.subr.mxu0 0.0
        %1135 = vmatpush1.xpose.msra.mxu0 0.0
        %1136 = vmatprep.subr.mxu0 0.0
        %1137 = vmatpush1.xpose.msra.mxu0 0.0
        %1138 = vmatprep.subr.mxu0 0.0
        %1139 = vmatpush1.xpose.msra.mxu0 0.0
        %1140 = vmatprep.mubr.f32.mxu0 0.0
        %1141 = vmatmul.mubr.f32.gmra.mrb[0].mxu0 %v1072
        %v1142 = vpop.f32.mrb[0].mxu0
        %v1143 = vadd.f32 0.0, %v1142
        %v1144 = vpop.f32.mrb[0].mxu0
        %1145 = vdwg.mxu0
        %v1146 = vmul.f32 %v611, 0.35355338
        %v1147 = vmul.f32 %v687, 0.35355338
        %v1148 = vmul.f32 %v763, 0.35355338
        %v1149 = vmul.f32 %v839, 0.35355338
        %v1150 = vmul.f32 %v915, 0.35355338
        %v1151 = vmul.f32 %v991, 0.35355338
        %v1152 = vmul.f32 %v1067, 0.35355338
        %v1153 = vmul.f32 %v1143, 0.35355338
        %v1154 = vsel %vm539, %v1146, -inf
        %1155 = vmax.xlane.f32.xlu0 %v1154
        %v1156 = vpop.xlane.xlu0 %1155
        %v1157 = vsel %vm539, %v1147, -inf
        %1158 = vmax.xlane.f32.xlu0 %v1157
        %v1159 = vpop.xlane.xlu0 %1158
        %v1160 = vsel %vm539, %v1148, -inf
        %1161 = vmax.xlane.f32.xlu0 %v1160
        %v1162 = vpop.xlane.xlu0 %1161
        %v1163 = vsel %vm539, %v1149, -inf
        %1164 = vmax.xlane.f32.xlu0 %v1163
        %v1165 = vpop.xlane.xlu0 %1164
        %v1166 = vsel %vm539, %v1150, -inf
        %1167 = vmax.xlane.f32.xlu0 %v1166
        %v1168 = vpop.xlane.xlu0 %1167
        %v1169 = vsel %vm539, %v1151, -inf
        %1170 = vmax.xlane.f32.xlu0 %v1169
        %v1171 = vpop.xlane.xlu0 %1170
        %v1172 = vsel %vm539, %v1152, -inf
        %1173 = vmax.xlane.f32.xlu0 %v1172
        %v1174 = vpop.xlane.xlu0 %1173
        %v1175 = vsel %vm539, %v1153, -inf
        %1176 = vmax.xlane.f32.xlu0 %v1175
        %v1177 = vpop.xlane.xlu0 %1176
        %v1178 = vsub.f32 %v1146, %v1156
        %v1179 = vsub.f32 %v1147, %v1159
        %v1180 = vsub.f32 %v1148, %v1162
        %v1181 = vsub.f32 %v1149, %v1165
        %v1182 = vsub.f32 %v1150, %v1168
        %v1183 = vsub.f32 %v1151, %v1171
        %v1184 = vsub.f32 %v1152, %v1174
        %v1185 = vsub.f32 %v1153, %v1177
        %v1186 = vmul.f32 %v1178, 1.442695
        %v1187 = vpow.pop %v1186
        %v1188 = vmul.f32 %v1179, 1.442695
        %v1189 = vpow.pop %v1188
        %v1190 = vmul.f32 %v1180, 1.442695
        %v1191 = vpow.pop %v1190
        %v1192 = vmul.f32 %v1181, 1.442695
        %v1193 = vpow.pop %v1192
        %v1194 = vmul.f32 %v1182, 1.442695
        %v1195 = vpow.pop %v1194
        %v1196 = vmul.f32 %v1183, 1.442695
        %v1197 = vpow.pop %v1196
        %v1198 = vmul.f32 %v1184, 1.442695
        %v1199 = vpow.pop %v1198
        %v1200 = vmul.f32 %v1185, 1.442695
        %v1201 = vpow.pop %v1200
        %v1202 = vsel %vm539, %v1187, 0.0
        %1203 = vadd.xlane.f32.xlu0 %v1202
        %v1204 = vpop.xlane.xlu0 %1203
        %v1205 = vsel %vm539, %v1189, 0.0
        %1206 = vadd.xlane.f32.xlu0 %v1205
        %v1207 = vpop.xlane.xlu0 %1206
        %v1208 = vsel %vm539, %v1191, 0.0
        %1209 = vadd.xlane.f32.xlu0 %v1208
        %v1210 = vpop.xlane.xlu0 %1209
        %v1211 = vsel %vm539, %v1193, 0.0
        %1212 = vadd.xlane.f32.xlu0 %v1211
        %v1213 = vpop.xlane.xlu0 %1212
        %v1214 = vsel %vm539, %v1195, 0.0
        %1215 = vadd.xlane.f32.xlu0 %v1214
        %v1216 = vpop.xlane.xlu0 %1215
        %v1217 = vsel %vm539, %v1197, 0.0
        %1218 = vadd.xlane.f32.xlu0 %v1217
        %v1219 = vpop.xlane.xlu0 %1218
        %v1220 = vsel %vm539, %v1199, 0.0
        %1221 = vadd.xlane.f32.xlu0 %v1220
        %v1222 = vpop.xlane.xlu0 %1221
        %v1223 = vsel %vm539, %v1201, 0.0
        %1224 = vadd.xlane.f32.xlu0 %v1223
        %v1225 = vpop.xlane.xlu0 %1224
        %v1226 = vrcp.pop %v1204
        %v1227 = vrcp.pop %v1207
        %v1228 = vrcp.pop %v1210
        %v1229 = vrcp.pop %v1213
        %v1230 = vrcp.pop %v1216
        %v1231 = vrcp.pop %v1219
        %v1232 = vrcp.pop %v1222
        %v1233 = vrcp.pop %v1225
        %v1234 = vmul.f32 %v1187, %v1226
        %v1235 = vmul.f32 %v1189, %v1227
        %v1236 = vmul.f32 %v1191, %v1228
        %v1237 = vmul.f32 %v1193, %v1229
        %v1238 = vmul.f32 %v1195, %v1230
        %v1239 = vmul.f32 %v1197, %v1231
        %v1240 = vmul.f32 %v1199, %v1232
        %v1241 = vmul.f32 %v1201, %v1233
        %1242 = vrot.lane.b32.xlu0 %v515, 64
        %v1243 = vpop.permute.xlu0 %1242
        %v1246 = vsel %vm539, %v1234, 0
        %1248 = vmatprep.subr.mxu0 0.0
        %1249 = vmatpush1.msra.mxu0 %v1243
        %1250 = vmatprep.subr.mxu0 0.0
        %1251 = vmatpush1.msra.mxu0 0.0
        %1252 = vmatprep.subr.mxu0 0.0
        %1253 = vmatpush1.msra.mxu0 0.0
        %1254 = vmatprep.subr.mxu0 0.0
        %1255 = vmatpush1.msra.mxu0 0.0
        %1256 = vmatprep.subr.mxu0 0.0
        %1257 = vmatpush1.msra.mxu0 0.0
        %1258 = vmatprep.subr.mxu0 0.0
        %1259 = vmatpush1.msra.mxu0 0.0
        %1260 = vmatprep.subr.mxu0 0.0
        %1261 = vmatpush1.msra.mxu0 0.0
        %1262 = vmatprep.subr.mxu0 0.0
        %1263 = vmatpush1.msra.mxu0 0.0
        %1264 = vmatprep.subr.mxu0 0.0
        %1265 = vmatpush1.msra.mxu0 0.0
        %1266 = vmatprep.subr.mxu0 0.0
        %1267 = vmatpush1.msra.mxu0 0.0
        %1268 = vmatprep.subr.mxu0 0.0
        %1269 = vmatpush1.msra.mxu0 0.0
        %1270 = vmatprep.subr.mxu0 0.0
        %1271 = vmatpush1.msra.mxu0 0.0
        %1272 = vmatprep.subr.mxu0 0.0
        %1273 = vmatpush1.msra.mxu0 0.0
        %1274 = vmatprep.subr.mxu0 0.0
        %1275 = vmatpush1.msra.mxu0 0.0
        %1276 = vmatprep.subr.mxu0 0.0
        %1277 = vmatpush1.msra.mxu0 0.0
        %1278 = vmatprep.subr.mxu0 0.0
        %1279 = vmatpush1.msra.mxu0 0.0
        %1280 = vmatprep.subr.mxu0 0.0
        %1281 = vmatpush1.msra.mxu0 0.0
        %1282 = vmatprep.subr.mxu0 0.0
        %1283 = vmatpush1.msra.mxu0 0.0
        %1284 = vmatprep.subr.mxu0 0.0
        %1285 = vmatpush1.msra.mxu0 0.0
        %1286 = vmatprep.subr.mxu0 0.0
        %1287 = vmatpush1.msra.mxu0 0.0
        %1288 = vmatprep.subr.mxu0 0.0
        %1289 = vmatpush1.msra.mxu0 0.0
        %1290 = vmatprep.subr.mxu0 0.0
        %1291 = vmatpush1.msra.mxu0 0.0
        %1292 = vmatprep.subr.mxu0 0.0
        %1293 = vmatpush1.msra.mxu0 0.0
        %1294 = vmatprep.subr.mxu0 0.0
        %1295 = vmatpush1.msra.mxu0 0.0
        %1296 = vmatprep.subr.mxu0 0.0
        %1297 = vmatpush1.msra.mxu0 0.0
        %1298 = vmatprep.subr.mxu0 0.0
        %1299 = vmatpush1.msra.mxu0 0.0
        %1300 = vmatprep.subr.mxu0 0.0
        %1301 = vmatpush1.msra.mxu0 0.0
        %1302 = vmatprep.subr.mxu0 0.0
        %1303 = vmatpush1.msra.mxu0 0.0
        %1304 = vmatprep.subr.mxu0 0.0
        %1305 = vmatpush1.msra.mxu0 0.0
        %1306 = vmatprep.subr.mxu0 0.0
        %1307 = vmatpush1.msra.mxu0 0.0
        %1308 = vmatprep.subr.mxu0 0.0
        %1309 = vmatpush1.msra.mxu0 0.0
        %1310 = vmatprep.subr.mxu0 0.0
        %1311 = vmatpush1.msra.mxu0 0.0
        %1312 = vmatprep.mubr.f32.mxu0 0.0
        %1313 = vmatmul.mubr.f32.gmra.mrb[0].mxu0 %v1246
        %v1314 = vpop.f32.mrb[0].mxu0
        %v1315 = vadd.f32 0.0, %v1314
        %v1316 = vpop.f32.mrb[0].mxu0
        %1317 = vdwg.mxu0
        %1318 = vrot.lane.b32.xlu0 %v520, 64
        %v1319 = vpop.permute.xlu0 %1318
        %v1322 = vsel %vm539, %v1235, 0
        %1324 = vmatprep.subr.mxu0 0.0
        %1325 = vmatpush1.msra.mxu0 %v1319
        %1326 = vmatprep.subr.mxu0 0.0
        %1327 = vmatpush1.msra.mxu0 0.0
        %1328 = vmatprep.subr.mxu0 0.0
        %1329 = vmatpush1.msra.mxu0 0.0
        %1330 = vmatprep.subr.mxu0 0.0
        %1331 = vmatpush1.msra.mxu0 0.0
        %1332 = vmatprep.subr.mxu0 0.0
        %1333 = vmatpush1.msra.mxu0 0.0
        %1334 = vmatprep.subr.mxu0 0.0
        %1335 = vmatpush1.msra.mxu0 0.0
        %1336 = vmatprep.subr.mxu0 0.0
        %1337 = vmatpush1.msra.mxu0 0.0
        %1338 = vmatprep.subr.mxu0 0.0
        %1339 = vmatpush1.msra.mxu0 0.0
        %1340 = vmatprep.subr.mxu0 0.0
        %1341 = vmatpush1.msra.mxu0 0.0
        %1342 = vmatprep.subr.mxu0 0.0
        %1343 = vmatpush1.msra.mxu0 0.0
        %1344 = vmatprep.subr.mxu0 0.0
        %1345 = vmatpush1.msra.mxu0 0.0
        %1346 = vmatprep.subr.mxu0 0.0
        %1347 = vmatpush1.msra.mxu0 0.0
        %1348 = vmatprep.subr.mxu0 0.0
        %1349 = vmatpush1.msra.mxu0 0.0
        %1350 = vmatprep.subr.mxu0 0.0
        %1351 = vmatpush1.msra.mxu0 0.0
        %1352 = vmatprep.subr.mxu0 0.0
        %1353 = vmatpush1.msra.mxu0 0.0
        %1354 = vmatprep.subr.mxu0 0.0
        %1355 = vmatpush1.msra.mxu0 0.0
        %1356 = vmatprep.subr.mxu0 0.0
        %1357 = vmatpush1.msra.mxu0 0.0
        %1358 = vmatprep.subr.mxu0 0.0
        %1359 = vmatpush1.msra.mxu0 0.0
        %1360 = vmatprep.subr.mxu0 0.0
        %1361 = vmatpush1.msra.mxu0 0.0
        %1362 = vmatprep.subr.mxu0 0.0
        %1363 = vmatpush1.msra.mxu0 0.0
        %1364 = vmatprep.subr.mxu0 0.0
        %1365 = vmatpush1.msra.mxu0 0.0
        %1366 = vmatprep.subr.mxu0 0.0
        %1367 = vmatpush1.msra.mxu0 0.0
        %1368 = vmatprep.subr.mxu0 0.0
        %1369 = vmatpush1.msra.mxu0 0.0
        %1370 = vmatprep.subr.mxu0 0.0
        %1371 = vmatpush1.msra.mxu0 0.0
        %1372 = vmatprep.subr.mxu0 0.0
        %1373 = vmatpush1.msra.mxu0 0.0
        %1374 = vmatprep.subr.mxu0 0.0
        %1375 = vmatpush1.msra.mxu0 0.0
        %1376 = vmatprep.subr.mxu0 0.0
        %1377 = vmatpush1.msra.mxu0 0.0
        %1378 = vmatprep.subr.mxu0 0.0
        %1379 = vmatpush1.msra.mxu0 0.0
        %1380 = vmatprep.subr.mxu0 0.0
        %1381 = vmatpush1.msra.mxu0 0.0
        %1382 = vmatprep.subr.mxu0 0.0
        %1383 = vmatpush1.msra.mxu0 0.0
        %1384 = vmatprep.subr.mxu0 0.0
        %1385 = vmatpush1.msra.mxu0 0.0
        %1386 = vmatprep.subr.mxu0 0.0
        %1387 = vmatpush1.msra.mxu0 0.0
        %1388 = vmatprep.mubr.f32.mxu0 0.0
        %1389 = vmatmul.mubr.f32.gmra.mrb[0].mxu0 %v1322
        %v1390 = vpop.f32.mrb[0].mxu0
        %v1391 = vadd.f32 0.0, %v1390
        %v1392 = vpop.f32.mrb[0].mxu0
        %1393 = vdwg.mxu0
        %1394 = vrot.lane.b32.xlu0 %v526, 64
        %v1395 = vpop.permute.xlu0 %1394
        %v1398 = vsel %vm539, %v1236, 0
        %1400 = vmatprep.subr.mxu0 0.0
        %1401 = vmatpush1.msra.mxu0 %v1395
        %1402 = vmatprep.subr.mxu0 0.0
        %1403 = vmatpush1.msra.mxu0 0.0
        %1404 = vmatprep.subr.mxu0 0.0
        %1405 = vmatpush1.msra.mxu0 0.0
        %1406 = vmatprep.subr.mxu0 0.0
        %1407 = vmatpush1.msra.mxu0 0.0
        %1408 = vmatprep.subr.mxu0 0.0
        %1409 = vmatpush1.msra.mxu0 0.0
        %1410 = vmatprep.subr.mxu0 0.0
        %1411 = vmatpush1.msra.mxu0 0.0
        %1412 = vmatprep.subr.mxu0 0.0
        %1413 = vmatpush1.msra.mxu0 0.0
        %1414 = vmatprep.subr.mxu0 0.0
        %1415 = vmatpush1.msra.mxu0 0.0
        %1416 = vmatprep.subr.mxu0 0.0
        %1417 = vmatpush1.msra.mxu0 0.0
        %1418 = vmatprep.subr.mxu0 0.0
        %1419 = vmatpush1.msra.mxu0 0.0
        %1420 = vmatprep.subr.mxu0 0.0
        %1421 = vmatpush1.msra.mxu0 0.0
        %1422 = vmatprep.subr.mxu0 0.0
        %1423 = vmatpush1.msra.mxu0 0.0
        %1424 = vmatprep.subr.mxu0 0.0
        %1425 = vmatpush1.msra.mxu0 0.0
        %1426 = vmatprep.subr.mxu0 0.0
        %1427 = vmatpush1.msra.mxu0 0.0
        %1428 = vmatprep.subr.mxu0 0.0
        %1429 = vmatpush1.msra.mxu0 0.0
        %1430 = vmatprep.subr.mxu0 0.0
        %1431 = vmatpush1.msra.mxu0 0.0
        %1432 = vmatprep.subr.mxu0 0.0
        %1433 = vmatpush1.msra.mxu0 0.0
        %1434 = vmatprep.subr.mxu0 0.0
        %1435 = vmatpush1.msra.mxu0 0.0
        %1436 = vmatprep.subr.mxu0 0.0
        %1437 = vmatpush1.msra.mxu0 0.0
        %1438 = vmatprep.subr.mxu0 0.0
        %1439 = vmatpush1.msra.mxu0 0.0
        %1440 = vmatprep.subr.mxu0 0.0
        %1441 = vmatpush1.msra.mxu0 0.0
        %1442 = vmatprep.subr.mxu0 0.0
        %1443 = vmatpush1.msra.mxu0 0.0
        %1444 = vmatprep.subr.mxu0 0.0
        %1445 = vmatpush1.msra.mxu0 0.0
        %1446 = vmatprep.subr.mxu0 0.0
        %1447 = vmatpush1.msra.mxu0 0.0
        %1448 = vmatprep.subr.mxu0 0.0
        %1449 = vmatpush1.msra.mxu0 0.0
        %1450 = vmatprep.subr.mxu0 0.0
        %1451 = vmatpush1.msra.mxu0 0.0
        %1452 = vmatprep.subr.mxu0 0.0
        %1453 = vmatpush1.msra.mxu0 0.0
        %1454 = vmatprep.subr.mxu0 0.0
        %1455 = vmatpush1.msra.mxu0 0.0
        %1456 = vmatprep.subr.mxu0 0.0
        %1457 = vmatpush1.msra.mxu0 0.0
        %1458 = vmatprep.subr.mxu0 0.0
        %1459 = vmatpush1.msra.mxu0 0.0
        %1460 = vmatprep.subr.mxu0 0.0
        %1461 = vmatpush1.msra.mxu0 0.0
        %1462 = vmatprep.subr.mxu0 0.0
        %1463 = vmatpush1.msra.mxu0 0.0
        %1464 = vmatprep.mubr.f32.mxu0 0.0
        %1465 = vmatmul.mubr.f32.gmra.mrb[0].mxu0 %v1398
        %v1466 = vpop.f32.mrb[0].mxu0
        %v1467 = vadd.f32 0.0, %v1466
        %v1468 = vpop.f32.mrb[0].mxu0
        %1469 = vdwg.mxu0
        %1470 = vrot.lane.b32.xlu0 %v528, 64
        %v1471 = vpop.permute.xlu0 %1470
        %v1474 = vsel %vm539, %v1237, 0
        %1476 = vmatprep.subr.mxu0 0.0
        %1477 = vmatpush1.msra.mxu0 %v1471
        %1478 = vmatprep.subr.mxu0 0.0
        %1479 = vmatpush1.msra.mxu0 0.0
        %1480 = vmatprep.subr.mxu0 0.0
        %1481 = vmatpush1.msra.mxu0 0.0
        %1482 = vmatprep.subr.mxu0 0.0
        %1483 = vmatpush1.msra.mxu0 0.0
        %1484 = vmatprep.subr.mxu0 0.0
        %1485 = vmatpush1.msra.mxu0 0.0
        %1486 = vmatprep.subr.mxu0 0.0
        %1487 = vmatpush1.msra.mxu0 0.0
        %1488 = vmatprep.subr.mxu0 0.0
        %1489 = vmatpush1.msra.mxu0 0.0
        %1490 = vmatprep.subr.mxu0 0.0
        %1491 = vmatpush1.msra.mxu0 0.0
        %1492 = vmatprep.subr.mxu0 0.0
        %1493 = vmatpush1.msra.mxu0 0.0
        %1494 = vmatprep.subr.mxu0 0.0
        %1495 = vmatpush1.msra.mxu0 0.0
        %1496 = vmatprep.subr.mxu0 0.0
        %1497 = vmatpush1.msra.mxu0 0.0
        %1498 = vmatprep.subr.mxu0 0.0
        %1499 = vmatpush1.msra.mxu0 0.0
        %1500 = vmatprep.subr.mxu0 0.0
        %1501 = vmatpush1.msra.mxu0 0.0
        %1502 = vmatprep.subr.mxu0 0.0
        %1503 = vmatpush1.msra.mxu0 0.0
        %1504 = vmatprep.subr.mxu0 0.0
        %1505 = vmatpush1.msra.mxu0 0.0
        %1506 = vmatprep.subr.mxu0 0.0
        %1507 = vmatpush1.msra.mxu0 0.0
        %1508 = vmatprep.subr.mxu0 0.0
        %1509 = vmatpush1.msra.mxu0 0.0
        %1510 = vmatprep.subr.mxu0 0.0
        %1511 = vmatpush1.msra.mxu0 0.0
        %1512 = vmatprep.subr.mxu0 0.0
        %1513 = vmatpush1.msra.mxu0 0.0
        %1514 = vmatprep.subr.mxu0 0.0
        %1515 = vmatpush1.msra.mxu0 0.0
        %1516 = vmatprep.subr.mxu0 0.0
        %1517 = vmatpush1.msra.mxu0 0.0
        %1518 = vmatprep.subr.mxu0 0.0
        %1519 = vmatpush1.msra.mxu0 0.0
        %1520 = vmatprep.subr.mxu0 0.0
        %1521 = vmatpush1.msra.mxu0 0.0
        %1522 = vmatprep.subr.mxu0 0.0
        %1523 = vmatpush1.msra.mxu0 0.0
        %1524 = vmatprep.subr.mxu0 0.0
        %1525 = vmatpush1.msra.mxu0 0.0
        %1526 = vmatprep.subr.mxu0 0.0
        %1527 = vmatpush1.msra.mxu0 0.0
        %1528 = vmatprep.subr.mxu0 0.0
        %1529 = vmatpush1.msra.mxu0 0.0
        %1530 = vmatprep.subr.mxu0 0.0
        %1531 = vmatpush1.msra.mxu0 0.0
        %1532 = vmatprep.subr.mxu0 0.0
        %1533 = vmatpush1.msra.mxu0 0.0
        %1534 = vmatprep.subr.mxu0 0.0
        %1535 = vmatpush1.msra.mxu0 0.0
        %1536 = vmatprep.subr.mxu0 0.0
        %1537 = vmatpush1.msra.mxu0 0.0
        %1538 = vmatprep.subr.mxu0 0.0
        %1539 = vmatpush1.msra.mxu0 0.0
        %1540 = vmatprep.mubr.f32.mxu0 0.0
        %1541 = vmatmul.mubr.f32.gmra.mrb[0].mxu0 %v1474
        %v1542 = vpop.f32.mrb[0].mxu0
        %v1543 = vadd.f32 0.0, %v1542
        %v1544 = vpop.f32.mrb[0].mxu0
        %1545 = vdwg.mxu0
        %1546 = vrot.lane.b32.xlu0 %v530, 64
        %v1547 = vpop.permute.xlu0 %1546
        %v1550 = vsel %vm539, %v1238, 0
        %1552 = vmatprep.subr.mxu0 0.0
        %1553 = vmatpush1.msra.mxu0 %v1547
        %1554 = vmatprep.subr.mxu0 0.0
        %1555 = vmatpush1.msra.mxu0 0.0
        %1556 = vmatprep.subr.mxu0 0.0
        %1557 = vmatpush1.msra.mxu0 0.0
        %1558 = vmatprep.subr.mxu0 0.0
        %1559 = vmatpush1.msra.mxu0 0.0
        %1560 = vmatprep.subr.mxu0 0.0
        %1561 = vmatpush1.msra.mxu0 0.0
        %1562 = vmatprep.subr.mxu0 0.0
        %1563 = vmatpush1.msra.mxu0 0.0
        %1564 = vmatprep.subr.mxu0 0.0
        %1565 = vmatpush1.msra.mxu0 0.0
        %1566 = vmatprep.subr.mxu0 0.0
        %1567 = vmatpush1.msra.mxu0 0.0
        %1568 = vmatprep.subr.mxu0 0.0
        %1569 = vmatpush1.msra.mxu0 0.0
        %1570 = vmatprep.subr.mxu0 0.0
        %1571 = vmatpush1.msra.mxu0 0.0
        %1572 = vmatprep.subr.mxu0 0.0
        %1573 = vmatpush1.msra.mxu0 0.0
        %1574 = vmatprep.subr.mxu0 0.0
        %1575 = vmatpush1.msra.mxu0 0.0
        %1576 = vmatprep.subr.mxu0 0.0
        %1577 = vmatpush1.msra.mxu0 0.0
        %1578 = vmatprep.subr.mxu0 0.0
        %1579 = vmatpush1.msra.mxu0 0.0
        %1580 = vmatprep.subr.mxu0 0.0
        %1581 = vmatpush1.msra.mxu0 0.0
        %1582 = vmatprep.subr.mxu0 0.0
        %1583 = vmatpush1.msra.mxu0 0.0
        %1584 = vmatprep.subr.mxu0 0.0
        %1585 = vmatpush1.msra.mxu0 0.0
        %1586 = vmatprep.subr.mxu0 0.0
        %1587 = vmatpush1.msra.mxu0 0.0
        %1588 = vmatprep.subr.mxu0 0.0
        %1589 = vmatpush1.msra.mxu0 0.0
        %1590 = vmatprep.subr.mxu0 0.0
        %1591 = vmatpush1.msra.mxu0 0.0
        %1592 = vmatprep.subr.mxu0 0.0
        %1593 = vmatpush1.msra.mxu0 0.0
        %1594 = vmatprep.subr.mxu0 0.0
        %1595 = vmatpush1.msra.mxu0 0.0
        %1596 = vmatprep.subr.mxu0 0.0
        %1597 = vmatpush1.msra.mxu0 0.0
        %1598 = vmatprep.subr.mxu0 0.0
        %1599 = vmatpush1.msra.mxu0 0.0
        %1600 = vmatprep.subr.mxu0 0.0
        %1601 = vmatpush1.msra.mxu0 0.0
        %1602 = vmatprep.subr.mxu0 0.0
        %1603 = vmatpush1.msra.mxu0 0.0
        %1604 = vmatprep.subr.mxu0 0.0
        %1605 = vmatpush1.msra.mxu0 0.0
        %1606 = vmatprep.subr.mxu0 0.0
        %1607 = vmatpush1.msra.mxu0 0.0
        %1608 = vmatprep.subr.mxu0 0.0
        %1609 = vmatpush1.msra.mxu0 0.0
        %1610 = vmatprep.subr.mxu0 0.0
        %1611 = vmatpush1.msra.mxu0 0.0
        %1612 = vmatprep.subr.mxu0 0.0
        %1613 = vmatpush1.msra.mxu0 0.0
        %1614 = vmatprep.subr.mxu0 0.0
        %1615 = vmatpush1.msra.mxu0 0.0
        %1616 = vmatprep.mubr.f32.mxu0 0.0
        %1617 = vmatmul.mubr.f32.gmra.mrb[0].mxu0 %v1550
        %v1618 = vpop.f32.mrb[0].mxu0
        %v1619 = vadd.f32 0.0, %v1618
        %v1620 = vpop.f32.mrb[0].mxu0
        %1621 = vdwg.mxu0
        %1622 = vrot.lane.b32.xlu0 %v532, 64
        %v1623 = vpop.permute.xlu0 %1622
        %v1626 = vsel %vm539, %v1239, 0
        %1628 = vmatprep.subr.mxu0 0.0
        %1629 = vmatpush1.msra.mxu0 %v1623
        %1630 = vmatprep.subr.mxu0 0.0
        %1631 = vmatpush1.msra.mxu0 0.0
        %1632 = vmatprep.subr.mxu0 0.0
        %1633 = vmatpush1.msra.mxu0 0.0
        %1634 = vmatprep.subr.mxu0 0.0
        %1635 = vmatpush1.msra.mxu0 0.0
        %1636 = vmatprep.subr.mxu0 0.0
        %1637 = vmatpush1.msra.mxu0 0.0
        %1638 = vmatprep.subr.mxu0 0.0
        %1639 = vmatpush1.msra.mxu0 0.0
        %1640 = vmatprep.subr.mxu0 0.0
        %1641 = vmatpush1.msra.mxu0 0.0
        %1642 = vmatprep.subr.mxu0 0.0
        %1643 = vmatpush1.msra.mxu0 0.0
        %1644 = vmatprep.subr.mxu0 0.0
        %1645 = vmatpush1.msra.mxu0 0.0
        %1646 = vmatprep.subr.mxu0 0.0
        %1647 = vmatpush1.msra.mxu0 0.0
        %1648 = vmatprep.subr.mxu0 0.0
        %1649 = vmatpush1.msra.mxu0 0.0
        %1650 = vmatprep.subr.mxu0 0.0
        %1651 = vmatpush1.msra.mxu0 0.0
        %1652 = vmatprep.subr.mxu0 0.0
        %1653 = vmatpush1.msra.mxu0 0.0
        %1654 = vmatprep.subr.mxu0 0.0
        %1655 = vmatpush1.msra.mxu0 0.0
        %1656 = vmatprep.subr.mxu0 0.0
        %1657 = vmatpush1.msra.mxu0 0.0
        %1658 = vmatprep.subr.mxu0 0.0
        %1659 = vmatpush1.msra.mxu0 0.0
        %1660 = vmatprep.subr.mxu0 0.0
        %1661 = vmatpush1.msra.mxu0 0.0
        %1662 = vmatprep.subr.mxu0 0.0
        %1663 = vmatpush1.msra.mxu0 0.0
        %1664 = vmatprep.subr.mxu0 0.0
        %1665 = vmatpush1.msra.mxu0 0.0
        %1666 = vmatprep.subr.mxu0 0.0
        %1667 = vmatpush1.msra.mxu0 0.0
        %1668 = vmatprep.subr.mxu0 0.0
        %1669 = vmatpush1.msra.mxu0 0.0
        %1670 = vmatprep.subr.mxu0 0.0
        %1671 = vmatpush1.msra.mxu0 0.0
        %1672 = vmatprep.subr.mxu0 0.0
        %1673 = vmatpush1.msra.mxu0 0.0
        %1674 = vmatprep.subr.mxu0 0.0
        %1675 = vmatpush1.msra.mxu0 0.0
        %1676 = vmatprep.subr.mxu0 0.0
        %1677 = vmatpush1.msra.mxu0 0.0
        %1678 = vmatprep.subr.mxu0 0.0
        %1679 = vmatpush1.msra.mxu0 0.0
        %1680 = vmatprep.subr.mxu0 0.0
        %1681 = vmatpush1.msra.mxu0 0.0
        %1682 = vmatprep.subr.mxu0 0.0
        %1683 = vmatpush1.msra.mxu0 0.0
        %1684 = vmatprep.subr.mxu0 0.0
        %1685 = vmatpush1.msra.mxu0 0.0
        %1686 = vmatprep.subr.mxu0 0.0
        %1687 = vmatpush1.msra.mxu0 0.0
        %1688 = vmatprep.subr.mxu0 0.0
        %1689 = vmatpush1.msra.mxu0 0.0
        %1690 = vmatprep.subr.mxu0 0.0
        %1691 = vmatpush1.msra.mxu0 0.0
        %1692 = vmatprep.mubr.f32.mxu0 0.0
        %1693 = vmatmul.mubr.f32.gmra.mrb[0].mxu0 %v1626
        %v1694 = vpop.f32.mrb[0].mxu0
        %v1695 = vadd.f32 0.0, %v1694
        %v1696 = vpop.f32.mrb[0].mxu0
        %1697 = vdwg.mxu0
        %1698 = vrot.lane.b32.xlu0 %v534, 64
        %v1699 = vpop.permute.xlu0 %1698
        %v1702 = vsel %vm539, %v1240, 0
        %1704 = vmatprep.subr.mxu0 0.0
        %1705 = vmatpush1.msra.mxu0 %v1699
        %1706 = vmatprep.subr.mxu0 0.0
        %1707 = vmatpush1.msra.mxu0 0.0
        %1708 = vmatprep.subr.mxu0 0.0
        %1709 = vmatpush1.msra.mxu0 0.0
        %1710 = vmatprep.subr.mxu0 0.0
        %1711 = vmatpush1.msra.mxu0 0.0
        %1712 = vmatprep.subr.mxu0 0.0
        %1713 = vmatpush1.msra.mxu0 0.0
        %1714 = vmatprep.subr.mxu0 0.0
        %1715 = vmatpush1.msra.mxu0 0.0
        %1716 = vmatprep.subr.mxu0 0.0
        %1717 = vmatpush1.msra.mxu0 0.0
        %1718 = vmatprep.subr.mxu0 0.0
        %1719 = vmatpush1.msra.mxu0 0.0
        %1720 = vmatprep.subr.mxu0 0.0
        %1721 = vmatpush1.msra.mxu0 0.0
        %1722 = vmatprep.subr.mxu0 0.0
        %1723 = vmatpush1.msra.mxu0 0.0
        %1724 = vmatprep.subr.mxu0 0.0
        %1725 = vmatpush1.msra.mxu0 0.0
        %1726 = vmatprep.subr.mxu0 0.0
        %1727 = vmatpush1.msra.mxu0 0.0
        %1728 = vmatprep.subr.mxu0 0.0
        %1729 = vmatpush1.msra.mxu0 0.0
        %1730 = vmatprep.subr.mxu0 0.0
        %1731 = vmatpush1.msra.mxu0 0.0
        %1732 = vmatprep.subr.mxu0 0.0
        %1733 = vmatpush1.msra.mxu0 0.0
        %1734 = vmatprep.subr.mxu0 0.0
        %1735 = vmatpush1.msra.mxu0 0.0
        %1736 = vmatprep.subr.mxu0 0.0
        %1737 = vmatpush1.msra.mxu0 0.0
        %1738 = vmatprep.subr.mxu0 0.0
        %1739 = vmatpush1.msra.mxu0 0.0
        %1740 = vmatprep.subr.mxu0 0.0
        %1741 = vmatpush1.msra.mxu0 0.0
        %1742 = vmatprep.subr.mxu0 0.0
        %1743 = vmatpush1.msra.mxu0 0.0
        %1744 = vmatprep.subr.mxu0 0.0
        %1745 = vmatpush1.msra.mxu0 0.0
        %1746 = vmatprep.subr.mxu0 0.0
        %1747 = vmatpush1.msra.mxu0 0.0
        %1748 = vmatprep.subr.mxu0 0.0
        %1749 = vmatpush1.msra.mxu0 0.0
        %1750 = vmatprep.subr.mxu0 0.0
        %1751 = vmatpush1.msra.mxu0 0.0
        %1752 = vmatprep.subr.mxu0 0.0
        %1753 = vmatpush1.msra.mxu0 0.0
        %1754 = vmatprep.subr.mxu0 0.0
        %1755 = vmatpush1.msra.mxu0 0.0
        %1756 = vmatprep.subr.mxu0 0.0
        %1757 = vmatpush1.msra.mxu0 0.0
        %1758 = vmatprep.subr.mxu0 0.0
        %1759 = vmatpush1.msra.mxu0 0.0
        %1760 = vmatprep.subr.mxu0 0.0
        %1761 = vmatpush1.msra.mxu0 0.0
        %1762 = vmatprep.subr.mxu0 0.0
        %1763 = vmatpush1.msra.mxu0 0.0
        %1764 = vmatprep.subr.mxu0 0.0
        %1765 = vmatpush1.msra.mxu0 0.0
        %1766 = vmatprep.subr.mxu0 0.0
        %1767 = vmatpush1.msra.mxu0 0.0
        %1768 = vmatprep.mubr.f32.mxu0 0.0
        %1769 = vmatmul.mubr.f32.gmra.mrb[0].mxu0 %v1702
        %v1770 = vpop.f32.mrb[0].mxu0
        %v1771 = vadd.f32 0.0, %v1770
        %v1772 = vpop.f32.mrb[0].mxu0
        %1773 = vdwg.mxu0
        %1774 = vrot.lane.b32.xlu0 %v536, 64
        %v1775 = vpop.permute.xlu0 %1774
        %v1778 = vsel %vm539, %v1241, 0
        %1780 = vmatprep.subr.mxu0 0.0
        %1781 = vmatpush1.msra.mxu0 %v1775
        %1782 = vmatprep.subr.mxu0 0.0
        %1783 = vmatpush1.msra.mxu0 0.0
        %1784 = vmatprep.subr.mxu0 0.0
        %1785 = vmatpush1.msra.mxu0 0.0
        %1786 = vmatprep.subr.mxu0 0.0
        %1787 = vmatpush1.msra.mxu0 0.0
        %1788 = vmatprep.subr.mxu0 0.0
        %1789 = vmatpush1.msra.mxu0 0.0
        %1790 = vmatprep.subr.mxu0 0.0
        %1791 = vmatpush1.msra.mxu0 0.0
        %1792 = vmatprep.subr.mxu0 0.0
        %1793 = vmatpush1.msra.mxu0 0.0
        %1794 = vmatprep.subr.mxu0 0.0
        %1795 = vmatpush1.msra.mxu0 0.0
        %1796 = vmatprep.subr.mxu0 0.0
        %1797 = vmatpush1.msra.mxu0 0.0
        %1798 = vmatprep.subr.mxu0 0.0
        %1799 = vmatpush1.msra.mxu0 0.0
        %1800 = vmatprep.subr.mxu0 0.0
        %1801 = vmatpush1.msra.mxu0 0.0
        %1802 = vmatprep.subr.mxu0 0.0
        %1803 = vmatpush1.msra.mxu0 0.0
        %1804 = vmatprep.subr.mxu0 0.0
        %1805 = vmatpush1.msra.mxu0 0.0
        %1806 = vmatprep.subr.mxu0 0.0
        %1807 = vmatpush1.msra.mxu0 0.0
        %1808 = vmatprep.subr.mxu0 0.0
        %1809 = vmatpush1.msra.mxu0 0.0
        %1810 = vmatprep.subr.mxu0 0.0
        %1811 = vmatpush1.msra.mxu0 0.0
        %1812 = vmatprep.subr.mxu0 0.0
        %1813 = vmatpush1.msra.mxu0 0.0
        %1814 = vmatprep.subr.mxu0 0.0
        %1815 = vmatpush1.msra.mxu0 0.0
        %1816 = vmatprep.subr.mxu0 0.0
        %1817 = vmatpush1.msra.mxu0 0.0
        %1818 = vmatprep.subr.mxu0 0.0
        %1819 = vmatpush1.msra.mxu0 0.0
        %1820 = vmatprep.subr.mxu0 0.0
        %1821 = vmatpush1.msra.mxu0 0.0
        %1822 = vmatprep.subr.mxu0 0.0
        %1823 = vmatpush1.msra.mxu0 0.0
        %1824 = vmatprep.subr.mxu0 0.0
        %1825 = vmatpush1.msra.mxu0 0.0
        %1826 = vmatprep.subr.mxu0 0.0
        %1827 = vmatpush1.msra.mxu0 0.0
        %1828 = vmatprep.subr.mxu0 0.0
        %1829 = vmatpush1.msra.mxu0 0.0
        %1830 = vmatprep.subr.mxu0 0.0
        %1831 = vmatpush1.msra.mxu0 0.0
        %1832 = vmatprep.subr.mxu0 0.0
        %1833 = vmatpush1.msra.mxu0 0.0
        %1834 = vmatprep.subr.mxu0 0.0
        %1835 = vmatpush1.msra.mxu0 0.0
        %1836 = vmatprep.subr.mxu0 0.0
        %1837 = vmatpush1.msra.mxu0 0.0
        %1838 = vmatprep.subr.mxu0 0.0
        %1839 = vmatpush1.msra.mxu0 0.0
        %1840 = vmatprep.subr.mxu0 0.0
        %1841 = vmatpush1.msra.mxu0 0.0
        %1842 = vmatprep.subr.mxu0 0.0
        %1843 = vmatpush1.msra.mxu0 0.0
        %1844 = vmatprep.mubr.f32.mxu0 0.0
        %1845 = vmatmul.mubr.f32.gmra.mrb[0].mxu0 %v1778
        %v1846 = vpop.f32.mrb[0].mxu0
        %v1847 = vadd.f32 0.0, %v1846
        %v1848 = vpop.f32.mrb[0].mxu0
        %1849 = vdwg.mxu0
        %1852 = vrot.lane.b32.xlu0 %v1467, 8
        %v1853 = vpop.permute.xlu0 %1852
        %1854 = vrot.lane.b32.xlu0 %v1543, 8
        %v1855 = vpop.permute.xlu0 %1854
        %1860 = vrot.lane.b32.xlu0 %v1619, 16
        %v1861 = vpop.permute.xlu0 %1860
        %1862 = vrot.lane.b32.xlu0 %v1695, 16
        %v1863 = vpop.permute.xlu0 %1862
        %1868 = vrot.lane.b32.xlu0 %v1771, 24
        %v1869 = vpop.permute.xlu0 %1868
        %1870 = vrot.lane.b32.xlu0 %v1847, 24
        %v1871 = vpop.permute.xlu0 %1870
        %v1874 = vsel %vm539, %v1315, %v1853
        %v1875 = vsel %vm539, %v1391, %v1855
        %vm1876 = vcmask 130048
        %v1877 = vsel %vm1876, %v1874, %v1861
        %v1878 = vsel %vm1876, %v1875, %v1863
        %vm1879 = vcmask 195584
        %v1880 = vsel %vm1879, %v1877, %v1869
        %v1881 = vsel %vm1879, %v1878, %v1871
        %v1882 = vlaneseq
        %v1883 = vshrl.u32 %v1882, 7
        %v1884 = vsub.s32 0, %v1883
        %v1885 = vrot.slane %v435, %v1884
        %v1887 = vsel %vm441, %v1880, 0
        %v1890 = vsel %vm441, %v1881, 0
        %1892 = vmatprep.subr.mxu0 0.0
        %1893 = vmatpush1.msra.mxu0 %v419
        %1894 = vmatprep.subr.mxu0 0.0
        %1895 = vmatpush1.msra.mxu0 %v420
        %1896 = vmatprep.subr.mxu0 0.0
        %1897 = vmatpush1.msra.mxu0 %v421
        %1898 = vmatprep.subr.mxu0 0.0
        %1899 = vmatpush1.msra.mxu0 %v422
        %1900 = vmatprep.subr.mxu0 0.0
        %1901 = vmatpush1.msra.mxu0 0.0
        %1902 = vmatprep.subr.mxu0 0.0
        %1903 = vmatpush1.msra.mxu0 0.0
        %1904 = vmatprep.subr.mxu0 0.0
        %1905 = vmatpush1.msra.mxu0 0.0
        %1906 = vmatprep.subr.mxu0 0.0
        %1907 = vmatpush1.msra.mxu0 0.0
        %1908 = vmatprep.subr.mxu0 0.0
        %1909 = vmatpush1.msra.mxu0 0.0
        %1910 = vmatprep.subr.mxu0 0.0
        %1911 = vmatpush1.msra.mxu0 0.0
        %1912 = vmatprep.subr.mxu0 0.0
        %1913 = vmatpush1.msra.mxu0 0.0
        %1914 = vmatprep.subr.mxu0 0.0
        %1915 = vmatpush1.msra.mxu0 0.0
        %1916 = vmatprep.subr.mxu0 0.0
        %1917 = vmatpush1.msra.mxu0 0.0
        %1918 = vmatprep.subr.mxu0 0.0
        %1919 = vmatpush1.msra.mxu0 0.0
        %1920 = vmatprep.subr.mxu0 0.0
        %1921 = vmatpush1.msra.mxu0 0.0
        %1922 = vmatprep.subr.mxu0 0.0
        %1923 = vmatpush1.msra.mxu0 0.0
        %1924 = vmatprep.subr.mxu0 0.0
        %1925 = vmatpush1.msra.mxu0 0.0
        %1926 = vmatprep.subr.mxu0 0.0
        %1927 = vmatpush1.msra.mxu0 0.0
        %1928 = vmatprep.subr.mxu0 0.0
        %1929 = vmatpush1.msra.mxu0 0.0
        %1930 = vmatprep.subr.mxu0 0.0
        %1931 = vmatpush1.msra.mxu0 0.0
        %1932 = vmatprep.subr.mxu0 0.0
        %1933 = vmatpush1.msra.mxu0 0.0
        %1934 = vmatprep.subr.mxu0 0.0
        %1935 = vmatpush1.msra.mxu0 0.0
        %1936 = vmatprep.subr.mxu0 0.0
        %1937 = vmatpush1.msra.mxu0 0.0
        %1938 = vmatprep.subr.mxu0 0.0
        %1939 = vmatpush1.msra.mxu0 0.0
        %1940 = vmatprep.subr.mxu0 0.0
        %1941 = vmatpush1.msra.mxu0 0.0
        %1942 = vmatprep.subr.mxu0 0.0
        %1943 = vmatpush1.msra.mxu0 0.0
        %1944 = vmatprep.subr.mxu0 0.0
        %1945 = vmatpush1.msra.mxu0 0.0
        %1946 = vmatprep.subr.mxu0 0.0
        %1947 = vmatpush1.msra.mxu0 0.0
        %1948 = vmatprep.subr.mxu0 0.0
        %1949 = vmatpush1.msra.mxu0 0.0
        %1950 = vmatprep.subr.mxu0 0.0
        %1951 = vmatpush1.msra.mxu0 0.0
        %1952 = vmatprep.subr.mxu0 0.0
        %1953 = vmatpush1.msra.mxu0 0.0
        %1954 = vmatprep.subr.mxu0 0.0
        %1955 = vmatpush1.msra.mxu0 0.0
        %1956 = vmatprep.mubr.f32.mxu0 0.0
        %1957 = vmatmul.mubr.f32.gmra.mrb[0].mxu0 %v1887
        %v1958 = vpop.f32.mrb[0].mxu0
        %v1959 = vadd.f32 %v1885, %v1958
        %v1960 = vpop.f32.mrb[0].mxu0
        %1961 = vmatprep.mubr.f32.mxu0 0.0
        %1962 = vmatmul.mubr.f32.gmra.mrb[0].mxu0 %v1890
        %v1963 = vpop.f32.mrb[0].mxu0
        %v1964 = vadd.f32 %v1885, %v1963
        %v1965 = vpop.f32.mrb[0].mxu0
        %1966 = vdwg.mxu0
        %v1967 = vadd.f32 %v1959, %v406
        %v1968 = vadd.f32 %v1964, %v407
        %v1969 = vsel %vm441, %v1967, 0.0
        %1970 = vadd.xlane.f32.xlu0 %v1969
        %v1971 = vpop.xlane.xlu0 %1970
        %v1972 = vsel %vm441, %v1968, 0.0
        %1973 = vadd.xlane.f32.xlu0 %v1972
        %v1974 = vpop.xlane.xlu0 %1973
        %v1975 = vrcp.pop 32.0
        %v1976 = vmul.f32 %v1971, %v1975
        %v1977 = vmul.f32 %v1974, %v1975
        %v1978 = vsub.f32 %v1967, %v1976
        %v1979 = vsub.f32 %v1968, %v1977
        %v1980 = vmul.f32 %v1978, %v1978
        %v1981 = vmul.f32 %v1979, %v1979
        %v1982 = vsel %vm441, %v1980, 0.0
        %1983 = vadd.xlane.f32.xlu0 %v1982
        %v1984 = vpop.xlane.xlu0 %1983
        %v1985 = vsel %vm441, %v1981, 0.0
        %1986 = vadd.xlane.f32.xlu0 %v1985
        %v1987 = vpop.xlane.xlu0 %1986
        %v1988 = vmul.f32 %v1984, %v1975
        %v1989 = vmul.f32 %v1987, %v1975
        %v1990 = vadd.f32 %v1988, 1e-06
        %v1991 = vadd.f32 %v1989, 1e-06
        %v1992 = vrsqrt.pop %v1990
        %v1993 = vrsqrt.pop %v1991
        %v1994 = vmul.f32 %v1978, %v1992
        %v1995 = vmul.f32 %v1979, %v1993
        %v1996 = vlaneseq
        %v1997 = vshrl.u32 %v1996, 7
        %v1998 = vsub.s32 2, %v1997
        %v1999 = vrot.slane %v435, %v1998
        %v2000 = vmul.f32 %v1994, %v1999
        %v2001 = vmul.f32 %v1995, %v1999
        %v2002 = vlaneseq
        %v2003 = vshrl.u32 %v2002, 7
        %v2004 = vsub.s32 3, %v2003
        %v2005 = vrot.slane %v435, %v2004
        %v2006 = vadd.f32 %v2000, %v2005
        %v2007 = vadd.f32 %v2001, %v2005
        %v2008 = vlaneseq
        %v2009 = vshrl.u32 %v2008, 7
        %v2010 = vsub.s32 1, %v2009
        %v2011 = vrot.slane %v418, %v2010
        %v2013 = vsel %vm441, %v408, 0
        %v2016 = vsel %vm441, %v409, 0
        %2018 = vmatprep.subr.mxu0 0.0
        %2019 = vmatpush1.msra.mxu0 %v414
        %2020 = vmatprep.subr.mxu0 0.0
        %2021 = vmatpush1.msra.mxu0 %v415
        %2022 = vmatprep.subr.mxu0 0.0
        %2023 = vmatpush1.msra.mxu0 %v416
        %2024 = vmatprep.subr.mxu0 0.0
        %2025 = vmatpush1.msra.mxu0 %v417
        %2026 = vmatprep.subr.mxu0 0.0
        %2027 = vmatpush1.msra.mxu0 0.0
        %2028 = vmatprep.subr.mxu0 0.0
        %2029 = vmatpush1.msra.mxu0 0.0
        %2030 = vmatprep.subr.mxu0 0.0
        %2031 = vmatpush1.msra.mxu0 0.0
        %2032 = vmatprep.subr.mxu0 0.0
        %2033 = vmatpush1.msra.mxu0 0.0
        %2034 = vmatprep.subr.mxu0 0.0
        %2035 = vmatpush1.msra.mxu0 0.0
        %2036 = vmatprep.subr.mxu0 0.0
        %2037 = vmatpush1.msra.mxu0 0.0
        %2038 = vmatprep.subr.mxu0 0.0
        %2039 = vmatpush1.msra.mxu0 0.0
        %2040 = vmatprep.subr.mxu0 0.0
        %2041 = vmatpush1.msra.mxu0 0.0
        %2042 = vmatprep.subr.mxu0 0.0
        %2043 = vmatpush1.msra.mxu0 0.0
        %2044 = vmatprep.subr.mxu0 0.0
        %2045 = vmatpush1.msra.mxu0 0.0
        %2046 = vmatprep.subr.mxu0 0.0
        %2047 = vmatpush1.msra.mxu0 0.0
        %2048 = vmatprep.subr.mxu0 0.0
        %2049 = vmatpush1.msra.mxu0 0.0
        %2050 = vmatprep.subr.mxu0 0.0
        %2051 = vmatpush1.msra.mxu0 0.0
        %2052 = vmatprep.subr.mxu0 0.0
        %2053 = vmatpush1.msra.mxu0 0.0
        %2054 = vmatprep.subr.mxu0 0.0
        %2055 = vmatpush1.msra.mxu0 0.0
        %2056 = vmatprep.subr.mxu0 0.0
        %2057 = vmatpush1.msra.mxu0 0.0
        %2058 = vmatprep.subr.mxu0 0.0
        %2059 = vmatpush1.msra.mxu0 0.0
        %2060 = vmatprep.subr.mxu0 0.0
        %2061 = vmatpush1.msra.mxu0 0.0
        %2062 = vmatprep.subr.mxu0 0.0
        %2063 = vmatpush1.msra.mxu0 0.0
        %2064 = vmatprep.subr.mxu0 0.0
        %2065 = vmatpush1.msra.mxu0 0.0
        %2066 = vmatprep.subr.mxu0 0.0
        %2067 = vmatpush1.msra.mxu0 0.0
        %2068 = vmatprep.subr.mxu0 0.0
        %2069 = vmatpush1.msra.mxu0 0.0
        %2070 = vmatprep.subr.mxu0 0.0
        %2071 = vmatpush1.msra.mxu0 0.0
        %2072 = vmatprep.subr.mxu0 0.0
        %2073 = vmatpush1.msra.mxu0 0.0
        %2074 = vmatprep.subr.mxu0 0.0
        %2075 = vmatpush1.msra.mxu0 0.0
        %2076 = vmatprep.subr.mxu0 0.0
        %2077 = vmatpush1.msra.mxu0 0.0
        %2078 = vmatprep.subr.mxu0 0.0
        %2079 = vmatpush1.msra.mxu0 0.0
        %2080 = vmatprep.subr.mxu0 0.0
        %2081 = vmatpush1.msra.mxu0 0.0
        %2082 = vmatprep.mubr.f32.mxu0 0.0
        %2083 = vmatmul.mubr.f32.gmra.mrb[0].mxu0 %v2013
        %v2084 = vpop.f32.mrb[0].mxu0
        %v2085 = vadd.f32 %v2011, %v2084
        %v2086 = vpop.f32.mrb[0].mxu0
        %2087 = vmatprep.mubr.f32.mxu0 0.0
        %2088 = vmatmul.mubr.f32.gmra.mrb[0].mxu0 %v2016
        %v2089 = vpop.f32.mrb[0].mxu0
        %v2090 = vadd.f32 %v2011, %v2089
        %v2091 = vpop.f32.mrb[0].mxu0
        %2092 = vdwg.mxu0
        %2097 = vrot.lane.b32.xlu0 %v414, 64
        %v2098 = vpop.permute.xlu0 %2097
        %2099 = vrot.lane.b32.xlu0 %v415, 64
        %v2100 = vpop.permute.xlu0 %2099
        %2101 = vrot.lane.b32.xlu0 %v416, 64
        %v2102 = vpop.permute.xlu0 %2101
        %2103 = vrot.lane.b32.xlu0 %v417, 64
        %v2104 = vpop.permute.xlu0 %2103
        %2110 = vrot.lane.b32.xlu0 %v2011, 64
        %v2111 = vpop.permute.xlu0 %2110
        %2113 = vmatprep.subr.mxu0 0.0
        %2114 = vmatpush1.msra.mxu0 %v2098
        %2115 = vmatprep.subr.mxu0 0.0
        %2116 = vmatpush1.msra.mxu0 %v2100
        %2117 = vmatprep.subr.mxu0 0.0
        %2118 = vmatpush1.msra.mxu0 %v2102
        %2119 = vmatprep.subr.mxu0 0.0
        %2120 = vmatpush1.msra.mxu0 %v2104
        %2121 = vmatprep.subr.mxu0 0.0
        %2122 = vmatpush1.msra.mxu0 0.0
        %2123 = vmatprep.subr.mxu0 0.0
        %2124 = vmatpush1.msra.mxu0 0.0
        %2125 = vmatprep.subr.mxu0 0.0
        %2126 = vmatpush1.msra.mxu0 0.0
        %2127 = vmatprep.subr.mxu0 0.0
        %2128 = vmatpush1.msra.mxu0 0.0
        %2129 = vmatprep.subr.mxu0 0.0
        %2130 = vmatpush1.msra.mxu0 0.0
        %2131 = vmatprep.subr.mxu0 0.0
        %2132 = vmatpush1.msra.mxu0 0.0
        %2133 = vmatprep.subr.mxu0 0.0
        %2134 = vmatpush1.msra.mxu0 0.0
        %2135 = vmatprep.subr.mxu0 0.0
        %2136 = vmatpush1.msra.mxu0 0.0
        %2137 = vmatprep.subr.mxu0 0.0
        %2138 = vmatpush1.msra.mxu0 0.0
        %2139 = vmatprep.subr.mxu0 0.0
        %2140 = vmatpush1.msra.mxu0 0.0
        %2141 = vmatprep.subr.mxu0 0.0
        %2142 = vmatpush1.msra.mxu0 0.0
        %2143 = vmatprep.subr.mxu0 0.0
        %2144 = vmatpush1.msra.mxu0 0.0
        %2145 = vmatprep.subr.mxu0 0.0
        %2146 = vmatpush1.msra.mxu0 0.0
        %2147 = vmatprep.subr.mxu0 0.0
        %2148 = vmatpush1.msra.mxu0 0.0
        %2149 = vmatprep.subr.mxu0 0.0
        %2150 = vmatpush1.msra.mxu0 0.0
        %2151 = vmatprep.subr.mxu0 0.0
        %2152 = vmatpush1.msra.mxu0 0.0
        %2153 = vmatprep.subr.mxu0 0.0
        %2154 = vmatpush1.msra.mxu0 0.0
        %2155 = vmatprep.subr.mxu0 0.0
        %2156 = vmatpush1.msra.mxu0 0.0
        %2157 = vmatprep.subr.mxu0 0.0
        %2158 = vmatpush1.msra.mxu0 0.0
        %2159 = vmatprep.subr.mxu0 0.0
        %2160 = vmatpush1.msra.mxu0 0.0
        %2161 = vmatprep.subr.mxu0 0.0
        %2162 = vmatpush1.msra.mxu0 0.0
        %2163 = vmatprep.subr.mxu0 0.0
        %2164 = vmatpush1.msra.mxu0 0.0
        %2165 = vmatprep.subr.mxu0 0.0
        %2166 = vmatpush1.msra.mxu0 0.0
        %2167 = vmatprep.subr.mxu0 0.0
        %2168 = vmatpush1.msra.mxu0 0.0
        %2169 = vmatprep.subr.mxu0 0.0
        %2170 = vmatpush1.msra.mxu0 0.0
        %2171 = vmatprep.subr.mxu0 0.0
        %2172 = vmatpush1.msra.mxu0 0.0
        %2173 = vmatprep.subr.mxu0 0.0
        %2174 = vmatpush1.msra.mxu0 0.0
        %2175 = vmatprep.subr.mxu0 0.0
        %2176 = vmatpush1.msra.mxu0 0.0
        %2177 = vmatprep.mubr.f32.mxu0 0.0
        %2178 = vmatmul.mubr.f32.gmra.mrb[0].mxu0 %v443
        %v2179 = vpop.f32.mrb[0].mxu0
        %v2180 = vadd.f32 %v2111, %v2179
        %v2181 = vpop.f32.mrb[0].mxu0
        %2182 = vmatprep.mubr.f32.mxu0 0.0
        %2183 = vmatmul.mubr.f32.gmra.mrb[0].mxu0 %v446
        %v2184 = vpop.f32.mrb[0].mxu0
        %v2185 = vadd.f32 %v2111, %v2184
        %v2186 = vpop.f32.mrb[0].mxu0
        %2187 = vdwg.mxu0
        %2190 = vrot.lane.b32.xlu0 %v2085, 120
        %v2191 = vpop.permute.xlu0 %2190
        %2192 = vrot.lane.b32.xlu0 %v2090, 120
        %v2193 = vpop.permute.xlu0 %2192
        %2194 = vrot.lane.b32.xlu0 %v2085, 112
        %v2195 = vpop.permute.xlu0 %2194
        %2196 = vrot.lane.b32.xlu0 %v2090, 112
        %v2197 = vpop.permute.xlu0 %2196
        %2198 = vrot.lane.b32.xlu0 %v2085, 104
        %v2199 = vpop.permute.xlu0 %2198
        %2200 = vrot.lane.b32.xlu0 %v2090, 104
        %v2201 = vpop.permute.xlu0 %2200
        %2204 = vrot.lane.b32.xlu0 %v2180, 120
        %v2205 = vpop.permute.xlu0 %2204
        %2206 = vrot.lane.b32.xlu0 %v2185, 120
        %v2207 = vpop.permute.xlu0 %2206
        %2210 = vrot.lane.b32.xlu0 %v2180, 112
        %v2211 = vpop.permute.xlu0 %2210
        %2212 = vrot.lane.b32.xlu0 %v2185, 112
        %v2213 = vpop.permute.xlu0 %2212
        %2216 = vrot.lane.b32.xlu0 %v2180, 104
        %v2217 = vpop.permute.xlu0 %2216
        %2218 = vrot.lane.b32.xlu0 %v2185, 104
        %v2219 = vpop.permute.xlu0 %2218
        %2222 = vrot.lane.b32.xlu0 %v2085, 96
        %v2223 = vpop.permute.xlu0 %2222
        %v2224 = vsel %vm539, %v2085, 0
        %v2226 = vsel %vm539, %v2223, 0
        %2228 = vmatprep.subr.mxu0 0.0
        %2229 = vmatpush1.xpose.msra.mxu0 %v2226
        %2230 = vmatprep.subr.mxu0 0.0
        %2231 = vmatpush1.xpose.msra.mxu0 0.0
        %2232 = vmatprep.subr.mxu0 0.0
        %2233 = vmatpush1.xpose.msra.mxu0 0.0
        %2234 = vmatprep.subr.mxu0 0.0
        %2235 = vmatpush1.xpose.msra.mxu0 0.0
        %2236 = vmatprep.subr.mxu0 0.0
        %2237 = vmatpush1.xpose.msra.mxu0 0.0
        %2238 = vmatprep.subr.mxu0 0.0
        %2239 = vmatpush1.xpose.msra.mxu0 0.0
        %2240 = vmatprep.subr.mxu0 0.0
        %2241 = vmatpush1.xpose.msra.mxu0 0.0
        %2242 = vmatprep.subr.mxu0 0.0
        %2243 = vmatpush1.xpose.msra.mxu0 0.0
        %2244 = vmatprep.subr.mxu0 0.0
        %2245 = vmatpush1.xpose.msra.mxu0 0.0
        %2246 = vmatprep.subr.mxu0 0.0
        %2247 = vmatpush1.xpose.msra.mxu0 0.0
        %2248 = vmatprep.subr.mxu0 0.0
        %2249 = vmatpush1.xpose.msra.mxu0 0.0
        %2250 = vmatprep.subr.mxu0 0.0
        %2251 = vmatpush1.xpose.msra.mxu0 0.0
        %2252 = vmatprep.subr.mxu0 0.0
        %2253 = vmatpush1.xpose.msra.mxu0 0.0
        %2254 = vmatprep.subr.mxu0 0.0
        %2255 = vmatpush1.xpose.msra.mxu0 0.0
        %2256 = vmatprep.subr.mxu0 0.0
        %2257 = vmatpush1.xpose.msra.mxu0 0.0
        %2258 = vmatprep.subr.mxu0 0.0
        %2259 = vmatpush1.xpose.msra.mxu0 0.0
        %2260 = vmatprep.subr.mxu0 0.0
        %2261 = vmatpush1.xpose.msra.mxu0 0.0
        %2262 = vmatprep.subr.mxu0 0.0
        %2263 = vmatpush1.xpose.msra.mxu0 0.0
        %2264 = vmatprep.subr.mxu0 0.0
        %2265 = vmatpush1.xpose.msra.mxu0 0.0
        %2266 = vmatprep.subr.mxu0 0.0
        %2267 = vmatpush1.xpose.msra.mxu0 0.0
        %2268 = vmatprep.subr.mxu0 0.0
        %2269 = vmatpush1.xpose.msra.mxu0 0.0
        %2270 = vmatprep.subr.mxu0 0.0
        %2271 = vmatpush1.xpose.msra.mxu0 0.0
        %2272 = vmatprep.subr.mxu0 0.0
        %2273 = vmatpush1.xpose.msra.mxu0 0.0
        %2274 = vmatprep.subr.mxu0 0.0
        %2275 = vmatpush1.xpose.msra.mxu0 0.0
        %2276 = vmatprep.subr.mxu0 0.0
        %2277 = vmatpush1.xpose.msra.mxu0 0.0
        %2278 = vmatprep.subr.mxu0 0.0
        %2279 = vmatpush1.xpose.msra.mxu0 0.0
        %2280 = vmatprep.subr.mxu0 0.0
        %2281 = vmatpush1.xpose.msra.mxu0 0.0
        %2282 = vmatprep.subr.mxu0 0.0
        %2283 = vmatpush1.xpose.msra.mxu0 0.0
        %2284 = vmatprep.subr.mxu0 0.0
        %2285 = vmatpush1.xpose.msra.mxu0 0.0
        %2286 = vmatprep.subr.mxu0 0.0
        %2287 = vmatpush1.xpose.msra.mxu0 0.0
        %2288 = vmatprep.subr.mxu0 0.0
        %2289 = vmatpush1.xpose.msra.mxu0 0.0
        %2290 = vmatprep.subr.mxu0 0.0
        %2291 = vmatpush1.xpose.msra.mxu0 0.0
        %2292 = vmatprep.mubr.f32.mxu0 0.0
        %2293 = vmatmul.mubr.f32.gmra.mrb[0].mxu0 %v2224
        %v2294 = vpop.f32.mrb[0].mxu0
        %v2295 = vadd.f32 0.0, %v2294
        %v2296 = vpop.f32.mrb[0].mxu0
        %2297 = vdwg.mxu0
        %2298 = vrot.lane.b32.xlu0 %v2090, 96
        %v2299 = vpop.permute.xlu0 %2298
        %v2300 = vsel %vm539, %v2090, 0
        %v2302 = vsel %vm539, %v2299, 0
        %2304 = vmatprep.subr.mxu0 0.0
        %2305 = vmatpush1.xpose.msra.mxu0 %v2302
        %2306 = vmatprep.subr.mxu0 0.0
        %2307 = vmatpush1.xpose.msra.mxu0 0.0
        %2308 = vmatprep.subr.mxu0 0.0
        %2309 = vmatpush1.xpose.msra.mxu0 0.0
        %2310 = vmatprep.subr.mxu0 0.0
        %2311 = vmatpush1.xpose.msra.mxu0 0.0
        %2312 = vmatprep.subr.mxu0 0.0
        %2313 = vmatpush1.xpose.msra.mxu0 0.0
        %2314 = vmatprep.subr.mxu0 0.0
        %2315 = vmatpush1.xpose.msra.mxu0 0.0
        %2316 = vmatprep.subr.mxu0 0.0
        %2317 = vmatpush1.xpose.msra.mxu0 0.0
        %2318 = vmatprep.subr.mxu0 0.0
        %2319 = vmatpush1.xpose.msra.mxu0 0.0
        %2320 = vmatprep.subr.mxu0 0.0
        %2321 = vmatpush1.xpose.msra.mxu0 0.0
        %2322 = vmatprep.subr.mxu0 0.0
        %2323 = vmatpush1.xpose.msra.mxu0 0.0
        %2324 = vmatprep.subr.mxu0 0.0
        %2325 = vmatpush1.xpose.msra.mxu0 0.0
        %2326 = vmatprep.subr.mxu0 0.0
        %2327 = vmatpush1.xpose.msra.mxu0 0.0
        %2328 = vmatprep.subr.mxu0 0.0
        %2329 = vmatpush1.xpose.msra.mxu0 0.0
        %2330 = vmatprep.subr.mxu0 0.0
        %2331 = vmatpush1.xpose.msra.mxu0 0.0
        %2332 = vmatprep.subr.mxu0 0.0
        %2333 = vmatpush1.xpose.msra.mxu0 0.0
        %2334 = vmatprep.subr.mxu0 0.0
        %2335 = vmatpush1.xpose.msra.mxu0 0.0
        %2336 = vmatprep.subr.mxu0 0.0
        %2337 = vmatpush1.xpose.msra.mxu0 0.0
        %2338 = vmatprep.subr.mxu0 0.0
        %2339 = vmatpush1.xpose.msra.mxu0 0.0
        %2340 = vmatprep.subr.mxu0 0.0
        %2341 = vmatpush1.xpose.msra.mxu0 0.0
        %2342 = vmatprep.subr.mxu0 0.0
        %2343 = vmatpush1.xpose.msra.mxu0 0.0
        %2344 = vmatprep.subr.mxu0 0.0
        %2345 = vmatpush1.xpose.msra.mxu0 0.0
        %2346 = vmatprep.subr.mxu0 0.0
        %2347 = vmatpush1.xpose.msra.mxu0 0.0
        %2348 = vmatprep.subr.mxu0 0.0
        %2349 = vmatpush1.xpose.msra.mxu0 0.0
        %2350 = vmatprep.subr.mxu0 0.0
        %2351 = vmatpush1.xpose.msra.mxu0 0.0
        %2352 = vmatprep.subr.mxu0 0.0
        %2353 = vmatpush1.xpose.msra.mxu0 0.0
        %2354 = vmatprep.subr.mxu0 0.0
        %2355 = vmatpush1.xpose.msra.mxu0 0.0
        %2356 = vmatprep.subr.mxu0 0.0
        %2357 = vmatpush1.xpose.msra.mxu0 0.0
        %2358 = vmatprep.subr.mxu0 0.0
        %2359 = vmatpush1.xpose.msra.mxu0 0.0
        %2360 = vmatprep.subr.mxu0 0.0
        %2361 = vmatpush1.xpose.msra.mxu0 0.0
        %2362 = vmatprep.subr.mxu0 0.0
        %2363 = vmatpush1.xpose.msra.mxu0 0.0
        %2364 = vmatprep.subr.mxu0 0.0
        %2365 = vmatpush1.xpose.msra.mxu0 0.0
        %2366 = vmatprep.subr.mxu0 0.0
        %2367 = vmatpush1.xpose.msra.mxu0 0.0
        %2368 = vmatprep.mubr.f32.mxu0 0.0
        %2369 = vmatmul.mubr.f32.gmra.mrb[0].mxu0 %v2300
        %v2370 = vpop.f32.mrb[0].mxu0
        %v2371 = vadd.f32 0.0, %v2370
        %v2372 = vpop.f32.mrb[0].mxu0
        %2373 = vdwg.mxu0
        %2374 = vrot.lane.b32.xlu0 %v2191, 96
        %v2375 = vpop.permute.xlu0 %2374
        %v2376 = vsel %vm539, %v2191, 0
        %v2378 = vsel %vm539, %v2375, 0
        %2380 = vmatprep.subr.mxu0 0.0
        %2381 = vmatpush1.xpose.msra.mxu0 %v2378
        %2382 = vmatprep.subr.mxu0 0.0
        %2383 = vmatpush1.xpose.msra.mxu0 0.0
        %2384 = vmatprep.subr.mxu0 0.0
        %2385 = vmatpush1.xpose.msra.mxu0 0.0
        %2386 = vmatprep.subr.mxu0 0.0
        %2387 = vmatpush1.xpose.msra.mxu0 0.0
        %2388 = vmatprep.subr.mxu0 0.0
        %2389 = vmatpush1.xpose.msra.mxu0 0.0
        %2390 = vmatprep.subr.mxu0 0.0
        %2391 = vmatpush1.xpose.msra.mxu0 0.0
        %2392 = vmatprep.subr.mxu0 0.0
        %2393 = vmatpush1.xpose.msra.mxu0 0.0
        %2394 = vmatprep.subr.mxu0 0.0
        %2395 = vmatpush1.xpose.msra.mxu0 0.0
        %2396 = vmatprep.subr.mxu0 0.0
        %2397 = vmatpush1.xpose.msra.mxu0 0.0
        %2398 = vmatprep.subr.mxu0 0.0
        %2399 = vmatpush1.xpose.msra.mxu0 0.0
        %2400 = vmatprep.subr.mxu0 0.0
        %2401 = vmatpush1.xpose.msra.mxu0 0.0
        %2402 = vmatprep.subr.mxu0 0.0
        %2403 = vmatpush1.xpose.msra.mxu0 0.0
        %2404 = vmatprep.subr.mxu0 0.0
        %2405 = vmatpush1.xpose.msra.mxu0 0.0
        %2406 = vmatprep.subr.mxu0 0.0
        %2407 = vmatpush1.xpose.msra.mxu0 0.0
        %2408 = vmatprep.subr.mxu0 0.0
        %2409 = vmatpush1.xpose.msra.mxu0 0.0
        %2410 = vmatprep.subr.mxu0 0.0
        %2411 = vmatpush1.xpose.msra.mxu0 0.0
        %2412 = vmatprep.subr.mxu0 0.0
        %2413 = vmatpush1.xpose.msra.mxu0 0.0
        %2414 = vmatprep.subr.mxu0 0.0
        %2415 = vmatpush1.xpose.msra.mxu0 0.0
        %2416 = vmatprep.subr.mxu0 0.0
        %2417 = vmatpush1.xpose.msra.mxu0 0.0
        %2418 = vmatprep.subr.mxu0 0.0
        %2419 = vmatpush1.xpose.msra.mxu0 0.0
        %2420 = vmatprep.subr.mxu0 0.0
        %2421 = vmatpush1.xpose.msra.mxu0 0.0
        %2422 = vmatprep.subr.mxu0 0.0
        %2423 = vmatpush1.xpose.msra.mxu0 0.0
        %2424 = vmatprep.subr.mxu0 0.0
        %2425 = vmatpush1.xpose.msra.mxu0 0.0
        %2426 = vmatprep.subr.mxu0 0.0
        %2427 = vmatpush1.xpose.msra.mxu0 0.0
        %2428 = vmatprep.subr.mxu0 0.0
        %2429 = vmatpush1.xpose.msra.mxu0 0.0
        %2430 = vmatprep.subr.mxu0 0.0
        %2431 = vmatpush1.xpose.msra.mxu0 0.0
        %2432 = vmatprep.subr.mxu0 0.0
        %2433 = vmatpush1.xpose.msra.mxu0 0.0
        %2434 = vmatprep.subr.mxu0 0.0
        %2435 = vmatpush1.xpose.msra.mxu0 0.0
        %2436 = vmatprep.subr.mxu0 0.0
        %2437 = vmatpush1.xpose.msra.mxu0 0.0
        %2438 = vmatprep.subr.mxu0 0.0
        %2439 = vmatpush1.xpose.msra.mxu0 0.0
        %2440 = vmatprep.subr.mxu0 0.0
        %2441 = vmatpush1.xpose.msra.mxu0 0.0
        %2442 = vmatprep.subr.mxu0 0.0
        %2443 = vmatpush1.xpose.msra.mxu0 0.0
        %2444 = vmatprep.mubr.f32.mxu0 0.0
        %2445 = vmatmul.mubr.f32.gmra.mrb[0].mxu0 %v2376
        %v2446 = vpop.f32.mrb[0].mxu0
        %v2447 = vadd.f32 0.0, %v2446
        %v2448 = vpop.f32.mrb[0].mxu0
        %2449 = vdwg.mxu0
        %2450 = vrot.lane.b32.xlu0 %v2193, 96
        %v2451 = vpop.permute.xlu0 %2450
        %v2452 = vsel %vm539, %v2193, 0
        %v2454 = vsel %vm539, %v2451, 0
        %2456 = vmatprep.subr.mxu0 0.0
        %2457 = vmatpush1.xpose.msra.mxu0 %v2454
        %2458 = vmatprep.subr.mxu0 0.0
        %2459 = vmatpush1.xpose.msra.mxu0 0.0
        %2460 = vmatprep.subr.mxu0 0.0
        %2461 = vmatpush1.xpose.msra.mxu0 0.0
        %2462 = vmatprep.subr.mxu0 0.0
        %2463 = vmatpush1.xpose.msra.mxu0 0.0
        %2464 = vmatprep.subr.mxu0 0.0
        %2465 = vmatpush1.xpose.msra.mxu0 0.0
        %2466 = vmatprep.subr.mxu0 0.0
        %2467 = vmatpush1.xpose.msra.mxu0 0.0
        %2468 = vmatprep.subr.mxu0 0.0
        %2469 = vmatpush1.xpose.msra.mxu0 0.0
        %2470 = vmatprep.subr.mxu0 0.0
        %2471 = vmatpush1.xpose.msra.mxu0 0.0
        %2472 = vmatprep.subr.mxu0 0.0
        %2473 = vmatpush1.xpose.msra.mxu0 0.0
        %2474 = vmatprep.subr.mxu0 0.0
        %2475 = vmatpush1.xpose.msra.mxu0 0.0
        %2476 = vmatprep.subr.mxu0 0.0
        %2477 = vmatpush1.xpose.msra.mxu0 0.0
        %2478 = vmatprep.subr.mxu0 0.0
        %2479 = vmatpush1.xpose.msra.mxu0 0.0
        %2480 = vmatprep.subr.mxu0 0.0
        %2481 = vmatpush1.xpose.msra.mxu0 0.0
        %2482 = vmatprep.subr.mxu0 0.0
        %2483 = vmatpush1.xpose.msra.mxu0 0.0
        %2484 = vmatprep.subr.mxu0 0.0
        %2485 = vmatpush1.xpose.msra.mxu0 0.0
        %2486 = vmatprep.subr.mxu0 0.0
        %2487 = vmatpush1.xpose.msra.mxu0 0.0
        %2488 = vmatprep.subr.mxu0 0.0
        %2489 = vmatpush1.xpose.msra.mxu0 0.0
        %2490 = vmatprep.subr.mxu0 0.0
        %2491 = vmatpush1.xpose.msra.mxu0 0.0
        %2492 = vmatprep.subr.mxu0 0.0
        %2493 = vmatpush1.xpose.msra.mxu0 0.0
        %2494 = vmatprep.subr.mxu0 0.0
        %2495 = vmatpush1.xpose.msra.mxu0 0.0
        %2496 = vmatprep.subr.mxu0 0.0
        %2497 = vmatpush1.xpose.msra.mxu0 0.0
        %2498 = vmatprep.subr.mxu0 0.0
        %2499 = vmatpush1.xpose.msra.mxu0 0.0
        %2500 = vmatprep.subr.mxu0 0.0
        %2501 = vmatpush1.xpose.msra.mxu0 0.0
        %2502 = vmatprep.subr.mxu0 0.0
        %2503 = vmatpush1.xpose.msra.mxu0 0.0
        %2504 = vmatprep.subr.mxu0 0.0
        %2505 = vmatpush1.xpose.msra.mxu0 0.0
        %2506 = vmatprep.subr.mxu0 0.0
        %2507 = vmatpush1.xpose.msra.mxu0 0.0
        %2508 = vmatprep.subr.mxu0 0.0
        %2509 = vmatpush1.xpose.msra.mxu0 0.0
        %2510 = vmatprep.subr.mxu0 0.0
        %2511 = vmatpush1.xpose.msra.mxu0 0.0
        %2512 = vmatprep.subr.mxu0 0.0
        %2513 = vmatpush1.xpose.msra.mxu0 0.0
        %2514 = vmatprep.subr.mxu0 0.0
        %2515 = vmatpush1.xpose.msra.mxu0 0.0
        %2516 = vmatprep.subr.mxu0 0.0
        %2517 = vmatpush1.xpose.msra.mxu0 0.0
        %2518 = vmatprep.subr.mxu0 0.0
        %2519 = vmatpush1.xpose.msra.mxu0 0.0
        %2520 = vmatprep.mubr.f32.mxu0 0.0
        %2521 = vmatmul.mubr.f32.gmra.mrb[0].mxu0 %v2452
        %v2522 = vpop.f32.mrb[0].mxu0
        %v2523 = vadd.f32 0.0, %v2522
        %v2524 = vpop.f32.mrb[0].mxu0
        %2525 = vdwg.mxu0
        %2526 = vrot.lane.b32.xlu0 %v2195, 96
        %v2527 = vpop.permute.xlu0 %2526
        %v2528 = vsel %vm539, %v2195, 0
        %v2530 = vsel %vm539, %v2527, 0
        %2532 = vmatprep.subr.mxu0 0.0
        %2533 = vmatpush1.xpose.msra.mxu0 %v2530
        %2534 = vmatprep.subr.mxu0 0.0
        %2535 = vmatpush1.xpose.msra.mxu0 0.0
        %2536 = vmatprep.subr.mxu0 0.0
        %2537 = vmatpush1.xpose.msra.mxu0 0.0
        %2538 = vmatprep.subr.mxu0 0.0
        %2539 = vmatpush1.xpose.msra.mxu0 0.0
        %2540 = vmatprep.subr.mxu0 0.0
        %2541 = vmatpush1.xpose.msra.mxu0 0.0
        %2542 = vmatprep.subr.mxu0 0.0
        %2543 = vmatpush1.xpose.msra.mxu0 0.0
        %2544 = vmatprep.subr.mxu0 0.0
        %2545 = vmatpush1.xpose.msra.mxu0 0.0
        %2546 = vmatprep.subr.mxu0 0.0
        %2547 = vmatpush1.xpose.msra.mxu0 0.0
        %2548 = vmatprep.subr.mxu0 0.0
        %2549 = vmatpush1.xpose.msra.mxu0 0.0
        %2550 = vmatprep.subr.mxu0 0.0
        %2551 = vmatpush1.xpose.msra.mxu0 0.0
        %2552 = vmatprep.subr.mxu0 0.0
        %2553 = vmatpush1.xpose.msra.mxu0 0.0
        %2554 = vmatprep.subr.mxu0 0.0
        %2555 = vmatpush1.xpose.msra.mxu0 0.0
        %2556 = vmatprep.subr.mxu0 0.0
        %2557 = vmatpush1.xpose.msra.mxu0 0.0
        %2558 = vmatprep.subr.mxu0 0.0
        %2559 = vmatpush1.xpose.msra.mxu0 0.0
        %2560 = vmatprep.subr.mxu0 0.0
        %2561 = vmatpush1.xpose.msra.mxu0 0.0
        %2562 = vmatprep.subr.mxu0 0.0
        %2563 = vmatpush1.xpose.msra.mxu0 0.0
        %2564 = vmatprep.subr.mxu0 0.0
        %2565 = vmatpush1.xpose.msra.mxu0 0.0
        %2566 = vmatprep.subr.mxu0 0.0
        %2567 = vmatpush1.xpose.msra.mxu0 0.0
        %2568 = vmatprep.subr.mxu0 0.0
        %2569 = vmatpush1.xpose.msra.mxu0 0.0
        %2570 = vmatprep.subr.mxu0 0.0
        %2571 = vmatpush1.xpose.msra.mxu0 0.0
        %2572 = vmatprep.subr.mxu0 0.0
        %2573 = vmatpush1.xpose.msra.mxu0 0.0
        %2574 = vmatprep.subr.mxu0 0.0
        %2575 = vmatpush1.xpose.msra.mxu0 0.0
        %2576 = vmatprep.subr.mxu0 0.0
        %2577 = vmatpush1.xpose.msra.mxu0 0.0
        %2578 = vmatprep.subr.mxu0 0.0
        %2579 = vmatpush1.xpose.msra.mxu0 0.0
        %2580 = vmatprep.subr.mxu0 0.0
        %2581 = vmatpush1.xpose.msra.mxu0 0.0
        %2582 = vmatprep.subr.mxu0 0.0
        %2583 = vmatpush1.xpose.msra.mxu0 0.0
        %2584 = vmatprep.subr.mxu0 0.0
        %2585 = vmatpush1.xpose.msra.mxu0 0.0
        %2586 = vmatprep.subr.mxu0 0.0
        %2587 = vmatpush1.xpose.msra.mxu0 0.0
        %2588 = vmatprep.subr.mxu0 0.0
        %2589 = vmatpush1.xpose.msra.mxu0 0.0
        %2590 = vmatprep.subr.mxu0 0.0
        %2591 = vmatpush1.xpose.msra.mxu0 0.0
        %2592 = vmatprep.subr.mxu0 0.0
        %2593 = vmatpush1.xpose.msra.mxu0 0.0
        %2594 = vmatprep.subr.mxu0 0.0
        %2595 = vmatpush1.xpose.msra.mxu0 0.0
        %2596 = vmatprep.mubr.f32.mxu0 0.0
        %2597 = vmatmul.mubr.f32.gmra.mrb[0].mxu0 %v2528
        %v2598 = vpop.f32.mrb[0].mxu0
        %v2599 = vadd.f32 0.0, %v2598
        %v2600 = vpop.f32.mrb[0].mxu0
        %2601 = vdwg.mxu0
        %2602 = vrot.lane.b32.xlu0 %v2197, 96
        %v2603 = vpop.permute.xlu0 %2602
        %v2604 = vsel %vm539, %v2197, 0
        %v2606 = vsel %vm539, %v2603, 0
        %2608 = vmatprep.subr.mxu0 0.0
        %2609 = vmatpush1.xpose.msra.mxu0 %v2606
        %2610 = vmatprep.subr.mxu0 0.0
        %2611 = vmatpush1.xpose.msra.mxu0 0.0
        %2612 = vmatprep.subr.mxu0 0.0
        %2613 = vmatpush1.xpose.msra.mxu0 0.0
        %2614 = vmatprep.subr.mxu0 0.0
        %2615 = vmatpush1.xpose.msra.mxu0 0.0
        %2616 = vmatprep.subr.mxu0 0.0
        %2617 = vmatpush1.xpose.msra.mxu0 0.0
        %2618 = vmatprep.subr.mxu0 0.0
        %2619 = vmatpush1.xpose.msra.mxu0 0.0
        %2620 = vmatprep.subr.mxu0 0.0
        %2621 = vmatpush1.xpose.msra.mxu0 0.0
        %2622 = vmatprep.subr.mxu0 0.0
        %2623 = vmatpush1.xpose.msra.mxu0 0.0
        %2624 = vmatprep.subr.mxu0 0.0
        %2625 = vmatpush1.xpose.msra.mxu0 0.0
        %2626 = vmatprep.subr.mxu0 0.0
        %2627 = vmatpush1.xpose.msra.mxu0 0.0
        %2628 = vmatprep.subr.mxu0 0.0
        %2629 = vmatpush1.xpose.msra.mxu0 0.0
        %2630 = vmatprep.subr.mxu0 0.0
        %2631 = vmatpush1.xpose.msra.mxu0 0.0
        %2632 = vmatprep.subr.mxu0 0.0
        %2633 = vmatpush1.xpose.msra.mxu0 0.0
        %2634 = vmatprep.subr.mxu0 0.0
        %2635 = vmatpush1.xpose.msra.mxu0 0.0
        %2636 = vmatprep.subr.mxu0 0.0
        %2637 = vmatpush1.xpose.msra.mxu0 0.0
        %2638 = vmatprep.subr.mxu0 0.0
        %2639 = vmatpush1.xpose.msra.mxu0 0.0
        %2640 = vmatprep.subr.mxu0 0.0
        %2641 = vmatpush1.xpose.msra.mxu0 0.0
        %2642 = vmatprep.subr.mxu0 0.0
        %2643 = vmatpush1.xpose.msra.mxu0 0.0
        %2644 = vmatprep.subr.mxu0 0.0
        %2645 = vmatpush1.xpose.msra.mxu0 0.0
        %2646 = vmatprep.subr.mxu0 0.0
        %2647 = vmatpush1.xpose.msra.mxu0 0.0
        %2648 = vmatprep.subr.mxu0 0.0
        %2649 = vmatpush1.xpose.msra.mxu0 0.0
        %2650 = vmatprep.subr.mxu0 0.0
        %2651 = vmatpush1.xpose.msra.mxu0 0.0
        %2652 = vmatprep.subr.mxu0 0.0
        %2653 = vmatpush1.xpose.msra.mxu0 0.0
        %2654 = vmatprep.subr.mxu0 0.0
        %2655 = vmatpush1.xpose.msra.mxu0 0.0
        %2656 = vmatprep.subr.mxu0 0.0
        %2657 = vmatpush1.xpose.msra.mxu0 0.0
        %2658 = vmatprep.subr.mxu0 0.0
        %2659 = vmatpush1.xpose.msra.mxu0 0.0
        %2660 = vmatprep.subr.mxu0 0.0
        %2661 = vmatpush1.xpose.msra.mxu0 0.0
        %2662 = vmatprep.subr.mxu0 0.0
        %2663 = vmatpush1.xpose.msra.mxu0 0.0
        %2664 = vmatprep.subr.mxu0 0.0
        %2665 = vmatpush1.xpose.msra.mxu0 0.0
        %2666 = vmatprep.subr.mxu0 0.0
        %2667 = vmatpush1.xpose.msra.mxu0 0.0
        %2668 = vmatprep.subr.mxu0 0.0
        %2669 = vmatpush1.xpose.msra.mxu0 0.0
        %2670 = vmatprep.subr.mxu0 0.0
        %2671 = vmatpush1.xpose.msra.mxu0 0.0
        %2672 = vmatprep.mubr.f32.mxu0 0.0
        %2673 = vmatmul.mubr.f32.gmra.mrb[0].mxu0 %v2604
        %v2674 = vpop.f32.mrb[0].mxu0
        %v2675 = vadd.f32 0.0, %v2674
        %v2676 = vpop.f32.mrb[0].mxu0
        %2677 = vdwg.mxu0
        %2678 = vrot.lane.b32.xlu0 %v2199, 96
        %v2679 = vpop.permute.xlu0 %2678
        %v2680 = vsel %vm539, %v2199, 0
        %v2682 = vsel %vm539, %v2679, 0
        %2684 = vmatprep.subr.mxu0 0.0
        %2685 = vmatpush1.xpose.msra.mxu0 %v2682
        %2686 = vmatprep.subr.mxu0 0.0
        %2687 = vmatpush1.xpose.msra.mxu0 0.0
        %2688 = vmatprep.subr.mxu0 0.0
        %2689 = vmatpush1.xpose.msra.mxu0 0.0
        %2690 = vmatprep.subr.mxu0 0.0
        %2691 = vmatpush1.xpose.msra.mxu0 0.0
        %2692 = vmatprep.subr.mxu0 0.0
        %2693 = vmatpush1.xpose.msra.mxu0 0.0
        %2694 = vmatprep.subr.mxu0 0.0
        %2695 = vmatpush1.xpose.msra.mxu0 0.0
        %2696 = vmatprep.subr.mxu0 0.0
        %2697 = vmatpush1.xpose.msra.mxu0 0.0
        %2698 = vmatprep.subr.mxu0 0.0
        %2699 = vmatpush1.xpose.msra.mxu0 0.0
        %2700 = vmatprep.subr.mxu0 0.0
        %2701 = vmatpush1.xpose.msra.mxu0 0.0
        %2702 = vmatprep.subr.mxu0 0.0
        %2703 = vmatpush1.xpose.msra.mxu0 0.0
        %2704 = vmatprep.subr.mxu0 0.0
        %2705 = vmatpush1.xpose.msra.mxu0 0.0
        %2706 = vmatprep.subr.mxu0 0.0
        %2707 = vmatpush1.xpose.msra.mxu0 0.0
        %2708 = vmatprep.subr.mxu0 0.0
        %2709 = vmatpush1.xpose.msra.mxu0 0.0
        %2710 = vmatprep.subr.mxu0 0.0
        %2711 = vmatpush1.xpose.msra.mxu0 0.0
        %2712 = vmatprep.subr.mxu0 0.0
        %2713 = vmatpush1.xpose.msra.mxu0 0.0
        %2714 = vmatprep.subr.mxu0 0.0
        %2715 = vmatpush1.xpose.msra.mxu0 0.0
        %2716 = vmatprep.subr.mxu0 0.0
        %2717 = vmatpush1.xpose.msra.mxu0 0.0
        %2718 = vmatprep.subr.mxu0 0.0
        %2719 = vmatpush1.xpose.msra.mxu0 0.0
        %2720 = vmatprep.subr.mxu0 0.0
        %2721 = vmatpush1.xpose.msra.mxu0 0.0
        %2722 = vmatprep.subr.mxu0 0.0
        %2723 = vmatpush1.xpose.msra.mxu0 0.0
        %2724 = vmatprep.subr.mxu0 0.0
        %2725 = vmatpush1.xpose.msra.mxu0 0.0
        %2726 = vmatprep.subr.mxu0 0.0
        %2727 = vmatpush1.xpose.msra.mxu0 0.0
        %2728 = vmatprep.subr.mxu0 0.0
        %2729 = vmatpush1.xpose.msra.mxu0 0.0
        %2730 = vmatprep.subr.mxu0 0.0
        %2731 = vmatpush1.xpose.msra.mxu0 0.0
        %2732 = vmatprep.subr.mxu0 0.0
        %2733 = vmatpush1.xpose.msra.mxu0 0.0
        %2734 = vmatprep.subr.mxu0 0.0
        %2735 = vmatpush1.xpose.msra.mxu0 0.0
        %2736 = vmatprep.subr.mxu0 0.0
        %2737 = vmatpush1.xpose.msra.mxu0 0.0
        %2738 = vmatprep.subr.mxu0 0.0
        %2739 = vmatpush1.xpose.msra.mxu0 0.0
        %2740 = vmatprep.subr.mxu0 0.0
        %2741 = vmatpush1.xpose.msra.mxu0 0.0
        %2742 = vmatprep.subr.mxu0 0.0
        %2743 = vmatpush1.xpose.msra.mxu0 0.0
        %2744 = vmatprep.subr.mxu0 0.0
        %2745 = vmatpush1.xpose.msra.mxu0 0.0
        %2746 = vmatprep.subr.mxu0 0.0
        %2747 = vmatpush1.xpose.msra.mxu0 0.0
        %2748 = vmatprep.mubr.f32.mxu0 0.0
        %2749 = vmatmul.mubr.f32.gmra.mrb[0].mxu0 %v2680
        %v2750 = vpop.f32.mrb[0].mxu0
        %v2751 = vadd.f32 0.0, %v2750
        %v2752 = vpop.f32.mrb[0].mxu0
        %2753 = vdwg.mxu0
        %2754 = vrot.lane.b32.xlu0 %v2201, 96
        %v2755 = vpop.permute.xlu0 %2754
        %v2756 = vsel %vm539, %v2201, 0
        %v2758 = vsel %vm539, %v2755, 0
        %2760 = vmatprep.subr.mxu0 0.0
        %2761 = vmatpush1.xpose.msra.mxu0 %v2758
        %2762 = vmatprep.subr.mxu0 0.0
        %2763 = vmatpush1.xpose.msra.mxu0 0.0
        %2764 = vmatprep.subr.mxu0 0.0
        %2765 = vmatpush1.xpose.msra.mxu0 0.0
        %2766 = vmatprep.subr.mxu0 0.0
        %2767 = vmatpush1.xpose.msra.mxu0 0.0
        %2768 = vmatprep.subr.mxu0 0.0
        %2769 = vmatpush1.xpose.msra.mxu0 0.0
        %2770 = vmatprep.subr.mxu0 0.0
        %2771 = vmatpush1.xpose.msra.mxu0 0.0
        %2772 = vmatprep.subr.mxu0 0.0
        %2773 = vmatpush1.xpose.msra.mxu0 0.0
        %2774 = vmatprep.subr.mxu0 0.0
        %2775 = vmatpush1.xpose.msra.mxu0 0.0
        %2776 = vmatprep.subr.mxu0 0.0
        %2777 = vmatpush1.xpose.msra.mxu0 0.0
        %2778 = vmatprep.subr.mxu0 0.0
        %2779 = vmatpush1.xpose.msra.mxu0 0.0
        %2780 = vmatprep.subr.mxu0 0.0
        %2781 = vmatpush1.xpose.msra.mxu0 0.0
        %2782 = vmatprep.subr.mxu0 0.0
        %2783 = vmatpush1.xpose.msra.mxu0 0.0
        %2784 = vmatprep.subr.mxu0 0.0
        %2785 = vmatpush1.xpose.msra.mxu0 0.0
        %2786 = vmatprep.subr.mxu0 0.0
        %2787 = vmatpush1.xpose.msra.mxu0 0.0
        %2788 = vmatprep.subr.mxu0 0.0
        %2789 = vmatpush1.xpose.msra.mxu0 0.0
        %2790 = vmatprep.subr.mxu0 0.0
        %2791 = vmatpush1.xpose.msra.mxu0 0.0
        %2792 = vmatprep.subr.mxu0 0.0
        %2793 = vmatpush1.xpose.msra.mxu0 0.0
        %2794 = vmatprep.subr.mxu0 0.0
        %2795 = vmatpush1.xpose.msra.mxu0 0.0
        %2796 = vmatprep.subr.mxu0 0.0
        %2797 = vmatpush1.xpose.msra.mxu0 0.0
        %2798 = vmatprep.subr.mxu0 0.0
        %2799 = vmatpush1.xpose.msra.mxu0 0.0
        %2800 = vmatprep.subr.mxu0 0.0
        %2801 = vmatpush1.xpose.msra.mxu0 0.0
        %2802 = vmatprep.subr.mxu0 0.0
        %2803 = vmatpush1.xpose.msra.mxu0 0.0
        %2804 = vmatprep.subr.mxu0 0.0
        %2805 = vmatpush1.xpose.msra.mxu0 0.0
        %2806 = vmatprep.subr.mxu0 0.0
        %2807 = vmatpush1.xpose.msra.mxu0 0.0
        %2808 = vmatprep.subr.mxu0 0.0
        %2809 = vmatpush1.xpose.msra.mxu0 0.0
        %2810 = vmatprep.subr.mxu0 0.0
        %2811 = vmatpush1.xpose.msra.mxu0 0.0
        %2812 = vmatprep.subr.mxu0 0.0
        %2813 = vmatpush1.xpose.msra.mxu0 0.0
        %2814 = vmatprep.subr.mxu0 0.0
        %2815 = vmatpush1.xpose.msra.mxu0 0.0
        %2816 = vmatprep.subr.mxu0 0.0
        %2817 = vmatpush1.xpose.msra.mxu0 0.0
        %2818 = vmatprep.subr.mxu0 0.0
        %2819 = vmatpush1.xpose.msra.mxu0 0.0
        %2820 = vmatprep.subr.mxu0 0.0
        %2821 = vmatpush1.xpose.msra.mxu0 0.0
        %2822 = vmatprep.subr.mxu0 0.0
        %2823 = vmatpush1.xpose.msra.mxu0 0.0
        %2824 = vmatprep.mubr.f32.mxu0 0.0
        %2825 = vmatmul.mubr.f32.gmra.mrb[0].mxu0 %v2756
        %v2826 = vpop.f32.mrb[0].mxu0
        %v2827 = vadd.f32 0.0, %v2826
        %v2828 = vpop.f32.mrb[0].mxu0
        %2829 = vdwg.mxu0
        %v2830 = vmul.f32 %v2295, 0.35355338
        %v2831 = vmul.f32 %v2371, 0.35355338
        %v2832 = vmul.f32 %v2447, 0.35355338
        %v2833 = vmul.f32 %v2523, 0.35355338
        %v2834 = vmul.f32 %v2599, 0.35355338
        %v2835 = vmul.f32 %v2675, 0.35355338
        %v2836 = vmul.f32 %v2751, 0.35355338
        %v2837 = vmul.f32 %v2827, 0.35355338
        %v2838 = vsel %vm539, %v2830, -inf
        %2839 = vmax.xlane.f32.xlu0 %v2838
        %v2840 = vpop.xlane.xlu0 %2839
        %v2841 = vsel %vm539, %v2831, -inf
        %2842 = vmax.xlane.f32.xlu0 %v2841
        %v2843 = vpop.xlane.xlu0 %2842
        %v2844 = vsel %vm539, %v2832, -inf
        %2845 = vmax.xlane.f32.xlu0 %v2844
        %v2846 = vpop.xlane.xlu0 %2845
        %v2847 = vsel %vm539, %v2833, -inf
        %2848 = vmax.xlane.f32.xlu0 %v2847
        %v2849 = vpop.xlane.xlu0 %2848
        %v2850 = vsel %vm539, %v2834, -inf
        %2851 = vmax.xlane.f32.xlu0 %v2850
        %v2852 = vpop.xlane.xlu0 %2851
        %v2853 = vsel %vm539, %v2835, -inf
        %2854 = vmax.xlane.f32.xlu0 %v2853
        %v2855 = vpop.xlane.xlu0 %2854
        %v2856 = vsel %vm539, %v2836, -inf
        %2857 = vmax.xlane.f32.xlu0 %v2856
        %v2858 = vpop.xlane.xlu0 %2857
        %v2859 = vsel %vm539, %v2837, -inf
        %2860 = vmax.xlane.f32.xlu0 %v2859
        %v2861 = vpop.xlane.xlu0 %2860
        %v2862 = vsub.f32 %v2830, %v2840
        %v2863 = vsub.f32 %v2831, %v2843
        %v2864 = vsub.f32 %v2832, %v2846
        %v2865 = vsub.f32 %v2833, %v2849
        %v2866 = vsub.f32 %v2834, %v2852
        %v2867 = vsub.f32 %v2835, %v2855
        %v2868 = vsub.f32 %v2836, %v2858
        %v2869 = vsub.f32 %v2837, %v2861
        %v2870 = vmul.f32 %v2862, 1.442695
        %v2871 = vpow.pop %v2870
        %v2872 = vmul.f32 %v2863, 1.442695
        %v2873 = vpow.pop %v2872
        %v2874 = vmul.f32 %v2864, 1.442695
        %v2875 = vpow.pop %v2874
        %v2876 = vmul.f32 %v2865, 1.442695
        %v2877 = vpow.pop %v2876
        %v2878 = vmul.f32 %v2866, 1.442695
        %v2879 = vpow.pop %v2878
        %v2880 = vmul.f32 %v2867, 1.442695
        %v2881 = vpow.pop %v2880
        %v2882 = vmul.f32 %v2868, 1.442695
        %v2883 = vpow.pop %v2882
        %v2884 = vmul.f32 %v2869, 1.442695
        %v2885 = vpow.pop %v2884
        %v2886 = vsel %vm539, %v2871, 0.0
        %2887 = vadd.xlane.f32.xlu0 %v2886
        %v2888 = vpop.xlane.xlu0 %2887
        %v2889 = vsel %vm539, %v2873, 0.0
        %2890 = vadd.xlane.f32.xlu0 %v2889
        %v2891 = vpop.xlane.xlu0 %2890
        %v2892 = vsel %vm539, %v2875, 0.0
        %2893 = vadd.xlane.f32.xlu0 %v2892
        %v2894 = vpop.xlane.xlu0 %2893
        %v2895 = vsel %vm539, %v2877, 0.0
        %2896 = vadd.xlane.f32.xlu0 %v2895
        %v2897 = vpop.xlane.xlu0 %2896
        %v2898 = vsel %vm539, %v2879, 0.0
        %2899 = vadd.xlane.f32.xlu0 %v2898
        %v2900 = vpop.xlane.xlu0 %2899
        %v2901 = vsel %vm539, %v2881, 0.0
        %2902 = vadd.xlane.f32.xlu0 %v2901
        %v2903 = vpop.xlane.xlu0 %2902
        %v2904 = vsel %vm539, %v2883, 0.0
        %2905 = vadd.xlane.f32.xlu0 %v2904
        %v2906 = vpop.xlane.xlu0 %2905
        %v2907 = vsel %vm539, %v2885, 0.0
        %2908 = vadd.xlane.f32.xlu0 %v2907
        %v2909 = vpop.xlane.xlu0 %2908
        %v2910 = vrcp.pop %v2888
        %v2911 = vrcp.pop %v2891
        %v2912 = vrcp.pop %v2894
        %v2913 = vrcp.pop %v2897
        %v2914 = vrcp.pop %v2900
        %v2915 = vrcp.pop %v2903
        %v2916 = vrcp.pop %v2906
        %v2917 = vrcp.pop %v2909
        %v2918 = vmul.f32 %v2871, %v2910
        %v2919 = vmul.f32 %v2873, %v2911
        %v2920 = vmul.f32 %v2875, %v2912
        %v2921 = vmul.f32 %v2877, %v2913
        %v2922 = vmul.f32 %v2879, %v2914
        %v2923 = vmul.f32 %v2881, %v2915
        %v2924 = vmul.f32 %v2883, %v2916
        %v2925 = vmul.f32 %v2885, %v2917
        %v2927 = vsel %vm539, %v2918, 0
        %2929 = vmatprep.subr.mxu0 0.0
        %2930 = vmatpush1.msra.mxu0 %v2180
        %2931 = vmatprep.subr.mxu0 0.0
        %2932 = vmatpush1.msra.mxu0 0.0
        %2933 = vmatprep.subr.mxu0 0.0
        %2934 = vmatpush1.msra.mxu0 0.0
        %2935 = vmatprep.subr.mxu0 0.0
        %2936 = vmatpush1.msra.mxu0 0.0
        %2937 = vmatprep.subr.mxu0 0.0
        %2938 = vmatpush1.msra.mxu0 0.0
        %2939 = vmatprep.subr.mxu0 0.0
        %2940 = vmatpush1.msra.mxu0 0.0
        %2941 = vmatprep.subr.mxu0 0.0
        %2942 = vmatpush1.msra.mxu0 0.0
        %2943 = vmatprep.subr.mxu0 0.0
        %2944 = vmatpush1.msra.mxu0 0.0
        %2945 = vmatprep.subr.mxu0 0.0
        %2946 = vmatpush1.msra.mxu0 0.0
        %2947 = vmatprep.subr.mxu0 0.0
        %2948 = vmatpush1.msra.mxu0 0.0
        %2949 = vmatprep.subr.mxu0 0.0
        %2950 = vmatpush1.msra.mxu0 0.0
        %2951 = vmatprep.subr.mxu0 0.0
        %2952 = vmatpush1.msra.mxu0 0.0
        %2953 = vmatprep.subr.mxu0 0.0
        %2954 = vmatpush1.msra.mxu0 0.0
        %2955 = vmatprep.subr.mxu0 0.0
        %2956 = vmatpush1.msra.mxu0 0.0
        %2957 = vmatprep.subr.mxu0 0.0
        %2958 = vmatpush1.msra.mxu0 0.0
        %2959 = vmatprep.subr.mxu0 0.0
        %2960 = vmatpush1.msra.mxu0 0.0
        %2961 = vmatprep.subr.mxu0 0.0
        %2962 = vmatpush1.msra.mxu0 0.0
        %2963 = vmatprep.subr.mxu0 0.0
        %2964 = vmatpush1.msra.mxu0 0.0
        %2965 = vmatprep.subr.mxu0 0.0
        %2966 = vmatpush1.msra.mxu0 0.0
        %2967 = vmatprep.subr.mxu0 0.0
        %2968 = vmatpush1.msra.mxu0 0.0
        %2969 = vmatprep.subr.mxu0 0.0
        %2970 = vmatpush1.msra.mxu0 0.0
        %2971 = vmatprep.subr.mxu0 0.0
        %2972 = vmatpush1.msra.mxu0 0.0
        %2973 = vmatprep.subr.mxu0 0.0
        %2974 = vmatpush1.msra.mxu0 0.0
        %2975 = vmatprep.subr.mxu0 0.0
        %2976 = vmatpush1.msra.mxu0 0.0
        %2977 = vmatprep.subr.mxu0 0.0
        %2978 = vmatpush1.msra.mxu0 0.0
        %2979 = vmatprep.subr.mxu0 0.0
        %2980 = vmatpush1.msra.mxu0 0.0
        %2981 = vmatprep.subr.mxu0 0.0
        %2982 = vmatpush1.msra.mxu0 0.0
        %2983 = vmatprep.subr.mxu0 0.0
        %2984 = vmatpush1.msra.mxu0 0.0
        %2985 = vmatprep.subr.mxu0 0.0
        %2986 = vmatpush1.msra.mxu0 0.0
        %2987 = vmatprep.subr.mxu0 0.0
        %2988 = vmatpush1.msra.mxu0 0.0
        %2989 = vmatprep.subr.mxu0 0.0
        %2990 = vmatpush1.msra.mxu0 0.0
        %2991 = vmatprep.subr.mxu0 0.0
        %2992 = vmatpush1.msra.mxu0 0.0
        %2993 = vmatprep.mubr.f32.mxu0 0.0
        %2994 = vmatmul.mubr.f32.gmra.mrb[0].mxu0 %v2927
        %v2995 = vpop.f32.mrb[0].mxu0
        %v2996 = vadd.f32 0.0, %v2995
        %v2997 = vpop.f32.mrb[0].mxu0
        %2998 = vdwg.mxu0
        %v3000 = vsel %vm539, %v2919, 0
        %3002 = vmatprep.subr.mxu0 0.0
        %3003 = vmatpush1.msra.mxu0 %v2185
        %3004 = vmatprep.subr.mxu0 0.0
        %3005 = vmatpush1.msra.mxu0 0.0
        %3006 = vmatprep.subr.mxu0 0.0
        %3007 = vmatpush1.msra.mxu0 0.0
        %3008 = vmatprep.subr.mxu0 0.0
        %3009 = vmatpush1.msra.mxu0 0.0
        %3010 = vmatprep.subr.mxu0 0.0
        %3011 = vmatpush1.msra.mxu0 0.0
        %3012 = vmatprep.subr.mxu0 0.0
        %3013 = vmatpush1.msra.mxu0 0.0
        %3014 = vmatprep.subr.mxu0 0.0
        %3015 = vmatpush1.msra.mxu0 0.0
        %3016 = vmatprep.subr.mxu0 0.0
        %3017 = vmatpush1.msra.mxu0 0.0
        %3018 = vmatprep.subr.mxu0 0.0
        %3019 = vmatpush1.msra.mxu0 0.0
        %3020 = vmatprep.subr.mxu0 0.0
        %3021 = vmatpush1.msra.mxu0 0.0
        %3022 = vmatprep.subr.mxu0 0.0
        %3023 = vmatpush1.msra.mxu0 0.0
        %3024 = vmatprep.subr.mxu0 0.0
        %3025 = vmatpush1.msra.mxu0 0.0
        %3026 = vmatprep.subr.mxu0 0.0
        %3027 = vmatpush1.msra.mxu0 0.0
        %3028 = vmatprep.subr.mxu0 0.0
        %3029 = vmatpush1.msra.mxu0 0.0
        %3030 = vmatprep.subr.mxu0 0.0
        %3031 = vmatpush1.msra.mxu0 0.0
        %3032 = vmatprep.subr.mxu0 0.0
        %3033 = vmatpush1.msra.mxu0 0.0
        %3034 = vmatprep.subr.mxu0 0.0
        %3035 = vmatpush1.msra.mxu0 0.0
        %3036 = vmatprep.subr.mxu0 0.0
        %3037 = vmatpush1.msra.mxu0 0.0
        %3038 = vmatprep.subr.mxu0 0.0
        %3039 = vmatpush1.msra.mxu0 0.0
        %3040 = vmatprep.subr.mxu0 0.0
        %3041 = vmatpush1.msra.mxu0 0.0
        %3042 = vmatprep.subr.mxu0 0.0
        %3043 = vmatpush1.msra.mxu0 0.0
        %3044 = vmatprep.subr.mxu0 0.0
        %3045 = vmatpush1.msra.mxu0 0.0
        %3046 = vmatprep.subr.mxu0 0.0
        %3047 = vmatpush1.msra.mxu0 0.0
        %3048 = vmatprep.subr.mxu0 0.0
        %3049 = vmatpush1.msra.mxu0 0.0
        %3050 = vmatprep.subr.mxu0 0.0
        %3051 = vmatpush1.msra.mxu0 0.0
        %3052 = vmatprep.subr.mxu0 0.0
        %3053 = vmatpush1.msra.mxu0 0.0
        %3054 = vmatprep.subr.mxu0 0.0
        %3055 = vmatpush1.msra.mxu0 0.0
        %3056 = vmatprep.subr.mxu0 0.0
        %3057 = vmatpush1.msra.mxu0 0.0
        %3058 = vmatprep.subr.mxu0 0.0
        %3059 = vmatpush1.msra.mxu0 0.0
        %3060 = vmatprep.subr.mxu0 0.0
        %3061 = vmatpush1.msra.mxu0 0.0
        %3062 = vmatprep.subr.mxu0 0.0
        %3063 = vmatpush1.msra.mxu0 0.0
        %3064 = vmatprep.subr.mxu0 0.0
        %3065 = vmatpush1.msra.mxu0 0.0
        %3066 = vmatprep.mubr.f32.mxu0 0.0
        %3067 = vmatmul.mubr.f32.gmra.mrb[0].mxu0 %v3000
        %v3068 = vpop.f32.mrb[0].mxu0
        %v3069 = vadd.f32 0.0, %v3068
        %v3070 = vpop.f32.mrb[0].mxu0
        %3071 = vdwg.mxu0
        %v3073 = vsel %vm539, %v2920, 0
        %3075 = vmatprep.subr.mxu0 0.0
        %3076 = vmatpush1.msra.mxu0 %v2205
        %3077 = vmatprep.subr.mxu0 0.0
        %3078 = vmatpush1.msra.mxu0 0.0
        %3079 = vmatprep.subr.mxu0 0.0
        %3080 = vmatpush1.msra.mxu0 0.0
        %3081 = vmatprep.subr.mxu0 0.0
        %3082 = vmatpush1.msra.mxu0 0.0
        %3083 = vmatprep.subr.mxu0 0.0
        %3084 = vmatpush1.msra.mxu0 0.0
        %3085 = vmatprep.subr.mxu0 0.0
        %3086 = vmatpush1.msra.mxu0 0.0
        %3087 = vmatprep.subr.mxu0 0.0
        %3088 = vmatpush1.msra.mxu0 0.0
        %3089 = vmatprep.subr.mxu0 0.0
        %3090 = vmatpush1.msra.mxu0 0.0
        %3091 = vmatprep.subr.mxu0 0.0
        %3092 = vmatpush1.msra.mxu0 0.0
        %3093 = vmatprep.subr.mxu0 0.0
        %3094 = vmatpush1.msra.mxu0 0.0
        %3095 = vmatprep.subr.mxu0 0.0
        %3096 = vmatpush1.msra.mxu0 0.0
        %3097 = vmatprep.subr.mxu0 0.0
        %3098 = vmatpush1.msra.mxu0 0.0
        %3099 = vmatprep.subr.mxu0 0.0
        %3100 = vmatpush1.msra.mxu0 0.0
        %3101 = vmatprep.subr.mxu0 0.0
        %3102 = vmatpush1.msra.mxu0 0.0
        %3103 = vmatprep.subr.mxu0 0.0
        %3104 = vmatpush1.msra.mxu0 0.0
        %3105 = vmatprep.subr.mxu0 0.0
        %3106 = vmatpush1.msra.mxu0 0.0
        %3107 = vmatprep.subr.mxu0 0.0
        %3108 = vmatpush1.msra.mxu0 0.0
        %3109 = vmatprep.subr.mxu0 0.0
        %3110 = vmatpush1.msra.mxu0 0.0
        %3111 = vmatprep.subr.mxu0 0.0
        %3112 = vmatpush1.msra.mxu0 0.0
        %3113 = vmatprep.subr.mxu0 0.0
        %3114 = vmatpush1.msra.mxu0 0.0
        %3115 = vmatprep.subr.mxu0 0.0
        %3116 = vmatpush1.msra.mxu0 0.0
        %3117 = vmatprep.subr.mxu0 0.0
        %3118 = vmatpush1.msra.mxu0 0.0
        %3119 = vmatprep.subr.mxu0 0.0
        %3120 = vmatpush1.msra.mxu0 0.0
        %3121 = vmatprep.subr.mxu0 0.0
        %3122 = vmatpush1.msra.mxu0 0.0
        %3123 = vmatprep.subr.mxu0 0.0
        %3124 = vmatpush1.msra.mxu0 0.0
        %3125 = vmatprep.subr.mxu0 0.0
        %3126 = vmatpush1.msra.mxu0 0.0
        %3127 = vmatprep.subr.mxu0 0.0
        %3128 = vmatpush1.msra.mxu0 0.0
        %3129 = vmatprep.subr.mxu0 0.0
        %3130 = vmatpush1.msra.mxu0 0.0
        %3131 = vmatprep.subr.mxu0 0.0
        %3132 = vmatpush1.msra.mxu0 0.0
        %3133 = vmatprep.subr.mxu0 0.0
        %3134 = vmatpush1.msra.mxu0 0.0
        %3135 = vmatprep.subr.mxu0 0.0
        %3136 = vmatpush1.msra.mxu0 0.0
        %3137 = vmatprep.subr.mxu0 0.0
        %3138 = vmatpush1.msra.mxu0 0.0
        %3139 = vmatprep.mubr.f32.mxu0 0.0
        %3140 = vmatmul.mubr.f32.gmra.mrb[0].mxu0 %v3073
        %v3141 = vpop.f32.mrb[0].mxu0
        %v3142 = vadd.f32 0.0, %v3141
        %v3143 = vpop.f32.mrb[0].mxu0
        %3144 = vdwg.mxu0
        %v3146 = vsel %vm539, %v2921, 0
        %3148 = vmatprep.subr.mxu0 0.0
        %3149 = vmatpush1.msra.mxu0 %v2207
        %3150 = vmatprep.subr.mxu0 0.0
        %3151 = vmatpush1.msra.mxu0 0.0
        %3152 = vmatprep.subr.mxu0 0.0
        %3153 = vmatpush1.msra.mxu0 0.0
        %3154 = vmatprep.subr.mxu0 0.0
        %3155 = vmatpush1.msra.mxu0 0.0
        %3156 = vmatprep.subr.mxu0 0.0
        %3157 = vmatpush1.msra.mxu0 0.0
        %3158 = vmatprep.subr.mxu0 0.0
        %3159 = vmatpush1.msra.mxu0 0.0
        %3160 = vmatprep.subr.mxu0 0.0
        %3161 = vmatpush1.msra.mxu0 0.0
        %3162 = vmatprep.subr.mxu0 0.0
        %3163 = vmatpush1.msra.mxu0 0.0
        %3164 = vmatprep.subr.mxu0 0.0
        %3165 = vmatpush1.msra.mxu0 0.0
        %3166 = vmatprep.subr.mxu0 0.0
        %3167 = vmatpush1.msra.mxu0 0.0
        %3168 = vmatprep.subr.mxu0 0.0
        %3169 = vmatpush1.msra.mxu0 0.0
        %3170 = vmatprep.subr.mxu0 0.0
        %3171 = vmatpush1.msra.mxu0 0.0
        %3172 = vmatprep.subr.mxu0 0.0
        %3173 = vmatpush1.msra.mxu0 0.0
        %3174 = vmatprep.subr.mxu0 0.0
        %3175 = vmatpush1.msra.mxu0 0.0
        %3176 = vmatprep.subr.mxu0 0.0
        %3177 = vmatpush1.msra.mxu0 0.0
        %3178 = vmatprep.subr.mxu0 0.0
        %3179 = vmatpush1.msra.mxu0 0.0
        %3180 = vmatprep.subr.mxu0 0.0
        %3181 = vmatpush1.msra.mxu0 0.0
        %3182 = vmatprep.subr.mxu0 0.0
        %3183 = vmatpush1.msra.mxu0 0.0
        %3184 = vmatprep.subr.mxu0 0.0
        %3185 = vmatpush1.msra.mxu0 0.0
        %3186 = vmatprep.subr.mxu0 0.0
        %3187 = vmatpush1.msra.mxu0 0.0
        %3188 = vmatprep.subr.mxu0 0.0
        %3189 = vmatpush1.msra.mxu0 0.0
        %3190 = vmatprep.subr.mxu0 0.0
        %3191 = vmatpush1.msra.mxu0 0.0
        %3192 = vmatprep.subr.mxu0 0.0
        %3193 = vmatpush1.msra.mxu0 0.0
        %3194 = vmatprep.subr.mxu0 0.0
        %3195 = vmatpush1.msra.mxu0 0.0
        %3196 = vmatprep.subr.mxu0 0.0
        %3197 = vmatpush1.msra.mxu0 0.0
        %3198 = vmatprep.subr.mxu0 0.0
        %3199 = vmatpush1.msra.mxu0 0.0
        %3200 = vmatprep.subr.mxu0 0.0
        %3201 = vmatpush1.msra.mxu0 0.0
        %3202 = vmatprep.subr.mxu0 0.0
        %3203 = vmatpush1.msra.mxu0 0.0
        %3204 = vmatprep.subr.mxu0 0.0
        %3205 = vmatpush1.msra.mxu0 0.0
        %3206 = vmatprep.subr.mxu0 0.0
        %3207 = vmatpush1.msra.mxu0 0.0
        %3208 = vmatprep.subr.mxu0 0.0
        %3209 = vmatpush1.msra.mxu0 0.0
        %3210 = vmatprep.subr.mxu0 0.0
        %3211 = vmatpush1.msra.mxu0 0.0
        %3212 = vmatprep.mubr.f32.mxu0 0.0
        %3213 = vmatmul.mubr.f32.gmra.mrb[0].mxu0 %v3146
        %v3214 = vpop.f32.mrb[0].mxu0
        %v3215 = vadd.f32 0.0, %v3214
        %v3216 = vpop.f32.mrb[0].mxu0
        %3217 = vdwg.mxu0
        %v3219 = vsel %vm539, %v2922, 0
        %3221 = vmatprep.subr.mxu0 0.0
        %3222 = vmatpush1.msra.mxu0 %v2211
        %3223 = vmatprep.subr.mxu0 0.0
        %3224 = vmatpush1.msra.mxu0 0.0
        %3225 = vmatprep.subr.mxu0 0.0
        %3226 = vmatpush1.msra.mxu0 0.0
        %3227 = vmatprep.subr.mxu0 0.0
        %3228 = vmatpush1.msra.mxu0 0.0
        %3229 = vmatprep.subr.mxu0 0.0
        %3230 = vmatpush1.msra.mxu0 0.0
        %3231 = vmatprep.subr.mxu0 0.0
        %3232 = vmatpush1.msra.mxu0 0.0
        %3233 = vmatprep.subr.mxu0 0.0
        %3234 = vmatpush1.msra.mxu0 0.0
        %3235 = vmatprep.subr.mxu0 0.0
        %3236 = vmatpush1.msra.mxu0 0.0
        %3237 = vmatprep.subr.mxu0 0.0
        %3238 = vmatpush1.msra.mxu0 0.0
        %3239 = vmatprep.subr.mxu0 0.0
        %3240 = vmatpush1.msra.mxu0 0.0
        %3241 = vmatprep.subr.mxu0 0.0
        %3242 = vmatpush1.msra.mxu0 0.0
        %3243 = vmatprep.subr.mxu0 0.0
        %3244 = vmatpush1.msra.mxu0 0.0
        %3245 = vmatprep.subr.mxu0 0.0
        %3246 = vmatpush1.msra.mxu0 0.0
        %3247 = vmatprep.subr.mxu0 0.0
        %3248 = vmatpush1.msra.mxu0 0.0
        %3249 = vmatprep.subr.mxu0 0.0
        %3250 = vmatpush1.msra.mxu0 0.0
        %3251 = vmatprep.subr.mxu0 0.0
        %3252 = vmatpush1.msra.mxu0 0.0
        %3253 = vmatprep.subr.mxu0 0.0
        %3254 = vmatpush1.msra.mxu0 0.0
        %3255 = vmatprep.subr.mxu0 0.0
        %3256 = vmatpush1.msra.mxu0 0.0
        %3257 = vmatprep.subr.mxu0 0.0
        %3258 = vmatpush1.msra.mxu0 0.0
        %3259 = vmatprep.subr.mxu0 0.0
        %3260 = vmatpush1.msra.mxu0 0.0
        %3261 = vmatprep.subr.mxu0 0.0
        %3262 = vmatpush1.msra.mxu0 0.0
        %3263 = vmatprep.subr.mxu0 0.0
        %3264 = vmatpush1.msra.mxu0 0.0
        %3265 = vmatprep.subr.mxu0 0.0
        %3266 = vmatpush1.msra.mxu0 0.0
        %3267 = vmatprep.subr.mxu0 0.0
        %3268 = vmatpush1.msra.mxu0 0.0
        %3269 = vmatprep.subr.mxu0 0.0
        %3270 = vmatpush1.msra.mxu0 0.0
        %3271 = vmatprep.subr.mxu0 0.0
        %3272 = vmatpush1.msra.mxu0 0.0
        %3273 = vmatprep.subr.mxu0 0.0
        %3274 = vmatpush1.msra.mxu0 0.0
        %3275 = vmatprep.subr.mxu0 0.0
        %3276 = vmatpush1.msra.mxu0 0.0
        %3277 = vmatprep.subr.mxu0 0.0
        %3278 = vmatpush1.msra.mxu0 0.0
        %3279 = vmatprep.subr.mxu0 0.0
        %3280 = vmatpush1.msra.mxu0 0.0
        %3281 = vmatprep.subr.mxu0 0.0
        %3282 = vmatpush1.msra.mxu0 0.0
        %3283 = vmatprep.subr.mxu0 0.0
        %3284 = vmatpush1.msra.mxu0 0.0
        %3285 = vmatprep.mubr.f32.mxu0 0.0
        %3286 = vmatmul.mubr.f32.gmra.mrb[0].mxu0 %v3219
        %v3287 = vpop.f32.mrb[0].mxu0
        %v3288 = vadd.f32 0.0, %v3287
        %v3289 = vpop.f32.mrb[0].mxu0
        %3290 = vdwg.mxu0
        %v3292 = vsel %vm539, %v2923, 0
        %3294 = vmatprep.subr.mxu0 0.0
        %3295 = vmatpush1.msra.mxu0 %v2213
        %3296 = vmatprep.subr.mxu0 0.0
        %3297 = vmatpush1.msra.mxu0 0.0
        %3298 = vmatprep.subr.mxu0 0.0
        %3299 = vmatpush1.msra.mxu0 0.0
        %3300 = vmatprep.subr.mxu0 0.0
        %3301 = vmatpush1.msra.mxu0 0.0
        %3302 = vmatprep.subr.mxu0 0.0
        %3303 = vmatpush1.msra.mxu0 0.0
        %3304 = vmatprep.subr.mxu0 0.0
        %3305 = vmatpush1.msra.mxu0 0.0
        %3306 = vmatprep.subr.mxu0 0.0
        %3307 = vmatpush1.msra.mxu0 0.0
        %3308 = vmatprep.subr.mxu0 0.0
        %3309 = vmatpush1.msra.mxu0 0.0
        %3310 = vmatprep.subr.mxu0 0.0
        %3311 = vmatpush1.msra.mxu0 0.0
        %3312 = vmatprep.subr.mxu0 0.0
        %3313 = vmatpush1.msra.mxu0 0.0
        %3314 = vmatprep.subr.mxu0 0.0
        %3315 = vmatpush1.msra.mxu0 0.0
        %3316 = vmatprep.subr.mxu0 0.0
        %3317 = vmatpush1.msra.mxu0 0.0
        %3318 = vmatprep.subr.mxu0 0.0
        %3319 = vmatpush1.msra.mxu0 0.0
        %3320 = vmatprep.subr.mxu0 0.0
        %3321 = vmatpush1.msra.mxu0 0.0
        %3322 = vmatprep.subr.mxu0 0.0
        %3323 = vmatpush1.msra.mxu0 0.0
        %3324 = vmatprep.subr.mxu0 0.0
        %3325 = vmatpush1.msra.mxu0 0.0
        %3326 = vmatprep.subr.mxu0 0.0
        %3327 = vmatpush1.msra.mxu0 0.0
        %3328 = vmatprep.subr.mxu0 0.0
        %3329 = vmatpush1.msra.mxu0 0.0
        %3330 = vmatprep.subr.mxu0 0.0
        %3331 = vmatpush1.msra.mxu0 0.0
        %3332 = vmatprep.subr.mxu0 0.0
        %3333 = vmatpush1.msra.mxu0 0.0
        %3334 = vmatprep.subr.mxu0 0.0
        %3335 = vmatpush1.msra.mxu0 0.0
        %3336 = vmatprep.subr.mxu0 0.0
        %3337 = vmatpush1.msra.mxu0 0.0
        %3338 = vmatprep.subr.mxu0 0.0
        %3339 = vmatpush1.msra.mxu0 0.0
        %3340 = vmatprep.subr.mxu0 0.0
        %3341 = vmatpush1.msra.mxu0 0.0
        %3342 = vmatprep.subr.mxu0 0.0
        %3343 = vmatpush1.msra.mxu0 0.0
        %3344 = vmatprep.subr.mxu0 0.0
        %3345 = vmatpush1.msra.mxu0 0.0
        %3346 = vmatprep.subr.mxu0 0.0
        %3347 = vmatpush1.msra.mxu0 0.0
        %3348 = vmatprep.subr.mxu0 0.0
        %3349 = vmatpush1.msra.mxu0 0.0
        %3350 = vmatprep.subr.mxu0 0.0
        %3351 = vmatpush1.msra.mxu0 0.0
        %3352 = vmatprep.subr.mxu0 0.0
        %3353 = vmatpush1.msra.mxu0 0.0
        %3354 = vmatprep.subr.mxu0 0.0
        %3355 = vmatpush1.msra.mxu0 0.0
        %3356 = vmatprep.subr.mxu0 0.0
        %3357 = vmatpush1.msra.mxu0 0.0
        %3358 = vmatprep.mubr.f32.mxu0 0.0
        %3359 = vmatmul.mubr.f32.gmra.mrb[0].mxu0 %v3292
        %v3360 = vpop.f32.mrb[0].mxu0
        %v3361 = vadd.f32 0.0, %v3360
        %v3362 = vpop.f32.mrb[0].mxu0
        %3363 = vdwg.mxu0
        %v3365 = vsel %vm539, %v2924, 0
        %3367 = vmatprep.subr.mxu0 0.0
        %3368 = vmatpush1.msra.mxu0 %v2217
        %3369 = vmatprep.subr.mxu0 0.0
        %3370 = vmatpush1.msra.mxu0 0.0
        %3371 = vmatprep.subr.mxu0 0.0
        %3372 = vmatpush1.msra.mxu0 0.0
        %3373 = vmatprep.subr.mxu0 0.0
        %3374 = vmatpush1.msra.mxu0 0.0
        %3375 = vmatprep.subr.mxu0 0.0
        %3376 = vmatpush1.msra.mxu0 0.0
        %3377 = vmatprep.subr.mxu0 0.0
        %3378 = vmatpush1.msra.mxu0 0.0
        %3379 = vmatprep.subr.mxu0 0.0
        %3380 = vmatpush1.msra.mxu0 0.0
        %3381 = vmatprep.subr.mxu0 0.0
        %3382 = vmatpush1.msra.mxu0 0.0
        %3383 = vmatprep.subr.mxu0 0.0
        %3384 = vmatpush1.msra.mxu0 0.0
        %3385 = vmatprep.subr.mxu0 0.0
        %3386 = vmatpush1.msra.mxu0 0.0
        %3387 = vmatprep.subr.mxu0 0.0
        %3388 = vmatpush1.msra.mxu0 0.0
        %3389 = vmatprep.subr.mxu0 0.0
        %3390 = vmatpush1.msra.mxu0 0.0
        %3391 = vmatprep.subr.mxu0 0.0
        %3392 = vmatpush1.msra.mxu0 0.0
        %3393 = vmatprep.subr.mxu0 0.0
        %3394 = vmatpush1.msra.mxu0 0.0
        %3395 = vmatprep.subr.mxu0 0.0
        %3396 = vmatpush1.msra.mxu0 0.0
        %3397 = vmatprep.subr.mxu0 0.0
        %3398 = vmatpush1.msra.mxu0 0.0
        %3399 = vmatprep.subr.mxu0 0.0
        %3400 = vmatpush1.msra.mxu0 0.0
        %3401 = vmatprep.subr.mxu0 0.0
        %3402 = vmatpush1.msra.mxu0 0.0
        %3403 = vmatprep.subr.mxu0 0.0
        %3404 = vmatpush1.msra.mxu0 0.0
        %3405 = vmatprep.subr.mxu0 0.0
        %3406 = vmatpush1.msra.mxu0 0.0
        %3407 = vmatprep.subr.mxu0 0.0
        %3408 = vmatpush1.msra.mxu0 0.0
        %3409 = vmatprep.subr.mxu0 0.0
        %3410 = vmatpush1.msra.mxu0 0.0
        %3411 = vmatprep.subr.mxu0 0.0
        %3412 = vmatpush1.msra.mxu0 0.0
        %3413 = vmatprep.subr.mxu0 0.0
        %3414 = vmatpush1.msra.mxu0 0.0
        %3415 = vmatprep.subr.mxu0 0.0
        %3416 = vmatpush1.msra.mxu0 0.0
        %3417 = vmatprep.subr.mxu0 0.0
        %3418 = vmatpush1.msra.mxu0 0.0
        %3419 = vmatprep.subr.mxu0 0.0
        %3420 = vmatpush1.msra.mxu0 0.0
        %3421 = vmatprep.subr.mxu0 0.0
        %3422 = vmatpush1.msra.mxu0 0.0
        %3423 = vmatprep.subr.mxu0 0.0
        %3424 = vmatpush1.msra.mxu0 0.0
        %3425 = vmatprep.subr.mxu0 0.0
        %3426 = vmatpush1.msra.mxu0 0.0
        %3427 = vmatprep.subr.mxu0 0.0
        %3428 = vmatpush1.msra.mxu0 0.0
        %3429 = vmatprep.subr.mxu0 0.0
        %3430 = vmatpush1.msra.mxu0 0.0
        %3431 = vmatprep.mubr.f32.mxu0 0.0
        %3432 = vmatmul.mubr.f32.gmra.mrb[0].mxu0 %v3365
        %v3433 = vpop.f32.mrb[0].mxu0
        %v3434 = vadd.f32 0.0, %v3433
        %v3435 = vpop.f32.mrb[0].mxu0
        %3436 = vdwg.mxu0
        %v3438 = vsel %vm539, %v2925, 0
        %3440 = vmatprep.subr.mxu0 0.0
        %3441 = vmatpush1.msra.mxu0 %v2219
        %3442 = vmatprep.subr.mxu0 0.0
        %3443 = vmatpush1.msra.mxu0 0.0
        %3444 = vmatprep.subr.mxu0 0.0
        %3445 = vmatpush1.msra.mxu0 0.0
        %3446 = vmatprep.subr.mxu0 0.0
        %3447 = vmatpush1.msra.mxu0 0.0
        %3448 = vmatprep.subr.mxu0 0.0
        %3449 = vmatpush1.msra.mxu0 0.0
        %3450 = vmatprep.subr.mxu0 0.0
        %3451 = vmatpush1.msra.mxu0 0.0
        %3452 = vmatprep.subr.mxu0 0.0
        %3453 = vmatpush1.msra.mxu0 0.0
        %3454 = vmatprep.subr.mxu0 0.0
        %3455 = vmatpush1.msra.mxu0 0.0
        %3456 = vmatprep.subr.mxu0 0.0
        %3457 = vmatpush1.msra.mxu0 0.0
        %3458 = vmatprep.subr.mxu0 0.0
        %3459 = vmatpush1.msra.mxu0 0.0
        %3460 = vmatprep.subr.mxu0 0.0
        %3461 = vmatpush1.msra.mxu0 0.0
        %3462 = vmatprep.subr.mxu0 0.0
        %3463 = vmatpush1.msra.mxu0 0.0
        %3464 = vmatprep.subr.mxu0 0.0
        %3465 = vmatpush1.msra.mxu0 0.0
        %3466 = vmatprep.subr.mxu0 0.0
        %3467 = vmatpush1.msra.mxu0 0.0
        %3468 = vmatprep.subr.mxu0 0.0
        %3469 = vmatpush1.msra.mxu0 0.0
        %3470 = vmatprep.subr.mxu0 0.0
        %3471 = vmatpush1.msra.mxu0 0.0
        %3472 = vmatprep.subr.mxu0 0.0
        %3473 = vmatpush1.msra.mxu0 0.0
        %3474 = vmatprep.subr.mxu0 0.0
        %3475 = vmatpush1.msra.mxu0 0.0
        %3476 = vmatprep.subr.mxu0 0.0
        %3477 = vmatpush1.msra.mxu0 0.0
        %3478 = vmatprep.subr.mxu0 0.0
        %3479 = vmatpush1.msra.mxu0 0.0
        %3480 = vmatprep.subr.mxu0 0.0
        %3481 = vmatpush1.msra.mxu0 0.0
        %3482 = vmatprep.subr.mxu0 0.0
        %3483 = vmatpush1.msra.mxu0 0.0
        %3484 = vmatprep.subr.mxu0 0.0
        %3485 = vmatpush1.msra.mxu0 0.0
        %3486 = vmatprep.subr.mxu0 0.0
        %3487 = vmatpush1.msra.mxu0 0.0
        %3488 = vmatprep.subr.mxu0 0.0
        %3489 = vmatpush1.msra.mxu0 0.0
        %3490 = vmatprep.subr.mxu0 0.0
        %3491 = vmatpush1.msra.mxu0 0.0
        %3492 = vmatprep.subr.mxu0 0.0
        %3493 = vmatpush1.msra.mxu0 0.0
        %3494 = vmatprep.subr.mxu0 0.0
        %3495 = vmatpush1.msra.mxu0 0.0
        %3496 = vmatprep.subr.mxu0 0.0
        %3497 = vmatpush1.msra.mxu0 0.0
        %3498 = vmatprep.subr.mxu0 0.0
        %3499 = vmatpush1.msra.mxu0 0.0
        %3500 = vmatprep.subr.mxu0 0.0
        %3501 = vmatpush1.msra.mxu0 0.0
        %3502 = vmatprep.subr.mxu0 0.0
        %3503 = vmatpush1.msra.mxu0 0.0
        %3504 = vmatprep.mubr.f32.mxu0 0.0
        %3505 = vmatmul.mubr.f32.gmra.mrb[0].mxu0 %v3438
        %v3506 = vpop.f32.mrb[0].mxu0
        %v3507 = vadd.f32 0.0, %v3506
        %v3508 = vpop.f32.mrb[0].mxu0
        %3509 = vdwg.mxu0
        %3512 = vrot.lane.b32.xlu0 %v3142, 8
        %v3513 = vpop.permute.xlu0 %3512
        %3514 = vrot.lane.b32.xlu0 %v3215, 8
        %v3515 = vpop.permute.xlu0 %3514
        %3520 = vrot.lane.b32.xlu0 %v3288, 16
        %v3521 = vpop.permute.xlu0 %3520
        %3522 = vrot.lane.b32.xlu0 %v3361, 16
        %v3523 = vpop.permute.xlu0 %3522
        %3528 = vrot.lane.b32.xlu0 %v3434, 24
        %v3529 = vpop.permute.xlu0 %3528
        %3530 = vrot.lane.b32.xlu0 %v3507, 24
        %v3531 = vpop.permute.xlu0 %3530
        %v3534 = vsel %vm539, %v2996, %v3513
        %v3535 = vsel %vm539, %v3069, %v3515
        %v3536 = vsel %vm1876, %v3534, %v3521
        %v3537 = vsel %vm1876, %v3535, %v3523
        %v3538 = vsel %vm1879, %v3536, %v3529
        %v3539 = vsel %vm1879, %v3537, %v3531
        %v3540 = vlaneseq
        %v3541 = vshrl.u32 %v3540, 7
        %v3542 = vsub.s32 1, %v3541
        %v3543 = vrot.slane %v435, %v3542
        %v3545 = vsel %vm441, %v3538, 0
        %v3548 = vsel %vm441, %v3539, 0
        %3550 = vmatprep.subr.mxu0 0.0
        %3551 = vmatpush1.msra.mxu0 %v423
        %3552 = vmatprep.subr.mxu0 0.0
        %3553 = vmatpush1.msra.mxu0 %v424
        %3554 = vmatprep.subr.mxu0 0.0
        %3555 = vmatpush1.msra.mxu0 %v425
        %3556 = vmatprep.subr.mxu0 0.0
        %3557 = vmatpush1.msra.mxu0 %v426
        %3558 = vmatprep.subr.mxu0 0.0
        %3559 = vmatpush1.msra.mxu0 0.0
        %3560 = vmatprep.subr.mxu0 0.0
        %3561 = vmatpush1.msra.mxu0 0.0
        %3562 = vmatprep.subr.mxu0 0.0
        %3563 = vmatpush1.msra.mxu0 0.0
        %3564 = vmatprep.subr.mxu0 0.0
        %3565 = vmatpush1.msra.mxu0 0.0
        %3566 = vmatprep.subr.mxu0 0.0
        %3567 = vmatpush1.msra.mxu0 0.0
        %3568 = vmatprep.subr.mxu0 0.0
        %3569 = vmatpush1.msra.mxu0 0.0
        %3570 = vmatprep.subr.mxu0 0.0
        %3571 = vmatpush1.msra.mxu0 0.0
        %3572 = vmatprep.subr.mxu0 0.0
        %3573 = vmatpush1.msra.mxu0 0.0
        %3574 = vmatprep.subr.mxu0 0.0
        %3575 = vmatpush1.msra.mxu0 0.0
        %3576 = vmatprep.subr.mxu0 0.0
        %3577 = vmatpush1.msra.mxu0 0.0
        %3578 = vmatprep.subr.mxu0 0.0
        %3579 = vmatpush1.msra.mxu0 0.0
        %3580 = vmatprep.subr.mxu0 0.0
        %3581 = vmatpush1.msra.mxu0 0.0
        %3582 = vmatprep.subr.mxu0 0.0
        %3583 = vmatpush1.msra.mxu0 0.0
        %3584 = vmatprep.subr.mxu0 0.0
        %3585 = vmatpush1.msra.mxu0 0.0
        %3586 = vmatprep.subr.mxu0 0.0
        %3587 = vmatpush1.msra.mxu0 0.0
        %3588 = vmatprep.subr.mxu0 0.0
        %3589 = vmatpush1.msra.mxu0 0.0
        %3590 = vmatprep.subr.mxu0 0.0
        %3591 = vmatpush1.msra.mxu0 0.0
        %3592 = vmatprep.subr.mxu0 0.0
        %3593 = vmatpush1.msra.mxu0 0.0
        %3594 = vmatprep.subr.mxu0 0.0
        %3595 = vmatpush1.msra.mxu0 0.0
        %3596 = vmatprep.subr.mxu0 0.0
        %3597 = vmatpush1.msra.mxu0 0.0
        %3598 = vmatprep.subr.mxu0 0.0
        %3599 = vmatpush1.msra.mxu0 0.0
        %3600 = vmatprep.subr.mxu0 0.0
        %3601 = vmatpush1.msra.mxu0 0.0
        %3602 = vmatprep.subr.mxu0 0.0
        %3603 = vmatpush1.msra.mxu0 0.0
        %3604 = vmatprep.subr.mxu0 0.0
        %3605 = vmatpush1.msra.mxu0 0.0
        %3606 = vmatprep.subr.mxu0 0.0
        %3607 = vmatpush1.msra.mxu0 0.0
        %3608 = vmatprep.subr.mxu0 0.0
        %3609 = vmatpush1.msra.mxu0 0.0
        %3610 = vmatprep.subr.mxu0 0.0
        %3611 = vmatpush1.msra.mxu0 0.0
        %3612 = vmatprep.subr.mxu0 0.0
        %3613 = vmatpush1.msra.mxu0 0.0
        %3614 = vmatprep.mubr.f32.mxu0 0.0
        %3615 = vmatmul.mubr.f32.gmra.mrb[0].mxu0 %v3545
        %v3616 = vpop.f32.mrb[0].mxu0
        %v3617 = vadd.f32 %v3543, %v3616
        %v3618 = vpop.f32.mrb[0].mxu0
        %3619 = vmatprep.mubr.f32.mxu0 0.0
        %3620 = vmatmul.mubr.f32.gmra.mrb[0].mxu0 %v3548
        %v3621 = vpop.f32.mrb[0].mxu0
        %v3622 = vadd.f32 %v3543, %v3621
        %v3623 = vpop.f32.mrb[0].mxu0
        %3624 = vdwg.mxu0
        %v3625 = vadd.f32 %v3617, %v2006
        %v3626 = vadd.f32 %v3622, %v2007
        %v3627 = vsel %vm441, %v3625, 0.0
        %3628 = vadd.xlane.f32.xlu0 %v3627
        %v3629 = vpop.xlane.xlu0 %3628
        %v3630 = vsel %vm441, %v3626, 0.0
        %3631 = vadd.xlane.f32.xlu0 %v3630
        %v3632 = vpop.xlane.xlu0 %3631
        %v3633 = vmul.f32 %v3629, %v1975
        %v3634 = vmul.f32 %v3632, %v1975
        %v3635 = vsub.f32 %v3625, %v3633
        %v3636 = vsub.f32 %v3626, %v3634
        %v3637 = vmul.f32 %v3635, %v3635
        %v3638 = vmul.f32 %v3636, %v3636
        %v3639 = vsel %vm441, %v3637, 0.0
        %3640 = vadd.xlane.f32.xlu0 %v3639
        %v3641 = vpop.xlane.xlu0 %3640
        %v3642 = vsel %vm441, %v3638, 0.0
        %3643 = vadd.xlane.f32.xlu0 %v3642
        %v3644 = vpop.xlane.xlu0 %3643
        %v3645 = vmul.f32 %v3641, %v1975
        %v3646 = vmul.f32 %v3644, %v1975
        %v3647 = vadd.f32 %v3645, 1e-06
        %v3648 = vadd.f32 %v3646, 1e-06
        %v3649 = vrsqrt.pop %v3647
        %v3650 = vrsqrt.pop %v3648
        %v3651 = vmul.f32 %v3635, %v3649
        %v3652 = vmul.f32 %v3636, %v3650
        %v3653 = vlaneseq
        %v3654 = vshrl.u32 %v3653, 7
        %v3655 = vsub.s32 4, %v3654
        %v3656 = vrot.slane %v435, %v3655
        %v3657 = vmul.f32 %v3651, %v3656
        %v3658 = vmul.f32 %v3652, %v3656
        %v3659 = vlaneseq
        %v3660 = vshrl.u32 %v3659, 7
        %v3661 = vsub.s32 5, %v3660
        %v3662 = vrot.slane %v435, %v3661
        %v3663 = vadd.f32 %v3657, %v3662
        %v3664 = vadd.f32 %v3658, %v3662
        %v3665 = vlaneseq
        %v3666 = vshrl.u32 %v3665, 7
        %v3667 = vsub.s32 0, %v3666
        %v3668 = vrot.slane %v436, %v3667
        %v3670 = vsel %vm441, %v3663, 0
        %v3673 = vsel %vm441, %v3664, 0
        %3675 = vmatprep.subr.mxu0 0.0
        %3676 = vmatpush1.msra.mxu0 %v427
        %3677 = vmatprep.subr.mxu0 0.0
        %3678 = vmatpush1.msra.mxu0 %v428
        %3679 = vmatprep.subr.mxu0 0.0
        %3680 = vmatpush1.msra.mxu0 %v429
        %3681 = vmatprep.subr.mxu0 0.0
        %3682 = vmatpush1.msra.mxu0 %v430
        %3683 = vmatprep.subr.mxu0 0.0
        %3684 = vmatpush1.msra.mxu0 0.0
        %3685 = vmatprep.subr.mxu0 0.0
        %3686 = vmatpush1.msra.mxu0 0.0
        %3687 = vmatprep.subr.mxu0 0.0
        %3688 = vmatpush1.msra.mxu0 0.0
        %3689 = vmatprep.subr.mxu0 0.0
        %3690 = vmatpush1.msra.mxu0 0.0
        %3691 = vmatprep.subr.mxu0 0.0
        %3692 = vmatpush1.msra.mxu0 0.0
        %3693 = vmatprep.subr.mxu0 0.0
        %3694 = vmatpush1.msra.mxu0 0.0
        %3695 = vmatprep.subr.mxu0 0.0
        %3696 = vmatpush1.msra.mxu0 0.0
        %3697 = vmatprep.subr.mxu0 0.0
        %3698 = vmatpush1.msra.mxu0 0.0
        %3699 = vmatprep.subr.mxu0 0.0
        %3700 = vmatpush1.msra.mxu0 0.0
        %3701 = vmatprep.subr.mxu0 0.0
        %3702 = vmatpush1.msra.mxu0 0.0
        %3703 = vmatprep.subr.mxu0 0.0
        %3704 = vmatpush1.msra.mxu0 0.0
        %3705 = vmatprep.subr.mxu0 0.0
        %3706 = vmatpush1.msra.mxu0 0.0
        %3707 = vmatprep.subr.mxu0 0.0
        %3708 = vmatpush1.msra.mxu0 0.0
        %3709 = vmatprep.subr.mxu0 0.0
        %3710 = vmatpush1.msra.mxu0 0.0
        %3711 = vmatprep.subr.mxu0 0.0
        %3712 = vmatpush1.msra.mxu0 0.0
        %3713 = vmatprep.subr.mxu0 0.0
        %3714 = vmatpush1.msra.mxu0 0.0
        %3715 = vmatprep.subr.mxu0 0.0
        %3716 = vmatpush1.msra.mxu0 0.0
        %3717 = vmatprep.subr.mxu0 0.0
        %3718 = vmatpush1.msra.mxu0 0.0
        %3719 = vmatprep.subr.mxu0 0.0
        %3720 = vmatpush1.msra.mxu0 0.0
        %3721 = vmatprep.subr.mxu0 0.0
        %3722 = vmatpush1.msra.mxu0 0.0
        %3723 = vmatprep.subr.mxu0 0.0
        %3724 = vmatpush1.msra.mxu0 0.0
        %3725 = vmatprep.subr.mxu0 0.0
        %3726 = vmatpush1.msra.mxu0 0.0
        %3727 = vmatprep.subr.mxu0 0.0
        %3728 = vmatpush1.msra.mxu0 0.0
        %3729 = vmatprep.subr.mxu0 0.0
        %3730 = vmatpush1.msra.mxu0 0.0
        %3731 = vmatprep.subr.mxu0 0.0
        %3732 = vmatpush1.msra.mxu0 0.0
        %3733 = vmatprep.subr.mxu0 0.0
        %3734 = vmatpush1.msra.mxu0 0.0
        %3735 = vmatprep.subr.mxu0 0.0
        %3736 = vmatpush1.msra.mxu0 0.0
        %3737 = vmatprep.subr.mxu0 0.0
        %3738 = vmatpush1.msra.mxu0 0.0
        %3739 = vmatprep.mubr.f32.mxu0 0.0
        %3740 = vmatmul.mubr.f32.gmra.mrb[0].mxu0 %v3670
        %v3741 = vpop.f32.mrb[0].mxu0
        %v3742 = vadd.f32 %v3668, %v3741
        %v3743 = vpop.f32.mrb[0].mxu0
        %3744 = vmatprep.mubr.f32.mxu0 0.0
        %3745 = vmatmul.mubr.f32.gmra.mrb[0].mxu0 %v3673
        %v3746 = vpop.f32.mrb[0].mxu0
        %v3747 = vadd.f32 %v3668, %v3746
        %v3748 = vpop.f32.mrb[0].mxu0
        %3749 = vdwg.mxu0
        %v3750 = vmax.f32 %v3742, 0.0
        %v3751 = vmax.f32 %v3747, 0.0
        %v3752 = vlaneseq
        %v3753 = vshrl.u32 %v3752, 7
        %v3754 = vsub.s32 1, %v3753
        %v3755 = vrot.slane %v436, %v3754
        %v3757 = vsel %vm441, %v3750, 0
        %v3760 = vsel %vm441, %v3751, 0
        %3762 = vmatprep.subr.mxu0 0.0
        %3763 = vmatpush1.msra.mxu0 %v431
        %3764 = vmatprep.subr.mxu0 0.0
        %3765 = vmatpush1.msra.mxu0 %v432
        %3766 = vmatprep.subr.mxu0 0.0
        %3767 = vmatpush1.msra.mxu0 %v433
        %3768 = vmatprep.subr.mxu0 0.0
        %3769 = vmatpush1.msra.mxu0 %v434
        %3770 = vmatprep.subr.mxu0 0.0
        %3771 = vmatpush1.msra.mxu0 0.0
        %3772 = vmatprep.subr.mxu0 0.0
        %3773 = vmatpush1.msra.mxu0 0.0
        %3774 = vmatprep.subr.mxu0 0.0
        %3775 = vmatpush1.msra.mxu0 0.0
        %3776 = vmatprep.subr.mxu0 0.0
        %3777 = vmatpush1.msra.mxu0 0.0
        %3778 = vmatprep.subr.mxu0 0.0
        %3779 = vmatpush1.msra.mxu0 0.0
        %3780 = vmatprep.subr.mxu0 0.0
        %3781 = vmatpush1.msra.mxu0 0.0
        %3782 = vmatprep.subr.mxu0 0.0
        %3783 = vmatpush1.msra.mxu0 0.0
        %3784 = vmatprep.subr.mxu0 0.0
        %3785 = vmatpush1.msra.mxu0 0.0
        %3786 = vmatprep.subr.mxu0 0.0
        %3787 = vmatpush1.msra.mxu0 0.0
        %3788 = vmatprep.subr.mxu0 0.0
        %3789 = vmatpush1.msra.mxu0 0.0
        %3790 = vmatprep.subr.mxu0 0.0
        %3791 = vmatpush1.msra.mxu0 0.0
        %3792 = vmatprep.subr.mxu0 0.0
        %3793 = vmatpush1.msra.mxu0 0.0
        %3794 = vmatprep.subr.mxu0 0.0
        %3795 = vmatpush1.msra.mxu0 0.0
        %3796 = vmatprep.subr.mxu0 0.0
        %3797 = vmatpush1.msra.mxu0 0.0
        %3798 = vmatprep.subr.mxu0 0.0
        %3799 = vmatpush1.msra.mxu0 0.0
        %3800 = vmatprep.subr.mxu0 0.0
        %3801 = vmatpush1.msra.mxu0 0.0
        %3802 = vmatprep.subr.mxu0 0.0
        %3803 = vmatpush1.msra.mxu0 0.0
        %3804 = vmatprep.subr.mxu0 0.0
        %3805 = vmatpush1.msra.mxu0 0.0
        %3806 = vmatprep.subr.mxu0 0.0
        %3807 = vmatpush1.msra.mxu0 0.0
        %3808 = vmatprep.subr.mxu0 0.0
        %3809 = vmatpush1.msra.mxu0 0.0
        %3810 = vmatprep.subr.mxu0 0.0
        %3811 = vmatpush1.msra.mxu0 0.0
        %3812 = vmatprep.subr.mxu0 0.0
        %3813 = vmatpush1.msra.mxu0 0.0
        %3814 = vmatprep.subr.mxu0 0.0
        %3815 = vmatpush1.msra.mxu0 0.0
        %3816 = vmatprep.subr.mxu0 0.0
        %3817 = vmatpush1.msra.mxu0 0.0
        %3818 = vmatprep.subr.mxu0 0.0
        %3819 = vmatpush1.msra.mxu0 0.0
        %3820 = vmatprep.subr.mxu0 0.0
        %3821 = vmatpush1.msra.mxu0 0.0
        %3822 = vmatprep.subr.mxu0 0.0
        %3823 = vmatpush1.msra.mxu0 0.0
        %3824 = vmatprep.subr.mxu0 0.0
        %3825 = vmatpush1.msra.mxu0 0.0
        %3826 = vmatprep.mubr.f32.mxu0 0.0
        %3827 = vmatmul.mubr.f32.gmra.mrb[0].mxu0 %v3757
        %v3828 = vpop.f32.mrb[0].mxu0
        %v3829 = vadd.f32 %v3755, %v3828
        %v3830 = vpop.f32.mrb[0].mxu0
        %3831 = vmatprep.mubr.f32.mxu0 0.0
        %3832 = vmatmul.mubr.f32.gmra.mrb[0].mxu0 %v3760
        %v3833 = vpop.f32.mrb[0].mxu0
        %v3834 = vadd.f32 %v3755, %v3833
        %v3835 = vpop.f32.mrb[0].mxu0
        %3836 = vdwg.mxu0
        %v3837 = vadd.f32 %v3829, %v3663
        %v3838 = vadd.f32 %v3834, %v3664
        %v3839 = vsel %vm441, %v3837, 0.0
        %3840 = vadd.xlane.f32.xlu0 %v3839
        %v3841 = vpop.xlane.xlu0 %3840
        %v3842 = vsel %vm441, %v3838, 0.0
        %3843 = vadd.xlane.f32.xlu0 %v3842
        %v3844 = vpop.xlane.xlu0 %3843
        %v3845 = vmul.f32 %v3841, %v1975
        %v3846 = vmul.f32 %v3844, %v1975
        %v3847 = vsub.f32 %v3837, %v3845
        %v3848 = vsub.f32 %v3838, %v3846
        %v3849 = vmul.f32 %v3847, %v3847
        %v3850 = vmul.f32 %v3848, %v3848
        %v3851 = vsel %vm441, %v3849, 0.0
        %3852 = vadd.xlane.f32.xlu0 %v3851
        %v3853 = vpop.xlane.xlu0 %3852
        %v3854 = vsel %vm441, %v3850, 0.0
        %3855 = vadd.xlane.f32.xlu0 %v3854
        %v3856 = vpop.xlane.xlu0 %3855
        %v3857 = vmul.f32 %v3853, %v1975
        %v3858 = vmul.f32 %v3856, %v1975
        %v3859 = vadd.f32 %v3857, 1e-06
        %v3860 = vadd.f32 %v3858, 1e-06
        %v3861 = vrsqrt.pop %v3859
        %v3862 = vrsqrt.pop %v3860
        %v3863 = vmul.f32 %v3847, %v3861
        %v3864 = vmul.f32 %v3848, %v3862
        %v3865 = vlaneseq
        %v3866 = vshrl.u32 %v3865, 7
        %v3867 = vsub.s32 6, %v3866
        %v3868 = vrot.slane %v435, %v3867
        %v3869 = vmul.f32 %v3863, %v3868
        %v3870 = vmul.f32 %v3864, %v3868
        %v3871 = vlaneseq
        %v3872 = vshrl.u32 %v3871, 7
        %v3873 = vsub.s32 7, %v3872
        %v3874 = vrot.slane %v435, %v3873
        %v3875 = vadd.f32 %v3869, %v3874
        %v3876 = vadd.f32 %v3870, %v3874
        %3877 = vst.msk [vmem:[#allocation7] sm:$0xff] %vm441, %v3875
        %3878 = vst.msk [vmem:[#allocation7 + $0x8] sm:$0xff] %vm441, %v3876
        // Predicated region
        $region57: #{tpu_custom_call.1} parent=43 // pred_check
          %p3879 = pneg %p210
        $region58: #{tpu_custom_call.1} parent=43 // pred_check_branch
          %3881 = sbr.rel (%p3879) target = $region60
        $region59: #{tpu_custom_call.1} parent=43 // pred_region
          %s3882 = smul.u32 2, %s28
          %s3884 = ssub.s32 256, 256
          %3885 = vsyncadd [#allocation4], %s3884
          %s3886 = smul.addr %s3882, 128
          %s3887 = scalar_lea.hbm %s6, %s3886
          %s3888 = sshll.u32 [#allocation7], 4
          %s3889 = int_to_ptr.vmem [resolvable:$true] %s3888
          %3894 = dma.vmem_to_hbm [thread:$0]  %s3889, 256, %s3887, [#allocation4], 128, 128, 8
        $region60: #{tpu_custom_call.1} parent=43 // pred_fallthru
          _
        // Predicated region
        $region61: #{tpu_custom_call.1} parent=43 // pred_check
          %p3895 = pneg %p210
        $region62: #{tpu_custom_call.1} parent=43 // pred_check_branch
          %3897 = sbr.rel (%p3895) target = $region64
        $region63: #{tpu_custom_call.1} parent=43 // pred_region
          %3898 = dma.done [#allocation4], 256
        $region64: #{tpu_custom_call.1} parent=43 // pred_fallthru
          _
      $region44: #{tpu_custom_call.1} parent=5 // pred_fallthru
        _
      %p3899 = scmp.le.s32.totalorder 2, %s19
      // Predicated region
      $region65: #{tpu_custom_call.1} parent=5 // pred_check
        %p3900 = pneg %p3899
      $region66: #{tpu_custom_call.1} parent=5 // pred_check_branch
        %3902 = sbr.rel (%p3900) target = $region68
      $region67: #{tpu_custom_call.1} parent=5 // pred_region
        %s3903 = ssub.s32 %s19, 2
      $region68: #{tpu_custom_call.1} parent=5 // pred_fallthru
        _
    $region6: #{tpu_custom_call.1} parent=1 // loop_footer
      %s23 = sadd.s32 1, %s19
    $region7: #{tpu_custom_call.1} parent=1 // loop_footer_branch
      %18 = sbr.rel target = $region3
    $region8: #{tpu_custom_call.1} parent=1 // loop_exit
      _
    %3904 = vsyncpa [#allocation3], 1
    %s3905 = scalar_lea.sflag [#allocation3], 1
    %3906 = vsyncpa %s3905, 1
    %3907 = vsyncpa [#allocation6], 1
    %s3908 = scalar_lea.sflag [#allocation6], 1
    %3909 = vsyncpa %s3908, 1
    %3910 = vsyncpa [#allocation4], 1
    %s3911 = scalar_lea.sflag [#allocation4], 1
    %3912 = vsyncpa %s3911, 1

</llo_original>
